<compile_context>
chip_gen: v7x
topology: tpu7x:2x2x1
jax: 0.10.0
libtpu: 0.0.40
codegen_flags: <defaults>
</compile_context>

<pallas_src>
import jax
import jax.numpy as jnp
from jax.experimental import pallas as pl
from jax.experimental.pallas import tpu as pltpu

COMPUTE_DTYPE = jnp.bfloat16       # bf16 operands, f32 accumulation in-kernel
_TM_MAX = 1024                     # row tile (multiple of 8); ~5 MiB worst-case VMEM
_VMEM_LIMIT = 32 * 1024 * 1024


def _round_up(x, m):
    return (x + m - 1) // m * m


# ---------------------------- Pallas kernels ----------------------------

def _conv_pool_kernel(p_ref, w_ref, b_ref, o_ref):
    """Fused conv3x3 (as im2col matmul) + 2x2 maxpool + bias + relu for one M-tile.

    p_ref: [4, TM, K] bf16  (axis 0 = the four 2x2-pool window positions)
    w_ref: [K, N]     bf16
    b_ref: [1, N]     f32
    o_ref: [TM, N]
    """
    acc = jnp.dot(p_ref[0], w_ref[...], preferred_element_type=jnp.float32)
    for q in range(1, 4):  # static unroll; max over quadrants == 2x2 maxpool
        acc = jnp.maximum(
            acc, jnp.dot(p_ref[q], w_ref[...], preferred_element_type=jnp.float32))
    o_ref[...] = jnp.maximum(acc + b_ref[...], 0.0).astype(o_ref.dtype)


def _conv_pool_fc_kernel(p_ref, w_ref, b_ref, fcw_ref, fcb_ref, o_ref):
    """Last layer: conv3 + pool + relu, then flatten -> dropout(eval) -> fc1, fused."""
    acc = jnp.dot(p_ref[0], w_ref[...], preferred_element_type=jnp.float32)
    for q in range(1, 4):
        acc = jnp.maximum(
            acc, jnp.dot(p_ref[q], w_ref[...], preferred_element_type=jnp.float32))
    h = jnp.maximum(acc + b_ref[...], 0.0)                    # [TM, 128] f32 == flattened feats
    # Dropout(0.5) is identity in eval mode.
    # TODO(synk): training-mode dropout (pltpu.prng_seed + prng_random_bits mask) not implemented.
    logits = jnp.dot(h.astype(fcw_ref.dtype), fcw_ref[...],
                     preferred_element_type=jnp.float32)
    o_ref[...] = (logits + fcb_ref[...]).astype(o_ref.dtype)


# ---------------------------- wrappers ----------------------------

def _fused_conv_layer(patches, w, b, out_dtype, fc_w=None, fc_b=None):
    """patches: [4, M, K] bf16; w: [K, N] bf16; b: [1, N] f32. Returns [M, Nout]."""
    q_dim, m_rows, k_dim = patches.shape
    n_dim = w.shape[1]
    n_out = n_dim if fc_w is None else fc_w.shape[1]

    # Row tiling: TM multiple of 8, capped at _TM_MAX; pad M so the grid divides evenly.
    m8 = _round_up(m_rows, 8)
    if m8 <= _TM_MAX:
        tm, m_pad = m8, m8
    else:
        tm = _TM_MAX
        m_pad = _round_up(m_rows, tm)
    if m_pad != m_rows:
        patches = jnp.pad(patches, ((0, 0), (0, m_pad - m_rows), (0, 0)))

    bcast = lambda m: (0, 0)   # weights/bias stay resident across M-tiles
    in_specs = [
        pl.BlockSpec((q_dim, tm, k_dim), lambda m: (0, m, 0)),   # activations: tiled over M
        pl.BlockSpec((k_dim, n_dim), bcast),
        pl.BlockSpec((1, n_dim), bcast),
    ]
    args = [patches, w, b]
    if fc_w is None:
        kernel = _conv_pool_kernel
    else:
        kernel = _conv_pool_fc_kernel
        in_specs += [pl.BlockSpec(fc_w.shape, bcast), pl.BlockSpec(fc_b.shape, bcast)]
        args += [fc_w, fc_b]

    out = pl.pallas_call(
        kernel,
        out_shape=jax.ShapeDtypeStruct((m_pad, n_out), out_dtype),
        grid=(m_pad // tm,),
        in_specs=in_specs,
        out_specs=pl.BlockSpec((tm, n_out), lambda m: (m, 0)),
        compiler_params=pltpu.CompilerParams(
            dimension_semantics=("parallel",),      # M-tiles are independent
            vmem_limit_bytes=_VMEM_LIMIT),
    )(*args)
    return out[:m_rows]


def _pool_im2col(x):
    """x: [B, H, W, C] -> ([4, B*Po*Pw, 9*C], Po, Pw) for conv3x3(valid) + maxpool2x2.

    Axis 0 indexes the 4 positions of each 2x2 pool window; patch features are in
    (kh, kw, Cin) order, matching the [9*Cin, Cout] weight layout.  Only conv output
    positions that survive the floor-mode pool are materialized.
    TODO(synk): this im2col is XLA glue in HBM; a halo'd-BlockSpec in-kernel gather
    could cut the 9x activation traffic further, at the cost of lane-sparse layouts.
    """
    bsz, h, w, c = x.shape
    po, pw = (h - 2) // 2, (w - 2) // 2
    quads = []
    for dy in range(2):
        for dx in range(2):
            taps = []
            for i in range(3):
                for j in range(3):
                    r0, c0 = dy + i, dx + j
                    s = x[:, r0:r0 + 2 * (po - 1) + 1:2, c0:c0 + 2 * (pw - 1) + 1:2, :]
                    taps.append(s.reshape(bsz * po * pw, c))
            quads.append(jnp.concatenate(taps, axis=-1))
    return jnp.stack(quads, axis=0), po, pw


# ---------------------------- model ----------------------------

def init_params(key):
    ks = jax.random.split(key, 8)

    def conv_w(k, cin, cout):
        fan_in = 9 * cin
        w = jax.random.normal(k, (3, 3, cin, cout), jnp.float32) / jnp.sqrt(fan_in)
        return w.reshape(9 * cin, cout).astype(COMPUTE_DTYPE)   # rows in (kh, kw, Cin) order

    def bias(k, n):
        return 0.01 * jax.random.normal(k, (1, n), jnp.float32)

    fc_w = jax.random.normal(ks[6], (128, 10), jnp.float32) / jnp.sqrt(128.0)
    fc_b = 0.01 * jax.random.normal(ks[7], (10,), jnp.float32)
    # Pad FC to 128 output lanes (lane-dense stores); only columns [:10] are real.
    fc_w_pad = jnp.zeros((128, 128), jnp.float32).at[:, :10].set(fc_w).astype(COMPUTE_DTYPE)
    fc_b_pad = jnp.zeros((1, 128), jnp.float32).at[0, :10].set(fc_b)

    return {
        "w1": conv_w(ks[0], 1, 32),   "b1": bias(ks[1], 32),
        "w2": conv_w(ks[2], 32, 64),  "b2": bias(ks[3], 64),
        "w3": conv_w(ks[4], 64, 128), "b3": bias(ks[5], 128),
        "fc_w": fc_w_pad, "fc_b": fc_b_pad,
    }


def forward(params, x_nchw):
    # PyTorch NCHW -> NHWC; bf16 activations for the MXU, f32 accumulation in-kernel.
    x = jnp.transpose(x_nchw, (0, 2, 3, 1)).astype(COMPUTE_DTYPE)      # [B, 28, 28, 1]
    bsz = x.shape[0]

    p1, po, pw = _pool_im2col(x)                                       # [4, B*13*13, 9]
    x = _fused_conv_layer(p1, params["w1"], params["b1"], COMPUTE_DTYPE)
    x = x.reshape(bsz, po, pw, -1)                                     # [B, 13, 13, 32]

    p2, po, pw = _pool_im2col(x)                                       # [4, B*5*5, 288]
    x = _fused_conv_layer(p2, params["w2"], params["b2"], COMPUTE_DTYPE)
    x = x.reshape(bsz, po, pw, -1)                                     # [B, 5, 5, 64]

    p3, _, _ = _pool_im2col(x)                                         # [4, B, 576]
    logits_pad = _fused_conv_layer(p3, params["w3"], params["b3"], jnp.float32,
                                   fc_w=params["fc_w"], fc_b=params["fc_b"])  # [B, 128]
    return logits_pad[:, :10]                                          # [B, 10]


if __name__ == "__main__":
    key = jax.random.PRNGKey(0)
    pkey, xkey = jax.random.split(key)
    params = init_params(pkey)
    # Forward implies 28x28 single-channel input (3x [conv3x3 + pool2] -> 1x1x128 for fc1).
    x = jax.random.normal(xkey, (2, 1, 28, 28), jnp.float32)
    out = jax.jit(forward)(params, x)
    out = jax.block_until_ready(out)
    assert out.shape == (2, 10), out.shape
    print("KERNEL_OK")
</pallas_src>

<mosaic_0001>
module attributes {stable_mosaic.version = 11 : i64} {
  func.func @_conv_pool_kernel(%arg0: i32, %arg1: memref<4x344x9xbf16, #tpu.memory_space<vmem>>, %arg2: memref<9x32xbf16, #tpu.memory_space<vmem>>, %arg3: memref<1x32xf32, #tpu.memory_space<vmem>>, %arg4: memref<344x32xbf16, #tpu.memory_space<vmem>>) attributes {dimension_semantics = [#tpu.dimension_semantics<parallel>], iteration_bounds = array<i64: 1>, scalar_prefetch = 0 : i64, scratch_operands = 0 : i64, tpu.core_type = #tpu.core_type<tc>, window_params = [{transform_indices = @transform_0, window_bounds = array<i64: 4, 344, 9>}, {pipeline_mode = #tpu.pipeline_mode<synchronous>, transform_indices = @transform_1, window_bounds = array<i64: 9, 32>}, {pipeline_mode = #tpu.pipeline_mode<synchronous>, transform_indices = @transform_2, window_bounds = array<i64: 1, 32>}, {transform_indices = @transform_3, window_bounds = array<i64: 344, 32>}]} {
    %c0 = arith.constant 0 : index
    %c0_0 = arith.constant 0 : index
    %c0_1 = arith.constant 0 : index
    %0 = vector.load %arg1[%c0, %c0_0, %c0_1] : memref<4x344x9xbf16, #tpu.memory_space<vmem>>, vector<1x344x9xbf16>
    %1 = vector.shape_cast %0 : vector<1x344x9xbf16> to vector<344x9xbf16>
    %c0_2 = arith.constant 0 : index
    %c0_3 = arith.constant 0 : index
    %2 = vector.load %arg2[%c0_2, %c0_3] : memref<9x32xbf16, #tpu.memory_space<vmem>>, vector<9x32xbf16>
    %cst = arith.constant dense<0.000000e+00> : vector<344x32xf32>
    %3 = tpu.matmul %1, %2, %cst {dimension_numbers = #tpu.dot_dimension_numbers<[1], [0], [0], [1], [0, 0, 1, 1], [], []>} : vector<344x9xbf16>, vector<9x32xbf16>, vector<344x32xf32> -> vector<344x32xf32>
    %c1 = arith.constant 1 : index
    %c0_4 = arith.constant 0 : index
    %c0_5 = arith.constant 0 : index
    %4 = vector.load %arg1[%c1, %c0_4, %c0_5] : memref<4x344x9xbf16, #tpu.memory_space<vmem>>, vector<1x344x9xbf16>
    %5 = vector.shape_cast %4 : vector<1x344x9xbf16> to vector<344x9xbf16>
    %c0_6 = arith.constant 0 : index
    %c0_7 = arith.constant 0 : index
    %6 = vector.load %arg2[%c0_6, %c0_7] : memref<9x32xbf16, #tpu.memory_space<vmem>>, vector<9x32xbf16>
    %cst_8 = arith.constant dense<0.000000e+00> : vector<344x32xf32>
    %7 = tpu.matmul %5, %6, %cst_8 {dimension_numbers = #tpu.dot_dimension_numbers<[1], [0], [0], [1], [0, 0, 1, 1], [], []>} : vector<344x9xbf16>, vector<9x32xbf16>, vector<344x32xf32> -> vector<344x32xf32>
    %8 = arith.maximumf %3, %7 : vector<344x32xf32>
    %c2 = arith.constant 2 : index
    %c0_9 = arith.constant 0 : index
    %c0_10 = arith.constant 0 : index
    %9 = vector.load %arg1[%c2, %c0_9, %c0_10] : memref<4x344x9xbf16, #tpu.memory_space<vmem>>, vector<1x344x9xbf16>
    %10 = vector.shape_cast %9 : vector<1x344x9xbf16> to vector<344x9xbf16>
    %c0_11 = arith.constant 0 : index
    %c0_12 = arith.constant 0 : index
    %11 = vector.load %arg2[%c0_11, %c0_12] : memref<9x32xbf16, #tpu.memory_space<vmem>>, vector<9x32xbf16>
    %cst_13 = arith.constant dense<0.000000e+00> : vector<344x32xf32>
    %12 = tpu.matmul %10, %11, %cst_13 {dimension_numbers = #tpu.dot_dimension_numbers<[1], [0], [0], [1], [0, 0, 1, 1], [], []>} : vector<344x9xbf16>, vector<9x32xbf16>, vector<344x32xf32> -> vector<344x32xf32>
    %13 = arith.maximumf %8, %12 : vector<344x32xf32>
    %c3 = arith.constant 3 : index
    %c0_14 = arith.constant 0 : index
    %c0_15 = arith.constant 0 : index
    %14 = vector.load %arg1[%c3, %c0_14, %c0_15] : memref<4x344x9xbf16, #tpu.memory_space<vmem>>, vector<1x344x9xbf16>
    %15 = vector.shape_cast %14 : vector<1x344x9xbf16> to vector<344x9xbf16>
    %c0_16 = arith.constant 0 : index
    %c0_17 = arith.constant 0 : index
    %16 = vector.load %arg2[%c0_16, %c0_17] : memref<9x32xbf16, #tpu.memory_space<vmem>>, vector<9x32xbf16>
    %cst_18 = arith.constant dense<0.000000e+00> : vector<344x32xf32>
    %17 = tpu.matmul %15, %16, %cst_18 {dimension_numbers = #tpu.dot_dimension_numbers<[1], [0], [0], [1], [0, 0, 1, 1], [], []>} : vector<344x9xbf16>, vector<9x32xbf16>, vector<344x32xf32> -> vector<344x32xf32>
    %18 = arith.maximumf %13, %17 : vector<344x32xf32>
    %c0_19 = arith.constant 0 : index
    %c0_20 = arith.constant 0 : index
    %19 = vector.load %arg3[%c0_19, %c0_20] : memref<1x32xf32, #tpu.memory_space<vmem>>, vector<1x32xf32>
    %20 = vector.broadcast %19 : vector<1x32xf32> to vector<344x32xf32>
    %21 = arith.addf %18, %20 : vector<344x32xf32>
    %cst_21 = arith.constant 0.000000e+00 : f32
    %22 = vector.broadcast %cst_21 : f32 to vector<344x32xf32>
    %23 = arith.maximumf %21, %22 : vector<344x32xf32>
    %24 = arith.truncf %23 : vector<344x32xf32> to vector<344x32xbf16>
    %c0_22 = arith.constant 0 : index
    %c0_23 = arith.constant 0 : index
    %25 = vector.load %arg4[%c0_22, %c0_23] : memref<344x32xbf16, #tpu.memory_space<vmem>>, vector<344x32xbf16>
    tpu.vector_store %arg4[%c0_22, %c0_23], %24 {strides = array<i32>} : memref<344x32xbf16, #tpu.memory_space<vmem>>, vector<344x32xbf16>,
    return
  }
  func.func @transform_0(%arg0: i32) -> (i32, i32, i32) {
    %c0_i32 = arith.constant 0 : i32
    %c0_i32_0 = arith.constant 0 : i32
    %c0_i32_1 = arith.constant 0 : i32
    return %c0_i32, %arg0, %c0_i32_0 : i32, i32, i32
  }
  func.func @transform_1(%arg0: i32) -> (i32, i32) {
    %c0_i32 = arith.constant 0 : i32
    %c0_i32_0 = arith.constant 0 : i32
    %c0_i32_1 = arith.constant 0 : i32
    return %c0_i32, %c0_i32_0 : i32, i32
  }
  func.func @transform_2(%arg0: i32) -> (i32, i32) {
    %c0_i32 = arith.constant 0 : i32
    %c0_i32_0 = arith.constant 0 : i32
    %c0_i32_1 = arith.constant 0 : i32
    return %c0_i32, %c0_i32_0 : i32, i32
  }
  func.func @transform_3(%arg0: i32) -> (i32, i32) {
    %c0_i32 = arith.constant 0 : i32
    %c0_i32_0 = arith.constant 0 : i32
    return %arg0, %c0_i32 : i32, i32
  }
}

module attributes {stable_mosaic.version = 11 : i64} {
  func.func @_conv_pool_fc_kernel(%arg0: i32, %arg1: memref<4x8x576xbf16, #tpu.memory_space<vmem>>, %arg2: memref<576x128xbf16, #tpu.memory_space<vmem>>, %arg3: memref<1x128xf32, #tpu.memory_space<vmem>>, %arg4: memref<128x128xbf16, #tpu.memory_space<vmem>>, %arg5: memref<1x128xf32, #tpu.memory_space<vmem>>, %arg6: memref<8x128xf32, #tpu.memory_space<vmem>>) attributes {dimension_semantics = [#tpu.dimension_semantics<parallel>], iteration_bounds = array<i64: 1>, scalar_prefetch = 0 : i64, scratch_operands = 0 : i64, tpu.core_type = #tpu.core_type<tc>, window_params = [{transform_indices = @transform_0, window_bounds = array<i64: 4, 8, 576>}, {pipeline_mode = #tpu.pipeline_mode<synchronous>, transform_indices = @transform_1, window_bounds = array<i64: 576, 128>}, {pipeline_mode = #tpu.pipeline_mode<synchronous>, transform_indices = @transform_2, window_bounds = array<i64: 1, 128>}, {pipeline_mode = #tpu.pipeline_mode<synchronous>, transform_indices = @transform_3, window_bounds = array<i64: 128, 128>}, {pipeline_mode = #tpu.pipeline_mode<synchronous>, transform_indices = @transform_4, window_bounds = array<i64: 1, 128>}, {transform_indices = @transform_5, window_bounds = array<i64: 8, 128>}]} {
    %c0 = arith.constant 0 : index
    %c0_0 = arith.constant 0 : index
    %c0_1 = arith.constant 0 : index
    %0 = vector.load %arg1[%c0, %c0_0, %c0_1] : memref<4x8x576xbf16, #tpu.memory_space<vmem>>, vector<1x8x576xbf16>
    %1 = vector.shape_cast %0 : vector<1x8x576xbf16> to vector<8x576xbf16>
    %c0_2 = arith.constant 0 : index
    %c0_3 = arith.constant 0 : index
    %2 = vector.load %arg2[%c0_2, %c0_3] : memref<576x128xbf16, #tpu.memory_space<vmem>>, vector<576x128xbf16>
    %cst = arith.constant dense<0.000000e+00> : vector<8x128xf32>
    %3 = tpu.matmul %1, %2, %cst {dimension_numbers = #tpu.dot_dimension_numbers<[1], [0], [0], [1], [0, 0, 1, 1], [], []>} : vector<8x576xbf16>, vector<576x128xbf16>, vector<8x128xf32> -> vector<8x128xf32>
    %c1 = arith.constant 1 : index
    %c0_4 = arith.constant 0 : index
    %c0_5 = arith.constant 0 : index
    %4 = vector.load %arg1[%c1, %c0_4, %c0_5] : memref<4x8x576xbf16, #tpu.memory_space<vmem>>, vector<1x8x576xbf16>
    %5 = vector.shape_cast %4 : vector<1x8x576xbf16> to vector<8x576xbf16>
    %c0_6 = arith.constant 0 : index
    %c0_7 = arith.constant 0 : index
    %6 = vector.load %arg2[%c0_6, %c0_7] : memref<576x128xbf16, #tpu.memory_space<vmem>>, vector<576x128xbf16>
    %cst_8 = arith.constant dense<0.000000e+00> : vector<8x128xf32>
    %7 = tpu.matmul %5, %6, %cst_8 {dimension_numbers = #tpu.dot_dimension_numbers<[1], [0], [0], [1], [0, 0, 1, 1], [], []>} : vector<8x576xbf16>, vector<576x128xbf16>, vector<8x128xf32> -> vector<8x128xf32>
    %8 = arith.maximumf %3, %7 : vector<8x128xf32>
    %c2 = arith.constant 2 : index
    %c0_9 = arith.constant 0 : index
    %c0_10 = arith.constant 0 : index
    %9 = vector.load %arg1[%c2, %c0_9, %c0_10] : memref<4x8x576xbf16, #tpu.memory_space<vmem>>, vector<1x8x576xbf16>
    %10 = vector.shape_cast %9 : vector<1x8x576xbf16> to vector<8x576xbf16>
    %c0_11 = arith.constant 0 : index
    %c0_12 = arith.constant 0 : index
    %11 = vector.load %arg2[%c0_11, %c0_12] : memref<576x128xbf16, #tpu.memory_space<vmem>>, vector<576x128xbf16>
    %cst_13 = arith.constant dense<0.000000e+00> : vector<8x128xf32>
    %12 = tpu.matmul %10, %11, %cst_13 {dimension_numbers = #tpu.dot_dimension_numbers<[1], [0], [0], [1], [0, 0, 1, 1], [], []>} : vector<8x576xbf16>, vector<576x128xbf16>, vector<8x128xf32> -> vector<8x128xf32>
    %13 = arith.maximumf %8, %12 : vector<8x128xf32>
    %c3 = arith.constant 3 : index
    %c0_14 = arith.constant 0 : index
    %c0_15 = arith.constant 0 : index
    %14 = vector.load %arg1[%c3, %c0_14, %c0_15] : memref<4x8x576xbf16, #tpu.memory_space<vmem>>, vector<1x8x576xbf16>
    %15 = vector.shape_cast %14 : vector<1x8x576xbf16> to vector<8x576xbf16>
    %c0_16 = arith.constant 0 : index
    %c0_17 = arith.constant 0 : index
    %16 = vector.load %arg2[%c0_16, %c0_17] : memref<576x128xbf16, #tpu.memory_space<vmem>>, vector<576x128xbf16>
    %cst_18 = arith.constant dense<0.000000e+00> : vector<8x128xf32>
    %17 = tpu.matmul %15, %16, %cst_18 {dimension_numbers = #tpu.dot_dimension_numbers<[1], [0], [0], [1], [0, 0, 1, 1], [], []>} : vector<8x576xbf16>, vector<576x128xbf16>, vector<8x128xf32> -> vector<8x128xf32>
    %18 = arith.maximumf %13, %17 : vector<8x128xf32>
    %c0_19 = arith.constant 0 : index
    %c0_20 = arith.constant 0 : index
    %19 = vector.load %arg3[%c0_19, %c0_20] : memref<1x128xf32, #tpu.memory_space<vmem>>, vector<1x128xf32>
    %20 = vector.broadcast %19 : vector<1x128xf32> to vector<8x128xf32>
    %21 = arith.addf %18, %20 : vector<8x128xf32>
    %cst_21 = arith.constant 0.000000e+00 : f32
    %22 = vector.broadcast %cst_21 : f32 to vector<8x128xf32>
    %23 = arith.maximumf %21, %22 : vector<8x128xf32>
    %24 = arith.truncf %23 : vector<8x128xf32> to vector<8x128xbf16>
    %c0_22 = arith.constant 0 : index
    %c0_23 = arith.constant 0 : index
    %25 = vector.load %arg4[%c0_22, %c0_23] : memref<128x128xbf16, #tpu.memory_space<vmem>>, vector<128x128xbf16>
    %cst_24 = arith.constant dense<0.000000e+00> : vector<8x128xf32>
    %26 = tpu.matmul %24, %25, %cst_24 {dimension_numbers = #tpu.dot_dimension_numbers<[1], [0], [0], [1], [0, 0, 1, 1], [], []>} : vector<8x128xbf16>, vector<128x128xbf16>, vector<8x128xf32> -> vector<8x128xf32>
    %c0_25 = arith.constant 0 : index
    %c0_26 = arith.constant 0 : index
    %27 = vector.load %arg5[%c0_25, %c0_26] : memref<1x128xf32, #tpu.memory_space<vmem>>, vector<1x128xf32>
    %28 = vector.broadcast %27 : vector<1x128xf32> to vector<8x128xf32>
    %29 = arith.addf %26, %28 : vector<8x128xf32>
    %c0_27 = arith.constant 0 : index
    %c0_28 = arith.constant 0 : index
    %30 = vector.load %arg6[%c0_27, %c0_28] : memref<8x128xf32, #tpu.memory_space<vmem>>, vector<8x128xf32>
    tpu.vector_store %arg6[%c0_27, %c0_28], %29 {strides = array<i32>} : memref<8x128xf32, #tpu.memory_space<vmem>>, vector<8x128xf32>,
    return
  }
  func.func @transform_0(%arg0: i32) -> (i32, i32, i32) {
    %c0_i32 = arith.constant 0 : i32
    %c0_i32_0 = arith.constant 0 : i32
    %c0_i32_1 = arith.constant 0 : i32
    return %c0_i32, %arg0, %c0_i32_0 : i32, i32, i32
  }
  func.func @transform_1(%arg0: i32) -> (i32, i32) {
    %c0_i32 = arith.constant 0 : i32
    %c0_i32_0 = arith.constant 0 : i32
    %c0_i32_1 = arith.constant 0 : i32
    return %c0_i32, %c0_i32_0 : i32, i32
  }
  func.func @transform_2(%arg0: i32) -> (i32, i32) {
    %c0_i32 = arith.constant 0 : i32
    %c0_i32_0 = arith.constant 0 : i32
    %c0_i32_1 = arith.constant 0 : i32
    return %c0_i32, %c0_i32_0 : i32, i32
  }
  func.func @transform_3(%arg0: i32) -> (i32, i32) {
    %c0_i32 = arith.constant 0 : i32
    %c0_i32_0 = arith.constant 0 : i32
    %c0_i32_1 = arith.constant 0 : i32
    return %c0_i32, %c0_i32_0 : i32, i32
  }
  func.func @transform_4(%arg0: i32) -> (i32, i32) {
    %c0_i32 = arith.constant 0 : i32
    %c0_i32_0 = arith.constant 0 : i32
    %c0_i32_1 = arith.constant 0 : i32
    return %c0_i32, %c0_i32_0 : i32, i32
  }
  func.func @transform_5(%arg0: i32) -> (i32, i32) {
    %c0_i32 = arith.constant 0 : i32
    %c0_i32_0 = arith.constant 0 : i32
    return %arg0, %c0_i32 : i32, i32
  }
}

module attributes {stable_mosaic.version = 11 : i64} {
  func.func @_conv_pool_kernel(%arg0: i32, %arg1: memref<4x56x288xbf16, #tpu.memory_space<vmem>>, %arg2: memref<288x64xbf16, #tpu.memory_space<vmem>>, %arg3: memref<1x64xf32, #tpu.memory_space<vmem>>, %arg4: memref<56x64xbf16, #tpu.memory_space<vmem>>) attributes {dimension_semantics = [#tpu.dimension_semantics<parallel>], iteration_bounds = array<i64: 1>, scalar_prefetch = 0 : i64, scratch_operands = 0 : i64, tpu.core_type = #tpu.core_type<tc>, window_params = [{transform_indices = @transform_0, window_bounds = array<i64: 4, 56, 288>}, {pipeline_mode = #tpu.pipeline_mode<synchronous>, transform_indices = @transform_1, window_bounds = array<i64: 288, 64>}, {pipeline_mode = #tpu.pipeline_mode<synchronous>, transform_indices = @transform_2, window_bounds = array<i64: 1, 64>}, {transform_indices = @transform_3, window_bounds = array<i64: 56, 64>}]} {
    %c0 = arith.constant 0 : index
    %c0_0 = arith.constant 0 : index
    %c0_1 = arith.constant 0 : index
    %0 = vector.load %arg1[%c0, %c0_0, %c0_1] : memref<4x56x288xbf16, #tpu.memory_space<vmem>>, vector<1x56x288xbf16>
    %1 = vector.shape_cast %0 : vector<1x56x288xbf16> to vector<56x288xbf16>
    %c0_2 = arith.constant 0 : index
    %c0_3 = arith.constant 0 : index
    %2 = vector.load %arg2[%c0_2, %c0_3] : memref<288x64xbf16, #tpu.memory_space<vmem>>, vector<288x64xbf16>
    %cst = arith.constant dense<0.000000e+00> : vector<56x64xf32>
    %3 = tpu.matmul %1, %2, %cst {dimension_numbers = #tpu.dot_dimension_numbers<[1], [0], [0], [1], [0, 0, 1, 1], [], []>} : vector<56x288xbf16>, vector<288x64xbf16>, vector<56x64xf32> -> vector<56x64xf32>
    %c1 = arith.constant 1 : index
    %c0_4 = arith.constant 0 : index
    %c0_5 = arith.constant 0 : index
    %4 = vector.load %arg1[%c1, %c0_4, %c0_5] : memref<4x56x288xbf16, #tpu.memory_space<vmem>>, vector<1x56x288xbf16>
    %5 = vector.shape_cast %4 : vector<1x56x288xbf16> to vector<56x288xbf16>
    %c0_6 = arith.constant 0 : index
    %c0_7 = arith.constant 0 : index
    %6 = vector.load %arg2[%c0_6, %c0_7] : memref<288x64xbf16, #tpu.memory_space<vmem>>, vector<288x64xbf16>
    %cst_8 = arith.constant dense<0.000000e+00> : vector<56x64xf32>
    %7 = tpu.matmul %5, %6, %cst_8 {dimension_numbers = #tpu.dot_dimension_numbers<[1], [0], [0], [1], [0, 0, 1, 1], [], []>} : vector<56x288xbf16>, vector<288x64xbf16>, vector<56x64xf32> -> vector<56x64xf32>
    %8 = arith.maximumf %3, %7 : vector<56x64xf32>
    %c2 = arith.constant 2 : index
    %c0_9 = arith.constant 0 : index
    %c0_10 = arith.constant 0 : index
    %9 = vector.load %arg1[%c2, %c0_9, %c0_10] : memref<4x56x288xbf16, #tpu.memory_space<vmem>>, vector<1x56x288xbf16>
    %10 = vector.shape_cast %9 : vector<1x56x288xbf16> to vector<56x288xbf16>
    %c0_11 = arith.constant 0 : index
    %c0_12 = arith.constant 0 : index
    %11 = vector.load %arg2[%c0_11, %c0_12] : memref<288x64xbf16, #tpu.memory_space<vmem>>, vector<288x64xbf16>
    %cst_13 = arith.constant dense<0.000000e+00> : vector<56x64xf32>
    %12 = tpu.matmul %10, %11, %cst_13 {dimension_numbers = #tpu.dot_dimension_numbers<[1], [0], [0], [1], [0, 0, 1, 1], [], []>} : vector<56x288xbf16>, vector<288x64xbf16>, vector<56x64xf32> -> vector<56x64xf32>
    %13 = arith.maximumf %8, %12 : vector<56x64xf32>
    %c3 = arith.constant 3 : index
    %c0_14 = arith.constant 0 : index
    %c0_15 = arith.constant 0 : index
    %14 = vector.load %arg1[%c3, %c0_14, %c0_15] : memref<4x56x288xbf16, #tpu.memory_space<vmem>>, vector<1x56x288xbf16>
    %15 = vector.shape_cast %14 : vector<1x56x288xbf16> to vector<56x288xbf16>
    %c0_16 = arith.constant 0 : index
    %c0_17 = arith.constant 0 : index
    %16 = vector.load %arg2[%c0_16, %c0_17] : memref<288x64xbf16, #tpu.memory_space<vmem>>, vector<288x64xbf16>
    %cst_18 = arith.constant dense<0.000000e+00> : vector<56x64xf32>
    %17 = tpu.matmul %15, %16, %cst_18 {dimension_numbers = #tpu.dot_dimension_numbers<[1], [0], [0], [1], [0, 0, 1, 1], [], []>} : vector<56x288xbf16>, vector<288x64xbf16>, vector<56x64xf32> -> vector<56x64xf32>
    %18 = arith.maximumf %13, %17 : vector<56x64xf32>
    %c0_19 = arith.constant 0 : index
    %c0_20 = arith.constant 0 : index
    %19 = vector.load %arg3[%c0_19, %c0_20] : memref<1x64xf32, #tpu.memory_space<vmem>>, vector<1x64xf32>
    %20 = vector.broadcast %19 : vector<1x64xf32> to vector<56x64xf32>
    %21 = arith.addf %18, %20 : vector<56x64xf32>
    %cst_21 = arith.constant 0.000000e+00 : f32
    %22 = vector.broadcast %cst_21 : f32 to vector<56x64xf32>
    %23 = arith.maximumf %21, %22 : vector<56x64xf32>
    %24 = arith.truncf %23 : vector<56x64xf32> to vector<56x64xbf16>
    %c0_22 = arith.constant 0 : index
    %c0_23 = arith.constant 0 : index
    %25 = vector.load %arg4[%c0_22, %c0_23] : memref<56x64xbf16, #tpu.memory_space<vmem>>, vector<56x64xbf16>
    tpu.vector_store %arg4[%c0_22, %c0_23], %24 {strides = array<i32>} : memref<56x64xbf16, #tpu.memory_space<vmem>>, vector<56x64xbf16>,
    return
  }
  func.func @transform_0(%arg0: i32) -> (i32, i32, i32) {
    %c0_i32 = arith.constant 0 : i32
    %c0_i32_0 = arith.constant 0 : i32
    %c0_i32_1 = arith.constant 0 : i32
    return %c0_i32, %arg0, %c0_i32_0 : i32, i32, i32
  }
  func.func @transform_1(%arg0: i32) -> (i32, i32) {
    %c0_i32 = arith.constant 0 : i32
    %c0_i32_0 = arith.constant 0 : i32
    %c0_i32_1 = arith.constant 0 : i32
    return %c0_i32, %c0_i32_0 : i32, i32
  }
  func.func @transform_2(%arg0: i32) -> (i32, i32) {
    %c0_i32 = arith.constant 0 : i32
    %c0_i32_0 = arith.constant 0 : i32
    %c0_i32_1 = arith.constant 0 : i32
    return %c0_i32, %c0_i32_0 : i32, i32
  }
  func.func @transform_3(%arg0: i32) -> (i32, i32) {
    %c0_i32 = arith.constant 0 : i32
    %c0_i32_0 = arith.constant 0 : i32
    return %arg0, %c0_i32 : i32, i32
  }
}

</mosaic_0001>

<llo_original>
// kernel: forward.5
$region0: #{forward.5}
  #allocation0 [shape = 'u32[]', space=smem, size = 0x4, offset = 0x4, fixed_abs, tag = 'smem constant byte address 0x4 - core index']
  #allocation1 [shape = 'u32[144,128]{1,0:T(1,128)}', space=vmem, size = 0x12000, scoped, tag = 'internal scratch']
  %s0 = inlined_call_operand.vmem [shape: bf16[4,8,576], index: 0, kind: input, shape index: {}]
  %s1 = inlined_call_operand.vmem [shape: bf16[576,128], index: 1, kind: input, shape index: {}]
  %s2 = inlined_call_operand.vmem [shape: f32[1,128], index: 2, kind: input, shape index: {}]
  %s3 = inlined_call_operand.vmem [shape: bf16[128,128], index: 3, kind: input, shape index: {}]
  %s4 = inlined_call_operand.vmem [shape: f32[1,128], index: 4, kind: input, shape index: {}]
  %s5 = inlined_call_operand.vmem [shape: f32[8,128], index: 5, kind: output, shape index: {}]
  %s6 = sld [smem:[#allocation0]]
  $region30: #{forward.5} parent=0
    _
  %s8 = ssub.s32 1, %s6
  %s9 = scalar_select 0, %s8, %s6
  // Predicated region
  $region2: #{forward.5} parent=0 // pred_check
    _
  $region3: #{forward.5} parent=0 // pred_check_branch
    %11 = sbr.rel (0) target = $region5
  $region4: #{forward.5} parent=0 // pred_region
    _
  $region5: #{forward.5} parent=0 // pred_fallthru
    _
  // Predicated region
  $region6: #{forward.5} parent=0 // pred_check
    _
  $region7: #{forward.5} parent=0 // pred_check_branch
    %13 = sbr.rel (0) target = $region9
  $region8: #{forward.5} parent=0 // pred_region
    _
  $region9: #{forward.5} parent=0 // pred_fallthru
    _
  // Predicated region
  $region10: #{forward.5} parent=0 // pred_check
    _
  $region11: #{forward.5} parent=0 // pred_check_branch
    %15 = sbr.rel (0) target = $region13
  $region12: #{forward.5} parent=0 // pred_region
    _
  $region13: #{forward.5} parent=0 // pred_fallthru
    _
  // Predicated region
  $region14: #{forward.5} parent=0 // pred_check
    _
  $region15: #{forward.5} parent=0 // pred_check_branch
    %17 = sbr.rel (0) target = $region17
  $region16: #{forward.5} parent=0 // pred_region
    _
  $region17: #{forward.5} parent=0 // pred_fallthru
    _
  // Predicated region
  $region18: #{forward.5} parent=0 // pred_check
    _
  $region19: #{forward.5} parent=0 // pred_check_branch
    %19 = sbr.rel (0) target = $region21
  $region20: #{forward.5} parent=0 // pred_region
    _
  $region21: #{forward.5} parent=0 // pred_fallthru
    _
  %v21 = vld [vmem:[%s0] sm:$0xff]
  %v22 = vld [vmem:[%s0 + $0x8] sm:$0xff]
  %v23 = vld [vmem:[%s0 + $0x10] sm:$0xf]
  %v24 = vld [vmem:[%s1] sm:$0xf]
  %v25 = vld [vmem:[%s1 + $0x4] sm:$0xf]
  %v26 = vld [vmem:[%s1 + $0x8] sm:$0xf]
  %v27 = vld [vmem:[%s1 + $0xc] sm:$0xf]
  %v28 = vld [vmem:[%s1 + $0x10] sm:$0xf]
  %v29 = vld [vmem:[%s1 + $0x14] sm:$0xf]
  %v30 = vld [vmem:[%s1 + $0x18] sm:$0xf]
  %v31 = vld [vmem:[%s1 + $0x1c] sm:$0xf]
  %v32 = vld [vmem:[%s1 + $0x20] sm:$0xf]
  %v33 = vld [vmem:[%s1 + $0x24] sm:$0xf]
  %v34 = vld [vmem:[%s1 + $0x28] sm:$0xf]
  %v35 = vld [vmem:[%s1 + $0x2c] sm:$0xf]
  %v36 = vld [vmem:[%s1 + $0x30] sm:$0xf]
  %v37 = vld [vmem:[%s1 + $0x34] sm:$0xf]
  %v38 = vld [vmem:[%s1 + $0x38] sm:$0xf]
  %v39 = vld [vmem:[%s1 + $0x3c] sm:$0xf]
  %v40 = vld [vmem:[%s1 + $0x40] sm:$0xf]
  %v41 = vld [vmem:[%s1 + $0x44] sm:$0xf]
  %v42 = vld [vmem:[%s1 + $0x48] sm:$0xf]
  %v43 = vld [vmem:[%s1 + $0x4c] sm:$0xf]
  %v44 = vld [vmem:[%s1 + $0x50] sm:$0xf]
  %v45 = vld [vmem:[%s1 + $0x54] sm:$0xf]
  %v46 = vld [vmem:[%s1 + $0x58] sm:$0xf]
  %v47 = vld [vmem:[%s1 + $0x5c] sm:$0xf]
  %v48 = vld [vmem:[%s1 + $0x60] sm:$0xf]
  %v49 = vld [vmem:[%s1 + $0x64] sm:$0xf]
  %v50 = vld [vmem:[%s1 + $0x68] sm:$0xf]
  %v51 = vld [vmem:[%s1 + $0x6c] sm:$0xf]
  %v52 = vld [vmem:[%s1 + $0x70] sm:$0xf]
  %v53 = vld [vmem:[%s1 + $0x74] sm:$0xf]
  %v54 = vld [vmem:[%s1 + $0x78] sm:$0xf]
  %v55 = vld [vmem:[%s1 + $0x7c] sm:$0xf]
  %v56 = vld [vmem:[%s1 + $0x80] sm:$0xf]
  %v57 = vld [vmem:[%s1 + $0x84] sm:$0xf]
  %v58 = vld [vmem:[%s1 + $0x88] sm:$0xf]
  %v59 = vld [vmem:[%s1 + $0x8c] sm:$0xf]
  %v60 = vld [vmem:[%s1 + $0x90] sm:$0xf]
  %v61 = vld [vmem:[%s1 + $0x94] sm:$0xf]
  %v62 = vld [vmem:[%s1 + $0x98] sm:$0xf]
  %v63 = vld [vmem:[%s1 + $0x9c] sm:$0xf]
  %v64 = vld [vmem:[%s1 + $0xa0] sm:$0xf]
  %v65 = vld [vmem:[%s1 + $0xa4] sm:$0xf]
  %v66 = vld [vmem:[%s1 + $0xa8] sm:$0xf]
  %v67 = vld [vmem:[%s1 + $0xac] sm:$0xf]
  %v68 = vld [vmem:[%s1 + $0xb0] sm:$0xf]
  %v69 = vld [vmem:[%s1 + $0xb4] sm:$0xf]
  %v70 = vld [vmem:[%s1 + $0xb8] sm:$0xf]
  %v71 = vld [vmem:[%s1 + $0xbc] sm:$0xf]
  %v72 = vld [vmem:[%s1 + $0xc0] sm:$0xf]
  %v73 = vld [vmem:[%s1 + $0xc4] sm:$0xf]
  %v74 = vld [vmem:[%s1 + $0xc8] sm:$0xf]
  %v75 = vld [vmem:[%s1 + $0xcc] sm:$0xf]
  %v76 = vld [vmem:[%s1 + $0xd0] sm:$0xf]
  %v77 = vld [vmem:[%s1 + $0xd4] sm:$0xf]
  %v78 = vld [vmem:[%s1 + $0xd8] sm:$0xf]
  %v79 = vld [vmem:[%s1 + $0xdc] sm:$0xf]
  %v80 = vld [vmem:[%s1 + $0xe0] sm:$0xf]
  %v81 = vld [vmem:[%s1 + $0xe4] sm:$0xf]
  %v82 = vld [vmem:[%s1 + $0xe8] sm:$0xf]
  %v83 = vld [vmem:[%s1 + $0xec] sm:$0xf]
  %v84 = vld [vmem:[%s1 + $0xf0] sm:$0xf]
  %v85 = vld [vmem:[%s1 + $0xf4] sm:$0xf]
  %v86 = vld [vmem:[%s1 + $0xf8] sm:$0xf]
  %v87 = vld [vmem:[%s1 + $0xfc] sm:$0xf]
  %v88 = vld [vmem:[%s1 + $0x100] sm:$0xf]
  %v89 = vld [vmem:[%s1 + $0x104] sm:$0xf]
  %v90 = vld [vmem:[%s1 + $0x108] sm:$0xf]
  %v91 = vld [vmem:[%s1 + $0x10c] sm:$0xf]
  %v92 = vld [vmem:[%s1 + $0x110] sm:$0xf]
  %v93 = vld [vmem:[%s1 + $0x114] sm:$0xf]
  %v94 = vld [vmem:[%s1 + $0x118] sm:$0xf]
  %v95 = vld [vmem:[%s1 + $0x11c] sm:$0xf]
  %v99 = vunpack.c.l.b16 %v21
  %v100 = vunpack.c.h.b16 %v21
  %v101 = vunpack.c.l.b16 %v22
  %v102 = vunpack.c.h.b16 %v22
  %v103 = vunpack.c.l.b16 %v23
  %v104 = vpack.c.b16 %v99, %v99
  %v105 = vpack.c.b16 %v100, %v100
  %v106 = vpack.c.b16 %v101, %v101
  %v107 = vpack.c.b16 %v102, %v102
  %v108 = vpack.c.b16 %v103, %v103
  %v185 = vunpack.c.l.b16 %v24
  %v186 = vunpack.c.l.b16 %v25
  %v187 = vunpack.c.l.b16 %v26
  %v188 = vunpack.c.l.b16 %v27
  %v189 = vunpack.c.l.b16 %v28
  %v190 = vunpack.c.l.b16 %v29
  %v191 = vunpack.c.l.b16 %v30
  %v192 = vunpack.c.l.b16 %v31
  %v193 = vunpack.c.l.b16 %v32
  %v194 = vunpack.c.l.b16 %v33
  %v195 = vunpack.c.l.b16 %v34
  %v196 = vunpack.c.l.b16 %v35
  %v197 = vunpack.c.l.b16 %v36
  %v198 = vunpack.c.l.b16 %v37
  %v199 = vunpack.c.l.b16 %v38
  %v200 = vunpack.c.l.b16 %v39
  %v201 = vunpack.c.l.b16 %v40
  %v202 = vunpack.c.l.b16 %v41
  %v203 = vunpack.c.l.b16 %v42
  %v204 = vunpack.c.l.b16 %v43
  %v205 = vunpack.c.l.b16 %v44
  %v206 = vunpack.c.l.b16 %v45
  %v207 = vunpack.c.l.b16 %v46
  %v208 = vunpack.c.l.b16 %v47
  %v209 = vunpack.c.l.b16 %v48
  %v210 = vunpack.c.l.b16 %v49
  %v211 = vunpack.c.l.b16 %v50
  %v212 = vunpack.c.l.b16 %v51
  %v213 = vunpack.c.l.b16 %v52
  %v214 = vunpack.c.l.b16 %v53
  %v215 = vunpack.c.l.b16 %v54
  %v216 = vunpack.c.l.b16 %v55
  %v217 = vunpack.c.l.b16 %v56
  %v218 = vunpack.c.l.b16 %v57
  %v219 = vunpack.c.l.b16 %v58
  %v220 = vunpack.c.l.b16 %v59
  %v221 = vunpack.c.l.b16 %v60
  %v222 = vunpack.c.l.b16 %v61
  %v223 = vunpack.c.l.b16 %v62
  %v224 = vunpack.c.l.b16 %v63
  %v225 = vunpack.c.l.b16 %v64
  %v226 = vunpack.c.l.b16 %v65
  %v227 = vunpack.c.l.b16 %v66
  %v228 = vunpack.c.l.b16 %v67
  %v229 = vunpack.c.l.b16 %v68
  %v230 = vunpack.c.l.b16 %v69
  %v231 = vunpack.c.l.b16 %v70
  %v232 = vunpack.c.l.b16 %v71
  %v233 = vunpack.c.l.b16 %v72
  %v234 = vunpack.c.l.b16 %v73
  %v235 = vunpack.c.l.b16 %v74
  %v236 = vunpack.c.l.b16 %v75
  %v237 = vunpack.c.l.b16 %v76
  %v238 = vunpack.c.l.b16 %v77
  %v239 = vunpack.c.l.b16 %v78
  %v240 = vunpack.c.l.b16 %v79
  %v241 = vunpack.c.l.b16 %v80
  %v242 = vunpack.c.l.b16 %v81
  %v243 = vunpack.c.l.b16 %v82
  %v244 = vunpack.c.l.b16 %v83
  %v245 = vunpack.c.l.b16 %v84
  %v246 = vunpack.c.l.b16 %v85
  %v247 = vunpack.c.l.b16 %v86
  %v248 = vunpack.c.l.b16 %v87
  %v249 = vunpack.c.l.b16 %v88
  %v250 = vunpack.c.l.b16 %v89
  %v251 = vunpack.c.l.b16 %v90
  %v252 = vunpack.c.l.b16 %v91
  %v253 = vunpack.c.l.b16 %v92
  %v254 = vunpack.c.l.b16 %v93
  %v255 = vunpack.c.l.b16 %v94
  %v256 = vunpack.c.l.b16 %v95
  %v257 = vpack.c.b16 %v186, %v185
  %v258 = vpack.c.b16 %v188, %v187
  %v259 = vpack.c.b16 %v190, %v189
  %v260 = vpack.c.b16 %v192, %v191
  %v261 = vpack.c.b16 %v194, %v193
  %v262 = vpack.c.b16 %v196, %v195
  %v263 = vpack.c.b16 %v198, %v197
  %v264 = vpack.c.b16 %v200, %v199
  %v265 = vpack.c.b16 %v202, %v201
  %v266 = vpack.c.b16 %v204, %v203
  %v267 = vpack.c.b16 %v206, %v205
  %v268 = vpack.c.b16 %v208, %v207
  %v269 = vpack.c.b16 %v210, %v209
  %v270 = vpack.c.b16 %v212, %v211
  %v271 = vpack.c.b16 %v214, %v213
  %v272 = vpack.c.b16 %v216, %v215
  %v273 = vpack.c.b16 %v218, %v217
  %v274 = vpack.c.b16 %v220, %v219
  %v275 = vpack.c.b16 %v222, %v221
  %v276 = vpack.c.b16 %v224, %v223
  %v277 = vpack.c.b16 %v226, %v225
  %v278 = vpack.c.b16 %v228, %v227
  %v279 = vpack.c.b16 %v230, %v229
  %v280 = vpack.c.b16 %v232, %v231
  %v281 = vpack.c.b16 %v234, %v233
  %v282 = vpack.c.b16 %v236, %v235
  %v283 = vpack.c.b16 %v238, %v237
  %v284 = vpack.c.b16 %v240, %v239
  %v285 = vpack.c.b16 %v242, %v241
  %v286 = vpack.c.b16 %v244, %v243
  %v287 = vpack.c.b16 %v246, %v245
  %v288 = vpack.c.b16 %v248, %v247
  %v289 = vpack.c.b16 %v250, %v249
  %v290 = vpack.c.b16 %v252, %v251
  %v291 = vpack.c.b16 %v254, %v253
  %v292 = vpack.c.b16 %v256, %v255
  %vm329 = vcmask 523264
  %v331 = vsel %vm329, %v108, 0
  %333 = vmatprep.subr.bf16.mxu0 0
  %334 = vmatpush1.bf16.msra.mxu0 %v257
  %335 = vmatprep.subr.bf16.mxu0 0
  %336 = vmatpush1.bf16.msra.mxu0 %v258
  %337 = vmatprep.subr.bf16.mxu0 0
  %338 = vmatpush1.bf16.msra.mxu0 %v259
  %339 = vmatprep.subr.bf16.mxu0 0
  %340 = vmatpush1.bf16.msra.mxu0 %v260
  %341 = vmatprep.subr.bf16.mxu0 0
  %342 = vmatpush1.bf16.msra.mxu0 %v261
  %343 = vmatprep.subr.bf16.mxu0 0
  %344 = vmatpush1.bf16.msra.mxu0 %v262
  %345 = vmatprep.subr.bf16.mxu0 0
  %346 = vmatpush1.bf16.msra.mxu0 %v263
  %347 = vmatprep.subr.bf16.mxu0 0
  %348 = vmatpush1.bf16.msra.mxu0 %v264
  %349 = vmatprep.subr.bf16.mxu0 0
  %350 = vmatpush1.bf16.msra.mxu0 %v265
  %351 = vmatprep.subr.bf16.mxu0 0
  %352 = vmatpush1.bf16.msra.mxu0 %v266
  %353 = vmatprep.subr.bf16.mxu0 0
  %354 = vmatpush1.bf16.msra.mxu0 %v267
  %355 = vmatprep.subr.bf16.mxu0 0
  %356 = vmatpush1.bf16.msra.mxu0 %v268
  %357 = vmatprep.subr.bf16.mxu0 0
  %358 = vmatpush1.bf16.msra.mxu0 %v269
  %359 = vmatprep.subr.bf16.mxu0 0
  %360 = vmatpush1.bf16.msra.mxu0 %v270
  %361 = vmatprep.subr.bf16.mxu0 0
  %362 = vmatpush1.bf16.msra.mxu0 %v271
  %363 = vmatprep.subr.bf16.mxu0 0
  %364 = vmatpush1.bf16.msra.mxu0 %v272
  %365 = vmatprep.mubr.bf16.mxu0 %v105
  %366 = vmatmul.mubr.bf16.gmra.mrb[0].mxu0 %v104
  %v367 = vpop.f32.mrb[0].mxu0
  %v368 = vadd.f32 0.0, %v367
  %v369 = vpop.f32.mrb[0].mxu0
  %v370 = vpop.f32.mrb[0].mxu0
  %v371 = vpop.f32.mrb[0].mxu0
  %372 = vdwg.mxu0
  %373 = vmatprep.subr.bf16.mxu0 0
  %374 = vmatpush1.bf16.msra.mxu0 %v273
  %375 = vmatprep.subr.bf16.mxu0 0
  %376 = vmatpush1.bf16.msra.mxu0 %v274
  %377 = vmatprep.subr.bf16.mxu0 0
  %378 = vmatpush1.bf16.msra.mxu0 %v275
  %379 = vmatprep.subr.bf16.mxu0 0
  %380 = vmatpush1.bf16.msra.mxu0 %v276
  %381 = vmatprep.subr.bf16.mxu0 0
  %382 = vmatpush1.bf16.msra.mxu0 %v277
  %383 = vmatprep.subr.bf16.mxu0 0
  %384 = vmatpush1.bf16.msra.mxu0 %v278
  %385 = vmatprep.subr.bf16.mxu0 0
  %386 = vmatpush1.bf16.msra.mxu0 %v279
  %387 = vmatprep.subr.bf16.mxu0 0
  %388 = vmatpush1.bf16.msra.mxu0 %v280
  %389 = vmatprep.subr.bf16.mxu0 0
  %390 = vmatpush1.bf16.msra.mxu0 %v281
  %391 = vmatprep.subr.bf16.mxu0 0
  %392 = vmatpush1.bf16.msra.mxu0 %v282
  %393 = vmatprep.subr.bf16.mxu0 0
  %394 = vmatpush1.bf16.msra.mxu0 %v283
  %395 = vmatprep.subr.bf16.mxu0 0
  %396 = vmatpush1.bf16.msra.mxu0 %v284
  %397 = vmatprep.subr.bf16.mxu0 0
  %398 = vmatpush1.bf16.msra.mxu0 %v285
  %399 = vmatprep.subr.bf16.mxu0 0
  %400 = vmatpush1.bf16.msra.mxu0 %v286
  %401 = vmatprep.subr.bf16.mxu0 0
  %402 = vmatpush1.bf16.msra.mxu0 %v287
  %403 = vmatprep.subr.bf16.mxu0 0
  %404 = vmatpush1.bf16.msra.mxu0 %v288
  %405 = vmatprep.mubr.bf16.mxu0 %v107
  %406 = vmatmul.mubr.bf16.gmra.mrb[0].mxu0 %v106
  %v407 = vpop.f32.mrb[0].mxu0
  %v408 = vadd.f32 %v368, %v407
  %v409 = vpop.f32.mrb[0].mxu0
  %v410 = vpop.f32.mrb[0].mxu0
  %v411 = vpop.f32.mrb[0].mxu0
  %412 = vdwg.mxu0
  %413 = vmatprep.subr.bf16.mxu0 0
  %414 = vmatpush1.bf16.msra.mxu0 %v289
  %415 = vmatprep.subr.bf16.mxu0 0
  %416 = vmatpush1.bf16.msra.mxu0 %v290
  %417 = vmatprep.subr.bf16.mxu0 0
  %418 = vmatpush1.bf16.msra.mxu0 %v291
  %419 = vmatprep.subr.bf16.mxu0 0
  %420 = vmatpush1.bf16.msra.mxu0 %v292
  %421 = vmatprep.subr.bf16.mxu0 0
  %422 = vmatpush1.bf16.msra.mxu0 0
  %423 = vmatprep.subr.bf16.mxu0 0
  %424 = vmatpush1.bf16.msra.mxu0 0
  %425 = vmatprep.subr.bf16.mxu0 0
  %426 = vmatpush1.bf16.msra.mxu0 0
  %427 = vmatprep.subr.bf16.mxu0 0
  %428 = vmatpush1.bf16.msra.mxu0 0
  %429 = vmatprep.subr.bf16.mxu0 0
  %430 = vmatpush1.bf16.msra.mxu0 0
  %431 = vmatprep.subr.bf16.mxu0 0
  %432 = vmatpush1.bf16.msra.mxu0 0
  %433 = vmatprep.subr.bf16.mxu0 0
  %434 = vmatpush1.bf16.msra.mxu0 0
  %435 = vmatprep.subr.bf16.mxu0 0
  %436 = vmatpush1.bf16.msra.mxu0 0
  %437 = vmatprep.subr.bf16.mxu0 0
  %438 = vmatpush1.bf16.msra.mxu0 0
  %439 = vmatprep.subr.bf16.mxu0 0
  %440 = vmatpush1.bf16.msra.mxu0 0
  %441 = vmatprep.subr.bf16.mxu0 0
  %442 = vmatpush1.bf16.msra.mxu0 0
  %443 = vmatprep.subr.bf16.mxu0 0
  %444 = vmatpush1.bf16.msra.mxu0 0
  %445 = vmatprep.mubr.bf16.mxu0 0
  %446 = vmatmul.mubr.bf16.gmra.mrb[0].mxu0 %v331
  %v447 = vpop.f32.mrb[0].mxu0
  %v448 = vadd.f32 %v408, %v447
  %v449 = vpop.f32.mrb[0].mxu0
  %v450 = vpop.f32.mrb[0].mxu0
  %v451 = vpop.f32.mrb[0].mxu0
  %452 = vdwg.mxu0
  %s453 = scalar_lea.vmem %s0, 20
  %v454 = vld [vmem:[%s453] sm:$0xff]
  %v455 = vld [vmem:[%s453 + $0x8] sm:$0xff]
  %v456 = vld [vmem:[%s453 + $0x10] sm:$0xf]
  %v460 = vunpack.c.l.b16 %v454
  %v461 = vunpack.c.h.b16 %v454
  %v462 = vunpack.c.l.b16 %v455
  %v463 = vunpack.c.h.b16 %v455
  %v464 = vunpack.c.l.b16 %v456
  %v465 = vpack.c.b16 %v460, %v460
  %v466 = vpack.c.b16 %v461, %v461
  %v467 = vpack.c.b16 %v462, %v462
  %v468 = vpack.c.b16 %v463, %v463
  %v469 = vpack.c.b16 %v464, %v464
  %v475 = vsel %vm329, %v469, 0
  %477 = vmatprep.subr.bf16.mxu0 0
  %478 = vmatpush1.bf16.msra.mxu0 %v257
  %479 = vmatprep.subr.bf16.mxu0 0
  %480 = vmatpush1.bf16.msra.mxu0 %v258
  %481 = vmatprep.subr.bf16.mxu0 0
  %482 = vmatpush1.bf16.msra.mxu0 %v259
  %483 = vmatprep.subr.bf16.mxu0 0
  %484 = vmatpush1.bf16.msra.mxu0 %v260
  %485 = vmatprep.subr.bf16.mxu0 0
  %486 = vmatpush1.bf16.msra.mxu0 %v261
  %487 = vmatprep.subr.bf16.mxu0 0
  %488 = vmatpush1.bf16.msra.mxu0 %v262
  %489 = vmatprep.subr.bf16.mxu0 0
  %490 = vmatpush1.bf16.msra.mxu0 %v263
  %491 = vmatprep.subr.bf16.mxu0 0
  %492 = vmatpush1.bf16.msra.mxu0 %v264
  %493 = vmatprep.subr.bf16.mxu0 0
  %494 = vmatpush1.bf16.msra.mxu0 %v265
  %495 = vmatprep.subr.bf16.mxu0 0
  %496 = vmatpush1.bf16.msra.mxu0 %v266
  %497 = vmatprep.subr.bf16.mxu0 0
  %498 = vmatpush1.bf16.msra.mxu0 %v267
  %499 = vmatprep.subr.bf16.mxu0 0
  %500 = vmatpush1.bf16.msra.mxu0 %v268
  %501 = vmatprep.subr.bf16.mxu0 0
  %502 = vmatpush1.bf16.msra.mxu0 %v269
  %503 = vmatprep.subr.bf16.mxu0 0
  %504 = vmatpush1.bf16.msra.mxu0 %v270
  %505 = vmatprep.subr.bf16.mxu0 0
  %506 = vmatpush1.bf16.msra.mxu0 %v271
  %507 = vmatprep.subr.bf16.mxu0 0
  %508 = vmatpush1.bf16.msra.mxu0 %v272
  %509 = vmatprep.mubr.bf16.mxu0 %v466
  %510 = vmatmul.mubr.bf16.gmra.mrb[0].mxu0 %v465
  %v511 = vpop.f32.mrb[0].mxu0
  %v512 = vadd.f32 0.0, %v511
  %v513 = vpop.f32.mrb[0].mxu0
  %v514 = vpop.f32.mrb[0].mxu0
  %v515 = vpop.f32.mrb[0].mxu0
  %516 = vdwg.mxu0
  %517 = vmatprep.subr.bf16.mxu0 0
  %518 = vmatpush1.bf16.msra.mxu0 %v273
  %519 = vmatprep.subr.bf16.mxu0 0
  %520 = vmatpush1.bf16.msra.mxu0 %v274
  %521 = vmatprep.subr.bf16.mxu0 0
  %522 = vmatpush1.bf16.msra.mxu0 %v275
  %523 = vmatprep.subr.bf16.mxu0 0
  %524 = vmatpush1.bf16.msra.mxu0 %v276
  %525 = vmatprep.subr.bf16.mxu0 0
  %526 = vmatpush1.bf16.msra.mxu0 %v277
  %527 = vmatprep.subr.bf16.mxu0 0
  %528 = vmatpush1.bf16.msra.mxu0 %v278
  %529 = vmatprep.subr.bf16.mxu0 0
  %530 = vmatpush1.bf16.msra.mxu0 %v279
  %531 = vmatprep.subr.bf16.mxu0 0
  %532 = vmatpush1.bf16.msra.mxu0 %v280
  %533 = vmatprep.subr.bf16.mxu0 0
  %534 = vmatpush1.bf16.msra.mxu0 %v281
  %535 = vmatprep.subr.bf16.mxu0 0
  %536 = vmatpush1.bf16.msra.mxu0 %v282
  %537 = vmatprep.subr.bf16.mxu0 0
  %538 = vmatpush1.bf16.msra.mxu0 %v283
  %539 = vmatprep.subr.bf16.mxu0 0
  %540 = vmatpush1.bf16.msra.mxu0 %v284
  %541 = vmatprep.subr.bf16.mxu0 0
  %542 = vmatpush1.bf16.msra.mxu0 %v285
  %543 = vmatprep.subr.bf16.mxu0 0
  %544 = vmatpush1.bf16.msra.mxu0 %v286
  %545 = vmatprep.subr.bf16.mxu0 0
  %546 = vmatpush1.bf16.msra.mxu0 %v287
  %547 = vmatprep.subr.bf16.mxu0 0
  %548 = vmatpush1.bf16.msra.mxu0 %v288
  %549 = vmatprep.mubr.bf16.mxu0 %v468
  %550 = vmatmul.mubr.bf16.gmra.mrb[0].mxu0 %v467
  %v551 = vpop.f32.mrb[0].mxu0
  %v552 = vadd.f32 %v512, %v551
  %v553 = vpop.f32.mrb[0].mxu0
  %v554 = vpop.f32.mrb[0].mxu0
  %v555 = vpop.f32.mrb[0].mxu0
  %556 = vdwg.mxu0
  %557 = vmatprep.subr.bf16.mxu0 0
  %558 = vmatpush1.bf16.msra.mxu0 %v289
  %559 = vmatprep.subr.bf16.mxu0 0
  %560 = vmatpush1.bf16.msra.mxu0 %v290
  %561 = vmatprep.subr.bf16.mxu0 0
  %562 = vmatpush1.bf16.msra.mxu0 %v291
  %563 = vmatprep.subr.bf16.mxu0 0
  %564 = vmatpush1.bf16.msra.mxu0 %v292
  %565 = vmatprep.subr.bf16.mxu0 0
  %566 = vmatpush1.bf16.msra.mxu0 0
  %567 = vmatprep.subr.bf16.mxu0 0
  %568 = vmatpush1.bf16.msra.mxu0 0
  %569 = vmatprep.subr.bf16.mxu0 0
  %570 = vmatpush1.bf16.msra.mxu0 0
  %571 = vmatprep.subr.bf16.mxu0 0
  %572 = vmatpush1.bf16.msra.mxu0 0
  %573 = vmatprep.subr.bf16.mxu0 0
  %574 = vmatpush1.bf16.msra.mxu0 0
  %575 = vmatprep.subr.bf16.mxu0 0
  %576 = vmatpush1.bf16.msra.mxu0 0
  %577 = vmatprep.subr.bf16.mxu0 0
  %578 = vmatpush1.bf16.msra.mxu0 0
  %579 = vmatprep.subr.bf16.mxu0 0
  %580 = vmatpush1.bf16.msra.mxu0 0
  %581 = vmatprep.subr.bf16.mxu0 0
  %582 = vmatpush1.bf16.msra.mxu0 0
  %583 = vmatprep.subr.bf16.mxu0 0
  %584 = vmatpush1.bf16.msra.mxu0 0
  %585 = vmatprep.subr.bf16.mxu0 0
  %586 = vmatpush1.bf16.msra.mxu0 0
  %587 = vmatprep.subr.bf16.mxu0 0
  %588 = vmatpush1.bf16.msra.mxu0 0
  %589 = vmatprep.mubr.bf16.mxu0 0
  %590 = vmatmul.mubr.bf16.gmra.mrb[0].mxu0 %v475
  %v591 = vpop.f32.mrb[0].mxu0
  %v592 = vadd.f32 %v552, %v591
  %v593 = vpop.f32.mrb[0].mxu0
  %v594 = vpop.f32.mrb[0].mxu0
  %v595 = vpop.f32.mrb[0].mxu0
  %596 = vdwg.mxu0
  %v597 = vmax.f32 %v448, %v592
  %s598 = scalar_lea.vmem %s0, 40
  %v599 = vld [vmem:[%s598] sm:$0xff]
  %v600 = vld [vmem:[%s598 + $0x8] sm:$0xff]
  %v601 = vld [vmem:[%s598 + $0x10] sm:$0xf]
  %v605 = vunpack.c.l.b16 %v599
  %v606 = vunpack.c.h.b16 %v599
  %v607 = vunpack.c.l.b16 %v600
  %v608 = vunpack.c.h.b16 %v600
  %v609 = vunpack.c.l.b16 %v601
  %v610 = vpack.c.b16 %v605, %v605
  %v611 = vpack.c.b16 %v606, %v606
  %v612 = vpack.c.b16 %v607, %v607
  %v613 = vpack.c.b16 %v608, %v608
  %v614 = vpack.c.b16 %v609, %v609
  %v620 = vsel %vm329, %v614, 0
  %622 = vmatprep.subr.bf16.mxu0 0
  %623 = vmatpush1.bf16.msra.mxu0 %v257
  %624 = vmatprep.subr.bf16.mxu0 0
  %625 = vmatpush1.bf16.msra.mxu0 %v258
  %626 = vmatprep.subr.bf16.mxu0 0
  %627 = vmatpush1.bf16.msra.mxu0 %v259
  %628 = vmatprep.subr.bf16.mxu0 0
  %629 = vmatpush1.bf16.msra.mxu0 %v260
  %630 = vmatprep.subr.bf16.mxu0 0
  %631 = vmatpush1.bf16.msra.mxu0 %v261
  %632 = vmatprep.subr.bf16.mxu0 0
  %633 = vmatpush1.bf16.msra.mxu0 %v262
  %634 = vmatprep.subr.bf16.mxu0 0
  %635 = vmatpush1.bf16.msra.mxu0 %v263
  %636 = vmatprep.subr.bf16.mxu0 0
  %637 = vmatpush1.bf16.msra.mxu0 %v264
  %638 = vmatprep.subr.bf16.mxu0 0
  %639 = vmatpush1.bf16.msra.mxu0 %v265
  %640 = vmatprep.subr.bf16.mxu0 0
  %641 = vmatpush1.bf16.msra.mxu0 %v266
  %642 = vmatprep.subr.bf16.mxu0 0
  %643 = vmatpush1.bf16.msra.mxu0 %v267
  %644 = vmatprep.subr.bf16.mxu0 0
  %645 = vmatpush1.bf16.msra.mxu0 %v268
  %646 = vmatprep.subr.bf16.mxu0 0
  %647 = vmatpush1.bf16.msra.mxu0 %v269
  %648 = vmatprep.subr.bf16.mxu0 0
  %649 = vmatpush1.bf16.msra.mxu0 %v270
  %650 = vmatprep.subr.bf16.mxu0 0
  %651 = vmatpush1.bf16.msra.mxu0 %v271
  %652 = vmatprep.subr.bf16.mxu0 0
  %653 = vmatpush1.bf16.msra.mxu0 %v272
  %654 = vmatprep.mubr.bf16.mxu0 %v611
  %655 = vmatmul.mubr.bf16.gmra.mrb[0].mxu0 %v610
  %v656 = vpop.f32.mrb[0].mxu0
  %v657 = vadd.f32 0.0, %v656
  %v658 = vpop.f32.mrb[0].mxu0
  %v659 = vpop.f32.mrb[0].mxu0
  %v660 = vpop.f32.mrb[0].mxu0
  %661 = vdwg.mxu0
  %662 = vmatprep.subr.bf16.mxu0 0
  %663 = vmatpush1.bf16.msra.mxu0 %v273
  %664 = vmatprep.subr.bf16.mxu0 0
  %665 = vmatpush1.bf16.msra.mxu0 %v274
  %666 = vmatprep.subr.bf16.mxu0 0
  %667 = vmatpush1.bf16.msra.mxu0 %v275
  %668 = vmatprep.subr.bf16.mxu0 0
  %669 = vmatpush1.bf16.msra.mxu0 %v276
  %670 = vmatprep.subr.bf16.mxu0 0
  %671 = vmatpush1.bf16.msra.mxu0 %v277
  %672 = vmatprep.subr.bf16.mxu0 0
  %673 = vmatpush1.bf16.msra.mxu0 %v278
  %674 = vmatprep.subr.bf16.mxu0 0
  %675 = vmatpush1.bf16.msra.mxu0 %v279
  %676 = vmatprep.subr.bf16.mxu0 0
  %677 = vmatpush1.bf16.msra.mxu0 %v280
  %678 = vmatprep.subr.bf16.mxu0 0
  %679 = vmatpush1.bf16.msra.mxu0 %v281
  %680 = vmatprep.subr.bf16.mxu0 0
  %681 = vmatpush1.bf16.msra.mxu0 %v282
  %682 = vmatprep.subr.bf16.mxu0 0
  %683 = vmatpush1.bf16.msra.mxu0 %v283
  %684 = vmatprep.subr.bf16.mxu0 0
  %685 = vmatpush1.bf16.msra.mxu0 %v284
  %686 = vmatprep.subr.bf16.mxu0 0
  %687 = vmatpush1.bf16.msra.mxu0 %v285
  %688 = vmatprep.subr.bf16.mxu0 0
  %689 = vmatpush1.bf16.msra.mxu0 %v286
  %690 = vmatprep.subr.bf16.mxu0 0
  %691 = vmatpush1.bf16.msra.mxu0 %v287
  %692 = vmatprep.subr.bf16.mxu0 0
  %693 = vmatpush1.bf16.msra.mxu0 %v288
  %694 = vmatprep.mubr.bf16.mxu0 %v613
  %695 = vmatmul.mubr.bf16.gmra.mrb[0].mxu0 %v612
  %v696 = vpop.f32.mrb[0].mxu0
  %v697 = vadd.f32 %v657, %v696
  %v698 = vpop.f32.mrb[0].mxu0
  %v699 = vpop.f32.mrb[0].mxu0
  %v700 = vpop.f32.mrb[0].mxu0
  %701 = vdwg.mxu0
  %702 = vmatprep.subr.bf16.mxu0 0
  %703 = vmatpush1.bf16.msra.mxu0 %v289
  %704 = vmatprep.subr.bf16.mxu0 0
  %705 = vmatpush1.bf16.msra.mxu0 %v290
  %706 = vmatprep.subr.bf16.mxu0 0
  %707 = vmatpush1.bf16.msra.mxu0 %v291
  %708 = vmatprep.subr.bf16.mxu0 0
  %709 = vmatpush1.bf16.msra.mxu0 %v292
  %710 = vmatprep.subr.bf16.mxu0 0
  %711 = vmatpush1.bf16.msra.mxu0 0
  %712 = vmatprep.subr.bf16.mxu0 0
  %713 = vmatpush1.bf16.msra.mxu0 0
  %714 = vmatprep.subr.bf16.mxu0 0
  %715 = vmatpush1.bf16.msra.mxu0 0
  %716 = vmatprep.subr.bf16.mxu0 0
  %717 = vmatpush1.bf16.msra.mxu0 0
  %718 = vmatprep.subr.bf16.mxu0 0
  %719 = vmatpush1.bf16.msra.mxu0 0
  %720 = vmatprep.subr.bf16.mxu0 0
  %721 = vmatpush1.bf16.msra.mxu0 0
  %722 = vmatprep.subr.bf16.mxu0 0
  %723 = vmatpush1.bf16.msra.mxu0 0
  %724 = vmatprep.subr.bf16.mxu0 0
  %725 = vmatpush1.bf16.msra.mxu0 0
  %726 = vmatprep.subr.bf16.mxu0 0
  %727 = vmatpush1.bf16.msra.mxu0 0
  %728 = vmatprep.subr.bf16.mxu0 0
  %729 = vmatpush1.bf16.msra.mxu0 0
  %730 = vmatprep.subr.bf16.mxu0 0
  %731 = vmatpush1.bf16.msra.mxu0 0
  %732 = vmatprep.subr.bf16.mxu0 0
  %733 = vmatpush1.bf16.msra.mxu0 0
  %734 = vmatprep.mubr.bf16.mxu0 0
  %735 = vmatmul.mubr.bf16.gmra.mrb[0].mxu0 %v620
  %v736 = vpop.f32.mrb[0].mxu0
  %v737 = vadd.f32 %v697, %v736
  %v738 = vpop.f32.mrb[0].mxu0
  %v739 = vpop.f32.mrb[0].mxu0
  %v740 = vpop.f32.mrb[0].mxu0
  %741 = vdwg.mxu0
  %v742 = vmax.f32 %v597, %v737
  %s743 = scalar_lea.vmem %s0, 60
  %v744 = vld [vmem:[%s743] sm:$0xff]
  %v745 = vld [vmem:[%s743 + $0x8] sm:$0xff]
  %v746 = vld [vmem:[%s743 + $0x10] sm:$0xf]
  %v750 = vunpack.c.l.b16 %v744
  %v751 = vunpack.c.h.b16 %v744
  %v752 = vunpack.c.l.b16 %v745
  %v753 = vunpack.c.h.b16 %v745
  %v754 = vunpack.c.l.b16 %v746
  %v755 = vpack.c.b16 %v750, %v750
  %v756 = vpack.c.b16 %v751, %v751
  %v757 = vpack.c.b16 %v752, %v752
  %v758 = vpack.c.b16 %v753, %v753
  %v759 = vpack.c.b16 %v754, %v754
  %v765 = vsel %vm329, %v759, 0
  %767 = vmatprep.subr.bf16.mxu0 0
  %768 = vmatpush1.bf16.msra.mxu0 %v257
  %769 = vmatprep.subr.bf16.mxu0 0
  %770 = vmatpush1.bf16.msra.mxu0 %v258
  %771 = vmatprep.subr.bf16.mxu0 0
  %772 = vmatpush1.bf16.msra.mxu0 %v259
  %773 = vmatprep.subr.bf16.mxu0 0
  %774 = vmatpush1.bf16.msra.mxu0 %v260
  %775 = vmatprep.subr.bf16.mxu0 0
  %776 = vmatpush1.bf16.msra.mxu0 %v261
  %777 = vmatprep.subr.bf16.mxu0 0
  %778 = vmatpush1.bf16.msra.mxu0 %v262
  %779 = vmatprep.subr.bf16.mxu0 0
  %780 = vmatpush1.bf16.msra.mxu0 %v263
  %781 = vmatprep.subr.bf16.mxu0 0
  %782 = vmatpush1.bf16.msra.mxu0 %v264
  %783 = vmatprep.subr.bf16.mxu0 0
  %784 = vmatpush1.bf16.msra.mxu0 %v265
  %785 = vmatprep.subr.bf16.mxu0 0
  %786 = vmatpush1.bf16.msra.mxu0 %v266
  %787 = vmatprep.subr.bf16.mxu0 0
  %788 = vmatpush1.bf16.msra.mxu0 %v267
  %789 = vmatprep.subr.bf16.mxu0 0
  %790 = vmatpush1.bf16.msra.mxu0 %v268
  %791 = vmatprep.subr.bf16.mxu0 0
  %792 = vmatpush1.bf16.msra.mxu0 %v269
  %793 = vmatprep.subr.bf16.mxu0 0
  %794 = vmatpush1.bf16.msra.mxu0 %v270
  %795 = vmatprep.subr.bf16.mxu0 0
  %796 = vmatpush1.bf16.msra.mxu0 %v271
  %797 = vmatprep.subr.bf16.mxu0 0
  %798 = vmatpush1.bf16.msra.mxu0 %v272
  %799 = vmatprep.mubr.bf16.mxu0 %v756
  %800 = vmatmul.mubr.bf16.gmra.mrb[0].mxu0 %v755
  %v801 = vpop.f32.mrb[0].mxu0
  %v802 = vadd.f32 0.0, %v801
  %v803 = vpop.f32.mrb[0].mxu0
  %v804 = vpop.f32.mrb[0].mxu0
  %v805 = vpop.f32.mrb[0].mxu0
  %806 = vdwg.mxu0
  %807 = vmatprep.subr.bf16.mxu0 0
  %808 = vmatpush1.bf16.msra.mxu0 %v273
  %809 = vmatprep.subr.bf16.mxu0 0
  %810 = vmatpush1.bf16.msra.mxu0 %v274
  %811 = vmatprep.subr.bf16.mxu0 0
  %812 = vmatpush1.bf16.msra.mxu0 %v275
  %813 = vmatprep.subr.bf16.mxu0 0
  %814 = vmatpush1.bf16.msra.mxu0 %v276
  %815 = vmatprep.subr.bf16.mxu0 0
  %816 = vmatpush1.bf16.msra.mxu0 %v277
  %817 = vmatprep.subr.bf16.mxu0 0
  %818 = vmatpush1.bf16.msra.mxu0 %v278
  %819 = vmatprep.subr.bf16.mxu0 0
  %820 = vmatpush1.bf16.msra.mxu0 %v279
  %821 = vmatprep.subr.bf16.mxu0 0
  %822 = vmatpush1.bf16.msra.mxu0 %v280
  %823 = vmatprep.subr.bf16.mxu0 0
  %824 = vmatpush1.bf16.msra.mxu0 %v281
  %825 = vmatprep.subr.bf16.mxu0 0
  %826 = vmatpush1.bf16.msra.mxu0 %v282
  %827 = vmatprep.subr.bf16.mxu0 0
  %828 = vmatpush1.bf16.msra.mxu0 %v283
  %829 = vmatprep.subr.bf16.mxu0 0
  %830 = vmatpush1.bf16.msra.mxu0 %v284
  %831 = vmatprep.subr.bf16.mxu0 0
  %832 = vmatpush1.bf16.msra.mxu0 %v285
  %833 = vmatprep.subr.bf16.mxu0 0
  %834 = vmatpush1.bf16.msra.mxu0 %v286
  %835 = vmatprep.subr.bf16.mxu0 0
  %836 = vmatpush1.bf16.msra.mxu0 %v287
  %837 = vmatprep.subr.bf16.mxu0 0
  %838 = vmatpush1.bf16.msra.mxu0 %v288
  %839 = vmatprep.mubr.bf16.mxu0 %v758
  %840 = vmatmul.mubr.bf16.gmra.mrb[0].mxu0 %v757
  %v841 = vpop.f32.mrb[0].mxu0
  %v842 = vadd.f32 %v802, %v841
  %v843 = vpop.f32.mrb[0].mxu0
  %v844 = vpop.f32.mrb[0].mxu0
  %v845 = vpop.f32.mrb[0].mxu0
  %846 = vdwg.mxu0
  %847 = vmatprep.subr.bf16.mxu0 0
  %848 = vmatpush1.bf16.msra.mxu0 %v289
  %849 = vmatprep.subr.bf16.mxu0 0
  %850 = vmatpush1.bf16.msra.mxu0 %v290
  %851 = vmatprep.subr.bf16.mxu0 0
  %852 = vmatpush1.bf16.msra.mxu0 %v291
  %853 = vmatprep.subr.bf16.mxu0 0
  %854 = vmatpush1.bf16.msra.mxu0 %v292
  %855 = vmatprep.subr.bf16.mxu0 0
  %856 = vmatpush1.bf16.msra.mxu0 0
  %857 = vmatprep.subr.bf16.mxu0 0
  %858 = vmatpush1.bf16.msra.mxu0 0
  %859 = vmatprep.subr.bf16.mxu0 0
  %860 = vmatpush1.bf16.msra.mxu0 0
  %861 = vmatprep.subr.bf16.mxu0 0
  %862 = vmatpush1.bf16.msra.mxu0 0
  %863 = vmatprep.subr.bf16.mxu0 0
  %864 = vmatpush1.bf16.msra.mxu0 0
  %865 = vmatprep.subr.bf16.mxu0 0
  %866 = vmatpush1.bf16.msra.mxu0 0
  %867 = vmatprep.subr.bf16.mxu0 0
  %868 = vmatpush1.bf16.msra.mxu0 0
  %869 = vmatprep.subr.bf16.mxu0 0
  %870 = vmatpush1.bf16.msra.mxu0 0
  %871 = vmatprep.subr.bf16.mxu0 0
  %872 = vmatpush1.bf16.msra.mxu0 0
  %873 = vmatprep.subr.bf16.mxu0 0
  %874 = vmatpush1.bf16.msra.mxu0 0
  %875 = vmatprep.subr.bf16.mxu0 0
  %876 = vmatpush1.bf16.msra.mxu0 0
  %877 = vmatprep.subr.bf16.mxu0 0
  %878 = vmatpush1.bf16.msra.mxu0 0
  %879 = vmatprep.mubr.bf16.mxu0 0
  %880 = vmatmul.mubr.bf16.gmra.mrb[0].mxu0 %v765
  %v881 = vpop.f32.mrb[0].mxu0
  %v882 = vadd.f32 %v842, %v881
  %v883 = vpop.f32.mrb[0].mxu0
  %v884 = vpop.f32.mrb[0].mxu0
  %v885 = vpop.f32.mrb[0].mxu0
  %886 = vdwg.mxu0
  %v887 = vmax.f32 %v742, %v882
  %v888 = vld [vmem:[%s2] sm:$0x1]
  %v890 = vlaneseq
  %v891 = vshrl.u32 %v890, 7
  %v892 = vsub.s32 0, %v891
  %v893 = vrot.slane %v888, %v892
  %v895 = vadd.f32 %v887, %v893
  %v896 = vmax.f32 %v895, 0.0
  %v897 = vpack.c.bf16 %v896, %v896
  %v898 = vld [vmem:[%s3] sm:$0xf]
  %v899 = vld [vmem:[%s3 + $0x4] sm:$0xf]
  %v900 = vld [vmem:[%s3 + $0x8] sm:$0xf]
  %v901 = vld [vmem:[%s3 + $0xc] sm:$0xf]
  %v902 = vld [vmem:[%s3 + $0x10] sm:$0xf]
  %v903 = vld [vmem:[%s3 + $0x14] sm:$0xf]
  %v904 = vld [vmem:[%s3 + $0x18] sm:$0xf]
  %v905 = vld [vmem:[%s3 + $0x1c] sm:$0xf]
  %v906 = vld [vmem:[%s3 + $0x20] sm:$0xf]
  %v907 = vld [vmem:[%s3 + $0x24] sm:$0xf]
  %v908 = vld [vmem:[%s3 + $0x28] sm:$0xf]
  %v909 = vld [vmem:[%s3 + $0x2c] sm:$0xf]
  %v910 = vld [vmem:[%s3 + $0x30] sm:$0xf]
  %v911 = vld [vmem:[%s3 + $0x34] sm:$0xf]
  %v912 = vld [vmem:[%s3 + $0x38] sm:$0xf]
  %v913 = vld [vmem:[%s3 + $0x3c] sm:$0xf]
  %v914 = vld [vmem:[%s4] sm:$0x1]
  %v916 = vlaneseq
  %v917 = vshrl.u32 %v916, 7
  %v918 = vsub.s32 0, %v917
  %v919 = vrot.slane %v914, %v918
  %v937 = vunpack.c.l.b16 %v898
  %v938 = vunpack.c.l.b16 %v899
  %v939 = vunpack.c.l.b16 %v900
  %v940 = vunpack.c.l.b16 %v901
  %v941 = vunpack.c.l.b16 %v902
  %v942 = vunpack.c.l.b16 %v903
  %v943 = vunpack.c.l.b16 %v904
  %v944 = vunpack.c.l.b16 %v905
  %v945 = vunpack.c.l.b16 %v906
  %v946 = vunpack.c.l.b16 %v907
  %v947 = vunpack.c.l.b16 %v908
  %v948 = vunpack.c.l.b16 %v909
  %v949 = vunpack.c.l.b16 %v910
  %v950 = vunpack.c.l.b16 %v911
  %v951 = vunpack.c.l.b16 %v912
  %v952 = vunpack.c.l.b16 %v913
  %v953 = vpack.c.b16 %v938, %v937
  %v954 = vpack.c.b16 %v940, %v939
  %v955 = vpack.c.b16 %v942, %v941
  %v956 = vpack.c.b16 %v944, %v943
  %v957 = vpack.c.b16 %v946, %v945
  %v958 = vpack.c.b16 %v948, %v947
  %v959 = vpack.c.b16 %v950, %v949
  %v960 = vpack.c.b16 %v952, %v951
  %969 = vmatprep.subr.bf16.mxu0 0
  %970 = vmatpush1.bf16.msra.mxu0 %v953
  %971 = vmatprep.subr.bf16.mxu0 0
  %972 = vmatpush1.bf16.msra.mxu0 %v954
  %973 = vmatprep.subr.bf16.mxu0 0
  %974 = vmatpush1.bf16.msra.mxu0 %v955
  %975 = vmatprep.subr.bf16.mxu0 0
  %976 = vmatpush1.bf16.msra.mxu0 %v956
  %977 = vmatprep.subr.bf16.mxu0 0
  %978 = vmatpush1.bf16.msra.mxu0 %v957
  %979 = vmatprep.subr.bf16.mxu0 0
  %980 = vmatpush1.bf16.msra.mxu0 %v958
  %981 = vmatprep.subr.bf16.mxu0 0
  %982 = vmatpush1.bf16.msra.mxu0 %v959
  %983 = vmatprep.subr.bf16.mxu0 0
  %984 = vmatpush1.bf16.msra.mxu0 %v960
  %985 = vmatprep.subr.bf16.mxu0 0
  %986 = vmatpush1.bf16.msra.mxu0 0
  %987 = vmatprep.subr.bf16.mxu0 0
  %988 = vmatpush1.bf16.msra.mxu0 0
  %989 = vmatprep.subr.bf16.mxu0 0
  %990 = vmatpush1.bf16.msra.mxu0 0
  %991 = vmatprep.subr.bf16.mxu0 0
  %992 = vmatpush1.bf16.msra.mxu0 0
  %993 = vmatprep.subr.bf16.mxu0 0
  %994 = vmatpush1.bf16.msra.mxu0 0
  %995 = vmatprep.subr.bf16.mxu0 0
  %996 = vmatpush1.bf16.msra.mxu0 0
  %997 = vmatprep.subr.bf16.mxu0 0
  %998 = vmatpush1.bf16.msra.mxu0 0
  %999 = vmatprep.subr.bf16.mxu0 0
  %1000 = vmatpush1.bf16.msra.mxu0 0
  %1001 = vmatprep.mubr.bf16.mxu0 0
  %1002 = vmatmul.mubr.bf16.gmra.mrb[0].mxu0 %v897
  %v1003 = vpop.f32.mrb[0].mxu0
  %v1004 = vadd.f32 %v919, %v1003
  %v1005 = vpop.f32.mrb[0].mxu0
  %v1006 = vpop.f32.mrb[0].mxu0
  %v1007 = vpop.f32.mrb[0].mxu0
  %1008 = vdwg.mxu0
  %1009 = vst [vmem:[%s5] sm:$0xff] %v1004
  // Predicated region
  $region22: #{forward.5} parent=0 // pred_check
    _
  $region23: #{forward.5} parent=0 // pred_check_branch
    %1011 = sbr.rel (0) target = $region25
  $region24: #{forward.5} parent=0 // pred_region
    _
  $region25: #{forward.5} parent=0 // pred_fallthru
    _
  // Predicated region
  $region26: #{forward.5} parent=0 // pred_check
    _
  $region27: #{forward.5} parent=0 // pred_check_branch
    %1013 = sbr.rel (0) target = $region29
  $region28: #{forward.5} parent=0 // pred_region
    _
  $region29: #{forward.5} parent=0 // pred_fallthru
    _

// kernel: forward.3
$region0: #{forward.3}
  #allocation0 [shape = 'u32[]', space=smem, size = 0x4, offset = 0x4, fixed_abs, tag = 'smem constant byte address 0x4 - core index']
  #allocation1 [shape = 'u32[144,128]{1,0:T(1,128)}', space=vmem, size = 0x12000, scoped, tag = 'internal scratch']
  %s0 = inlined_call_operand.vmem [shape: bf16[4,344,9], index: 0, kind: input, shape index: {}]
  %s1 = inlined_call_operand.vmem [shape: bf16[9,32], index: 1, kind: input, shape index: {}]
  %s2 = inlined_call_operand.vmem [shape: f32[1,32], index: 2, kind: input, shape index: {}]
  %s3 = inlined_call_operand.vmem [shape: bf16[344,32], index: 3, kind: output, shape index: {}]
  %s4 = sld [smem:[#allocation0]]
  $region22: #{forward.3} parent=0
    _
  %s6 = ssub.s32 1, %s4
  %s7 = scalar_select 0, %s6, %s4
  // Predicated region
  $region2: #{forward.3} parent=0 // pred_check
    _
  $region3: #{forward.3} parent=0 // pred_check_branch
    %9 = sbr.rel (0) target = $region5
  $region4: #{forward.3} parent=0 // pred_region
    _
  $region5: #{forward.3} parent=0 // pred_fallthru
    _
  // Predicated region
  $region6: #{forward.3} parent=0 // pred_check
    _
  $region7: #{forward.3} parent=0 // pred_check_branch
    %11 = sbr.rel (0) target = $region9
  $region8: #{forward.3} parent=0 // pred_region
    _
  $region9: #{forward.3} parent=0 // pred_fallthru
    _
  // Predicated region
  $region10: #{forward.3} parent=0 // pred_check
    _
  $region11: #{forward.3} parent=0 // pred_check_branch
    %13 = sbr.rel (0) target = $region13
  $region12: #{forward.3} parent=0 // pred_region
    _
  $region13: #{forward.3} parent=0 // pred_fallthru
    _
  %v15 = vld [vmem:[%s0] sm:$0xf]
  %v16 = vld [vmem:[%s0 + $0x4] sm:$0xf]
  %v17 = vld [vmem:[%s0 + $0x8] sm:$0xf]
  %v18 = vld [vmem:[%s0 + $0xc] sm:$0xf]
  %v19 = vld [vmem:[%s0 + $0x10] sm:$0xf]
  %v20 = vld [vmem:[%s0 + $0x14] sm:$0xf]
  %v21 = vld [vmem:[%s0 + $0x18] sm:$0xf]
  %v22 = vld [vmem:[%s0 + $0x1c] sm:$0xf]
  %v23 = vld [vmem:[%s0 + $0x20] sm:$0xf]
  %v24 = vld [vmem:[%s0 + $0x24] sm:$0xf]
  %v25 = vld [vmem:[%s0 + $0x28] sm:$0xf]
  %v26 = vld [vmem:[%s0 + $0x2c] sm:$0xf]
  %v27 = vld [vmem:[%s0 + $0x30] sm:$0xf]
  %v28 = vld [vmem:[%s0 + $0x34] sm:$0xf]
  %v29 = vld [vmem:[%s0 + $0x38] sm:$0xf]
  %v30 = vld [vmem:[%s0 + $0x3c] sm:$0xf]
  %v31 = vld [vmem:[%s0 + $0x40] sm:$0xf]
  %v32 = vld [vmem:[%s0 + $0x44] sm:$0xf]
  %v33 = vld [vmem:[%s0 + $0x48] sm:$0xf]
  %v34 = vld [vmem:[%s0 + $0x4c] sm:$0xf]
  %v35 = vld [vmem:[%s0 + $0x50] sm:$0xf]
  %v36 = vld [vmem:[%s0 + $0x54] sm:$0xf]
  %v37 = vld [vmem:[%s0 + $0x58] sm:$0xf]
  %v38 = vld [vmem:[%s0 + $0x5c] sm:$0xf]
  %v39 = vld [vmem:[%s0 + $0x60] sm:$0xf]
  %v40 = vld [vmem:[%s0 + $0x64] sm:$0xf]
  %v41 = vld [vmem:[%s0 + $0x68] sm:$0xf]
  %v42 = vld [vmem:[%s0 + $0x6c] sm:$0xf]
  %v43 = vld [vmem:[%s0 + $0x70] sm:$0xf]
  %v44 = vld [vmem:[%s0 + $0x74] sm:$0xf]
  %v45 = vld [vmem:[%s0 + $0x78] sm:$0xf]
  %v46 = vld [vmem:[%s0 + $0x7c] sm:$0xf]
  %v47 = vld [vmem:[%s0 + $0x80] sm:$0xf]
  %v48 = vld [vmem:[%s0 + $0x84] sm:$0xf]
  %v49 = vld [vmem:[%s0 + $0x88] sm:$0xf]
  %v50 = vld [vmem:[%s0 + $0x8c] sm:$0xf]
  %v51 = vld [vmem:[%s0 + $0x90] sm:$0xf]
  %v52 = vld [vmem:[%s0 + $0x94] sm:$0xf]
  %v53 = vld [vmem:[%s0 + $0x98] sm:$0xf]
  %v54 = vld [vmem:[%s0 + $0x9c] sm:$0xf]
  %v55 = vld [vmem:[%s0 + $0xa0] sm:$0xf]
  %v56 = vld [vmem:[%s0 + $0xa4] sm:$0xf]
  %v57 = vld [vmem:[%s0 + $0xa8] sm:$0xf]
  %v58 = vld [vmem:[%s1] sm:$0xf]
  %v59 = vld [vmem:[%s1 + $0x4] sm:$0x1]
  %v103 = vunpack.c.l.b16 %v15
  %v104 = vunpack.c.l.b16 %v16
  %v105 = vunpack.c.l.b16 %v17
  %v106 = vunpack.c.l.b16 %v18
  %v107 = vunpack.c.l.b16 %v19
  %v108 = vunpack.c.l.b16 %v20
  %v109 = vunpack.c.l.b16 %v21
  %v110 = vunpack.c.l.b16 %v22
  %v111 = vunpack.c.l.b16 %v23
  %v112 = vunpack.c.l.b16 %v24
  %v113 = vunpack.c.l.b16 %v25
  %v114 = vunpack.c.l.b16 %v26
  %v115 = vunpack.c.l.b16 %v27
  %v116 = vunpack.c.l.b16 %v28
  %v117 = vunpack.c.l.b16 %v29
  %v118 = vunpack.c.l.b16 %v30
  %v119 = vunpack.c.l.b16 %v31
  %v120 = vunpack.c.l.b16 %v32
  %v121 = vunpack.c.l.b16 %v33
  %v122 = vunpack.c.l.b16 %v34
  %v123 = vunpack.c.l.b16 %v35
  %v124 = vunpack.c.l.b16 %v36
  %v125 = vunpack.c.l.b16 %v37
  %v126 = vunpack.c.l.b16 %v38
  %v127 = vunpack.c.l.b16 %v39
  %v128 = vunpack.c.l.b16 %v40
  %v129 = vunpack.c.l.b16 %v41
  %v130 = vunpack.c.l.b16 %v42
  %v131 = vunpack.c.l.b16 %v43
  %v132 = vunpack.c.l.b16 %v44
  %v133 = vunpack.c.l.b16 %v45
  %v134 = vunpack.c.l.b16 %v46
  %v135 = vunpack.c.l.b16 %v47
  %v136 = vunpack.c.l.b16 %v48
  %v137 = vunpack.c.l.b16 %v49
  %v138 = vunpack.c.l.b16 %v50
  %v139 = vunpack.c.l.b16 %v51
  %v140 = vunpack.c.l.b16 %v52
  %v141 = vunpack.c.l.b16 %v53
  %v142 = vunpack.c.l.b16 %v54
  %v143 = vunpack.c.l.b16 %v55
  %v144 = vunpack.c.l.b16 %v56
  %v145 = vunpack.c.l.b16 %v57
  %v146 = vpack.c.b16 %v104, %v103
  %v147 = vpack.c.b16 %v106, %v105
  %v148 = vpack.c.b16 %v108, %v107
  %v149 = vpack.c.b16 %v110, %v109
  %v150 = vpack.c.b16 %v112, %v111
  %v151 = vpack.c.b16 %v114, %v113
  %v152 = vpack.c.b16 %v116, %v115
  %v153 = vpack.c.b16 %v118, %v117
  %v154 = vpack.c.b16 %v120, %v119
  %v155 = vpack.c.b16 %v122, %v121
  %v156 = vpack.c.b16 %v124, %v123
  %v157 = vpack.c.b16 %v126, %v125
  %v158 = vpack.c.b16 %v128, %v127
  %v159 = vpack.c.b16 %v130, %v129
  %v160 = vpack.c.b16 %v132, %v131
  %v161 = vpack.c.b16 %v134, %v133
  %v162 = vpack.c.b16 %v136, %v135
  %v163 = vpack.c.b16 %v138, %v137
  %v164 = vpack.c.b16 %v140, %v139
  %v165 = vpack.c.b16 %v142, %v141
  %v166 = vpack.c.b16 %v144, %v143
  %v167 = vpack.c.b16 %v145, %v145
  %v170 = vunpack.c.l.b16 %v58
  %v171 = vunpack.c.l.b16 %v59
  %v172 = vpack.c.b16 %v171, %v170
  %vm173 = vcmask 72704
  %v175 = vsel %vm173, %v146, 0
  %v178 = vsel %vm173, %v147, 0
  %v181 = vsel %vm173, %v148, 0
  %v184 = vsel %vm173, %v149, 0
  %v187 = vsel %vm173, %v150, 0
  %v190 = vsel %vm173, %v151, 0
  %v193 = vsel %vm173, %v152, 0
  %v196 = vsel %vm173, %v153, 0
  %v199 = vsel %vm173, %v154, 0
  %v202 = vsel %vm173, %v155, 0
  %v205 = vsel %vm173, %v156, 0
  %v208 = vsel %vm173, %v157, 0
  %v211 = vsel %vm173, %v158, 0
  %v214 = vsel %vm173, %v159, 0
  %v217 = vsel %vm173, %v160, 0
  %v220 = vsel %vm173, %v161, 0
  %v223 = vsel %vm173, %v162, 0
  %v226 = vsel %vm173, %v163, 0
  %v229 = vsel %vm173, %v164, 0
  %v232 = vsel %vm173, %v165, 0
  %v235 = vsel %vm173, %v166, 0
  %v238 = vsel %vm173, %v167, 0
  %vm240 = vcmask 1043456
  %vm241 = vcmask 1044480
  %v242 = vsel %vm240, 4294967295, 65535
  %v243 = vsel %vm241, %v242, 0
  %v245 = vand.u32 %v172, %v243
  %247 = vmatprep.subr.bf16.mxu0 0
  %248 = vmatpush1.bf16.msra.mxu0 %v245
  %249 = vmatprep.subr.bf16.mxu0 0
  %250 = vmatpush1.bf16.msra.mxu0 0
  %251 = vmatprep.subr.bf16.mxu0 0
  %252 = vmatpush1.bf16.msra.mxu0 0
  %253 = vmatprep.subr.bf16.mxu0 0
  %254 = vmatpush1.bf16.msra.mxu0 0
  %255 = vmatprep.subr.bf16.mxu0 0
  %256 = vmatpush1.bf16.msra.mxu0 0
  %257 = vmatprep.subr.bf16.mxu0 0
  %258 = vmatpush1.bf16.msra.mxu0 0
  %259 = vmatprep.subr.bf16.mxu0 0
  %260 = vmatpush1.bf16.msra.mxu0 0
  %261 = vmatprep.subr.bf16.mxu0 0
  %262 = vmatpush1.bf16.msra.mxu0 0
  %263 = vmatprep.subr.bf16.mxu0 0
  %264 = vmatpush1.bf16.msra.mxu0 0
  %265 = vmatprep.subr.bf16.mxu0 0
  %266 = vmatpush1.bf16.msra.mxu0 0
  %267 = vmatprep.subr.bf16.mxu0 0
  %268 = vmatpush1.bf16.msra.mxu0 0
  %269 = vmatprep.subr.bf16.mxu0 0
  %270 = vmatpush1.bf16.msra.mxu0 0
  %271 = vmatprep.subr.bf16.mxu0 0
  %272 = vmatpush1.bf16.msra.mxu0 0
  %273 = vmatprep.subr.bf16.mxu0 0
  %274 = vmatpush1.bf16.msra.mxu0 0
  %275 = vmatprep.subr.bf16.mxu0 0
  %276 = vmatpush1.bf16.msra.mxu0 0
  %277 = vmatprep.subr.bf16.mxu0 0
  %278 = vmatpush1.bf16.msra.mxu0 0
  %279 = vmatprep.mubr.bf16.mxu0 0
  %280 = vmatmul.mubr.bf16.gmra.mrb[0].mxu0 %v175
  %v281 = vpop.f32.mrb[0].mxu0
  %v282 = vadd.f32 0.0, %v281
  %v283 = vpop.f32.mrb[0].mxu0
  %v284 = vpop.f32.mrb[0].mxu0
  %v285 = vadd.f32 0.0, %v284
  %v286 = vpop.f32.mrb[0].mxu0
  %287 = vmatprep.mubr.bf16.mxu0 0
  %288 = vmatmul.mubr.bf16.gmra.mrb[0].mxu0 %v178
  %v289 = vpop.f32.mrb[0].mxu0
  %v290 = vadd.f32 0.0, %v289
  %v291 = vpop.f32.mrb[0].mxu0
  %v292 = vpop.f32.mrb[0].mxu0
  %v293 = vadd.f32 0.0, %v292
  %v294 = vpop.f32.mrb[0].mxu0
  %295 = vmatprep.mubr.bf16.mxu0 0
  %296 = vmatmul.mubr.bf16.gmra.mrb[0].mxu0 %v181
  %v297 = vpop.f32.mrb[0].mxu0
  %v298 = vadd.f32 0.0, %v297
  %v299 = vpop.f32.mrb[0].mxu0
  %v300 = vpop.f32.mrb[0].mxu0
  %v301 = vadd.f32 0.0, %v300
  %v302 = vpop.f32.mrb[0].mxu0
  %303 = vmatprep.mubr.bf16.mxu0 0
  %304 = vmatmul.mubr.bf16.gmra.mrb[0].mxu0 %v184
  %v305 = vpop.f32.mrb[0].mxu0
  %v306 = vadd.f32 0.0, %v305
  %v307 = vpop.f32.mrb[0].mxu0
  %v308 = vpop.f32.mrb[0].mxu0
  %v309 = vadd.f32 0.0, %v308
  %v310 = vpop.f32.mrb[0].mxu0
  %311 = vmatprep.mubr.bf16.mxu0 0
  %312 = vmatmul.mubr.bf16.gmra.mrb[0].mxu0 %v187
  %v313 = vpop.f32.mrb[0].mxu0
  %v314 = vadd.f32 0.0, %v313
  %v315 = vpop.f32.mrb[0].mxu0
  %v316 = vpop.f32.mrb[0].mxu0
  %v317 = vadd.f32 0.0, %v316
  %v318 = vpop.f32.mrb[0].mxu0
  %319 = vmatprep.mubr.bf16.mxu0 0
  %320 = vmatmul.mubr.bf16.gmra.mrb[0].mxu0 %v190
  %v321 = vpop.f32.mrb[0].mxu0
  %v322 = vadd.f32 0.0, %v321
  %v323 = vpop.f32.mrb[0].mxu0
  %v324 = vpop.f32.mrb[0].mxu0
  %v325 = vadd.f32 0.0, %v324
  %v326 = vpop.f32.mrb[0].mxu0
  %327 = vmatprep.mubr.bf16.mxu0 0
  %328 = vmatmul.mubr.bf16.gmra.mrb[0].mxu0 %v193
  %v329 = vpop.f32.mrb[0].mxu0
  %v330 = vadd.f32 0.0, %v329
  %v331 = vpop.f32.mrb[0].mxu0
  %v332 = vpop.f32.mrb[0].mxu0
  %v333 = vadd.f32 0.0, %v332
  %v334 = vpop.f32.mrb[0].mxu0
  %335 = vmatprep.mubr.bf16.mxu0 0
  %336 = vmatmul.mubr.bf16.gmra.mrb[0].mxu0 %v196
  %v337 = vpop.f32.mrb[0].mxu0
  %v338 = vadd.f32 0.0, %v337
  %v339 = vpop.f32.mrb[0].mxu0
  %v340 = vpop.f32.mrb[0].mxu0
  %v341 = vadd.f32 0.0, %v340
  %v342 = vpop.f32.mrb[0].mxu0
  %343 = vmatprep.mubr.bf16.mxu0 0
  %344 = vmatmul.mubr.bf16.gmra.mrb[0].mxu0 %v199
  %v345 = vpop.f32.mrb[0].mxu0
  %v346 = vadd.f32 0.0, %v345
  %v347 = vpop.f32.mrb[0].mxu0
  %v348 = vpop.f32.mrb[0].mxu0
  %v349 = vadd.f32 0.0, %v348
  %v350 = vpop.f32.mrb[0].mxu0
  %351 = vmatprep.mubr.bf16.mxu0 0
  %352 = vmatmul.mubr.bf16.gmra.mrb[0].mxu0 %v202
  %v353 = vpop.f32.mrb[0].mxu0
  %v354 = vadd.f32 0.0, %v353
  %v355 = vpop.f32.mrb[0].mxu0
  %v356 = vpop.f32.mrb[0].mxu0
  %v357 = vadd.f32 0.0, %v356
  %v358 = vpop.f32.mrb[0].mxu0
  %359 = vmatprep.mubr.bf16.mxu0 0
  %360 = vmatmul.mubr.bf16.gmra.mrb[0].mxu0 %v205
  %v361 = vpop.f32.mrb[0].mxu0
  %v362 = vadd.f32 0.0, %v361
  %v363 = vpop.f32.mrb[0].mxu0
  %v364 = vpop.f32.mrb[0].mxu0
  %v365 = vadd.f32 0.0, %v364
  %v366 = vpop.f32.mrb[0].mxu0
  %367 = vmatprep.mubr.bf16.mxu0 0
  %368 = vmatmul.mubr.bf16.gmra.mrb[0].mxu0 %v208
  %v369 = vpop.f32.mrb[0].mxu0
  %v370 = vadd.f32 0.0, %v369
  %v371 = vpop.f32.mrb[0].mxu0
  %v372 = vpop.f32.mrb[0].mxu0
  %v373 = vadd.f32 0.0, %v372
  %v374 = vpop.f32.mrb[0].mxu0
  %375 = vmatprep.mubr.bf16.mxu0 0
  %376 = vmatmul.mubr.bf16.gmra.mrb[0].mxu0 %v211
  %v377 = vpop.f32.mrb[0].mxu0
  %v378 = vadd.f32 0.0, %v377
  %v379 = vpop.f32.mrb[0].mxu0
  %v380 = vpop.f32.mrb[0].mxu0
  %v381 = vadd.f32 0.0, %v380
  %v382 = vpop.f32.mrb[0].mxu0
  %383 = vmatprep.mubr.bf16.mxu0 0
  %384 = vmatmul.mubr.bf16.gmra.mrb[0].mxu0 %v214
  %v385 = vpop.f32.mrb[0].mxu0
  %v386 = vadd.f32 0.0, %v385
  %v387 = vpop.f32.mrb[0].mxu0
  %v388 = vpop.f32.mrb[0].mxu0
  %v389 = vadd.f32 0.0, %v388
  %v390 = vpop.f32.mrb[0].mxu0
  %391 = vmatprep.mubr.bf16.mxu0 0
  %392 = vmatmul.mubr.bf16.gmra.mrb[0].mxu0 %v217
  %v393 = vpop.f32.mrb[0].mxu0
  %v394 = vadd.f32 0.0, %v393
  %v395 = vpop.f32.mrb[0].mxu0
  %v396 = vpop.f32.mrb[0].mxu0
  %v397 = vadd.f32 0.0, %v396
  %v398 = vpop.f32.mrb[0].mxu0
  %399 = vmatprep.mubr.bf16.mxu0 0
  %400 = vmatmul.mubr.bf16.gmra.mrb[0].mxu0 %v220
  %v401 = vpop.f32.mrb[0].mxu0
  %v402 = vadd.f32 0.0, %v401
  %v403 = vpop.f32.mrb[0].mxu0
  %v404 = vpop.f32.mrb[0].mxu0
  %v405 = vadd.f32 0.0, %v404
  %v406 = vpop.f32.mrb[0].mxu0
  %407 = vmatprep.mubr.bf16.mxu0 0
  %408 = vmatmul.mubr.bf16.gmra.mrb[0].mxu0 %v223
  %v409 = vpop.f32.mrb[0].mxu0
  %v410 = vadd.f32 0.0, %v409
  %v411 = vpop.f32.mrb[0].mxu0
  %v412 = vpop.f32.mrb[0].mxu0
  %v413 = vadd.f32 0.0, %v412
  %v414 = vpop.f32.mrb[0].mxu0
  %415 = vmatprep.mubr.bf16.mxu0 0
  %416 = vmatmul.mubr.bf16.gmra.mrb[0].mxu0 %v226
  %v417 = vpop.f32.mrb[0].mxu0
  %v418 = vadd.f32 0.0, %v417
  %v419 = vpop.f32.mrb[0].mxu0
  %v420 = vpop.f32.mrb[0].mxu0
  %v421 = vadd.f32 0.0, %v420
  %v422 = vpop.f32.mrb[0].mxu0
  %423 = vmatprep.mubr.bf16.mxu0 0
  %424 = vmatmul.mubr.bf16.gmra.mrb[0].mxu0 %v229
  %v425 = vpop.f32.mrb[0].mxu0
  %v426 = vadd.f32 0.0, %v425
  %v427 = vpop.f32.mrb[0].mxu0
  %v428 = vpop.f32.mrb[0].mxu0
  %v429 = vadd.f32 0.0, %v428
  %v430 = vpop.f32.mrb[0].mxu0
  %431 = vmatprep.mubr.bf16.mxu0 0
  %432 = vmatmul.mubr.bf16.gmra.mrb[0].mxu0 %v232
  %v433 = vpop.f32.mrb[0].mxu0
  %v434 = vadd.f32 0.0, %v433
  %v435 = vpop.f32.mrb[0].mxu0
  %v436 = vpop.f32.mrb[0].mxu0
  %v437 = vadd.f32 0.0, %v436
  %v438 = vpop.f32.mrb[0].mxu0
  %439 = vmatprep.mubr.bf16.mxu0 0
  %440 = vmatmul.mubr.bf16.gmra.mrb[0].mxu0 %v235
  %v441 = vpop.f32.mrb[0].mxu0
  %v442 = vadd.f32 0.0, %v441
  %v443 = vpop.f32.mrb[0].mxu0
  %v444 = vpop.f32.mrb[0].mxu0
  %v445 = vadd.f32 0.0, %v444
  %v446 = vpop.f32.mrb[0].mxu0
  %447 = vmatprep.mubr.bf16.mxu0 0
  %448 = vmatmul.mubr.bf16.gmra.mrb[0].mxu0 %v238
  %v449 = vpop.f32.mrb[0].mxu0
  %v450 = vadd.f32 0.0, %v449
  %v451 = vpop.f32.mrb[0].mxu0
  %v452 = vpop.f32.mrb[0].mxu0
  %v453 = vpop.f32.mrb[0].mxu0
  %454 = vdwg.mxu0
  %s455 = scalar_lea.vmem %s0, 172
  %v456 = vld [vmem:[%s455] sm:$0xf]
  %v457 = vld [vmem:[%s455 + $0x4] sm:$0xf]
  %v458 = vld [vmem:[%s455 + $0x8] sm:$0xf]
  %v459 = vld [vmem:[%s455 + $0xc] sm:$0xf]
  %v460 = vld [vmem:[%s455 + $0x10] sm:$0xf]
  %v461 = vld [vmem:[%s455 + $0x14] sm:$0xf]
  %v462 = vld [vmem:[%s455 + $0x18] sm:$0xf]
  %v463 = vld [vmem:[%s455 + $0x1c] sm:$0xf]
  %v464 = vld [vmem:[%s455 + $0x20] sm:$0xf]
  %v465 = vld [vmem:[%s455 + $0x24] sm:$0xf]
  %v466 = vld [vmem:[%s455 + $0x28] sm:$0xf]
  %v467 = vld [vmem:[%s455 + $0x2c] sm:$0xf]
  %v468 = vld [vmem:[%s455 + $0x30] sm:$0xf]
  %v469 = vld [vmem:[%s455 + $0x34] sm:$0xf]
  %v470 = vld [vmem:[%s455 + $0x38] sm:$0xf]
  %v471 = vld [vmem:[%s455 + $0x3c] sm:$0xf]
  %v472 = vld [vmem:[%s455 + $0x40] sm:$0xf]
  %v473 = vld [vmem:[%s455 + $0x44] sm:$0xf]
  %v474 = vld [vmem:[%s455 + $0x48] sm:$0xf]
  %v475 = vld [vmem:[%s455 + $0x4c] sm:$0xf]
  %v476 = vld [vmem:[%s455 + $0x50] sm:$0xf]
  %v477 = vld [vmem:[%s455 + $0x54] sm:$0xf]
  %v478 = vld [vmem:[%s455 + $0x58] sm:$0xf]
  %v479 = vld [vmem:[%s455 + $0x5c] sm:$0xf]
  %v480 = vld [vmem:[%s455 + $0x60] sm:$0xf]
  %v481 = vld [vmem:[%s455 + $0x64] sm:$0xf]
  %v482 = vld [vmem:[%s455 + $0x68] sm:$0xf]
  %v483 = vld [vmem:[%s455 + $0x6c] sm:$0xf]
  %v484 = vld [vmem:[%s455 + $0x70] sm:$0xf]
  %v485 = vld [vmem:[%s455 + $0x74] sm:$0xf]
  %v486 = vld [vmem:[%s455 + $0x78] sm:$0xf]
  %v487 = vld [vmem:[%s455 + $0x7c] sm:$0xf]
  %v488 = vld [vmem:[%s455 + $0x80] sm:$0xf]
  %v489 = vld [vmem:[%s455 + $0x84] sm:$0xf]
  %v490 = vld [vmem:[%s455 + $0x88] sm:$0xf]
  %v491 = vld [vmem:[%s455 + $0x8c] sm:$0xf]
  %v492 = vld [vmem:[%s455 + $0x90] sm:$0xf]
  %v493 = vld [vmem:[%s455 + $0x94] sm:$0xf]
  %v494 = vld [vmem:[%s455 + $0x98] sm:$0xf]
  %v495 = vld [vmem:[%s455 + $0x9c] sm:$0xf]
  %v496 = vld [vmem:[%s455 + $0xa0] sm:$0xf]
  %v497 = vld [vmem:[%s455 + $0xa4] sm:$0xf]
  %v498 = vld [vmem:[%s455 + $0xa8] sm:$0xf]
  %v542 = vunpack.c.l.b16 %v456
  %v543 = vunpack.c.l.b16 %v457
  %v544 = vunpack.c.l.b16 %v458
  %v545 = vunpack.c.l.b16 %v459
  %v546 = vunpack.c.l.b16 %v460
  %v547 = vunpack.c.l.b16 %v461
  %v548 = vunpack.c.l.b16 %v462
  %v549 = vunpack.c.l.b16 %v463
  %v550 = vunpack.c.l.b16 %v464
  %v551 = vunpack.c.l.b16 %v465
  %v552 = vunpack.c.l.b16 %v466
  %v553 = vunpack.c.l.b16 %v467
  %v554 = vunpack.c.l.b16 %v468
  %v555 = vunpack.c.l.b16 %v469
  %v556 = vunpack.c.l.b16 %v470
  %v557 = vunpack.c.l.b16 %v471
  %v558 = vunpack.c.l.b16 %v472
  %v559 = vunpack.c.l.b16 %v473
  %v560 = vunpack.c.l.b16 %v474
  %v561 = vunpack.c.l.b16 %v475
  %v562 = vunpack.c.l.b16 %v476
  %v563 = vunpack.c.l.b16 %v477
  %v564 = vunpack.c.l.b16 %v478
  %v565 = vunpack.c.l.b16 %v479
  %v566 = vunpack.c.l.b16 %v480
  %v567 = vunpack.c.l.b16 %v481
  %v568 = vunpack.c.l.b16 %v482
  %v569 = vunpack.c.l.b16 %v483
  %v570 = vunpack.c.l.b16 %v484
  %v571 = vunpack.c.l.b16 %v485
  %v572 = vunpack.c.l.b16 %v486
  %v573 = vunpack.c.l.b16 %v487
  %v574 = vunpack.c.l.b16 %v488
  %v575 = vunpack.c.l.b16 %v489
  %v576 = vunpack.c.l.b16 %v490
  %v577 = vunpack.c.l.b16 %v491
  %v578 = vunpack.c.l.b16 %v492
  %v579 = vunpack.c.l.b16 %v493
  %v580 = vunpack.c.l.b16 %v494
  %v581 = vunpack.c.l.b16 %v495
  %v582 = vunpack.c.l.b16 %v496
  %v583 = vunpack.c.l.b16 %v497
  %v584 = vunpack.c.l.b16 %v498
  %v585 = vpack.c.b16 %v543, %v542
  %v586 = vpack.c.b16 %v545, %v544
  %v587 = vpack.c.b16 %v547, %v546
  %v588 = vpack.c.b16 %v549, %v548
  %v589 = vpack.c.b16 %v551, %v550
  %v590 = vpack.c.b16 %v553, %v552
  %v591 = vpack.c.b16 %v555, %v554
  %v592 = vpack.c.b16 %v557, %v556
  %v593 = vpack.c.b16 %v559, %v558
  %v594 = vpack.c.b16 %v561, %v560
  %v595 = vpack.c.b16 %v563, %v562
  %v596 = vpack.c.b16 %v565, %v564
  %v597 = vpack.c.b16 %v567, %v566
  %v598 = vpack.c.b16 %v569, %v568
  %v599 = vpack.c.b16 %v571, %v570
  %v600 = vpack.c.b16 %v573, %v572
  %v601 = vpack.c.b16 %v575, %v574
  %v602 = vpack.c.b16 %v577, %v576
  %v603 = vpack.c.b16 %v579, %v578
  %v604 = vpack.c.b16 %v581, %v580
  %v605 = vpack.c.b16 %v583, %v582
  %v606 = vpack.c.b16 %v584, %v584
  %v608 = vsel %vm173, %v585, 0
  %v611 = vsel %vm173, %v586, 0
  %v614 = vsel %vm173, %v587, 0
  %v617 = vsel %vm173, %v588, 0
  %v620 = vsel %vm173, %v589, 0
  %v623 = vsel %vm173, %v590, 0
  %v626 = vsel %vm173, %v591, 0
  %v629 = vsel %vm173, %v592, 0
  %v632 = vsel %vm173, %v593, 0
  %v635 = vsel %vm173, %v594, 0
  %v638 = vsel %vm173, %v595, 0
  %v641 = vsel %vm173, %v596, 0
  %v644 = vsel %vm173, %v597, 0
  %v647 = vsel %vm173, %v598, 0
  %v650 = vsel %vm173, %v599, 0
  %v653 = vsel %vm173, %v600, 0
  %v656 = vsel %vm173, %v601, 0
  %v659 = vsel %vm173, %v602, 0
  %v662 = vsel %vm173, %v603, 0
  %v665 = vsel %vm173, %v604, 0
  %v668 = vsel %vm173, %v605, 0
  %v671 = vsel %vm173, %v606, 0
  %673 = vmatprep.subr.bf16.mxu0 0
  %674 = vmatpush1.bf16.msra.mxu0 %v245
  %675 = vmatprep.subr.bf16.mxu0 0
  %676 = vmatpush1.bf16.msra.mxu0 0
  %677 = vmatprep.subr.bf16.mxu0 0
  %678 = vmatpush1.bf16.msra.mxu0 0
  %679 = vmatprep.subr.bf16.mxu0 0
  %680 = vmatpush1.bf16.msra.mxu0 0
  %681 = vmatprep.subr.bf16.mxu0 0
  %682 = vmatpush1.bf16.msra.mxu0 0
  %683 = vmatprep.subr.bf16.mxu0 0
  %684 = vmatpush1.bf16.msra.mxu0 0
  %685 = vmatprep.subr.bf16.mxu0 0
  %686 = vmatpush1.bf16.msra.mxu0 0
  %687 = vmatprep.subr.bf16.mxu0 0
  %688 = vmatpush1.bf16.msra.mxu0 0
  %689 = vmatprep.subr.bf16.mxu0 0
  %690 = vmatpush1.bf16.msra.mxu0 0
  %691 = vmatprep.subr.bf16.mxu0 0
  %692 = vmatpush1.bf16.msra.mxu0 0
  %693 = vmatprep.subr.bf16.mxu0 0
  %694 = vmatpush1.bf16.msra.mxu0 0
  %695 = vmatprep.subr.bf16.mxu0 0
  %696 = vmatpush1.bf16.msra.mxu0 0
  %697 = vmatprep.subr.bf16.mxu0 0
  %698 = vmatpush1.bf16.msra.mxu0 0
  %699 = vmatprep.subr.bf16.mxu0 0
  %700 = vmatpush1.bf16.msra.mxu0 0
  %701 = vmatprep.subr.bf16.mxu0 0
  %702 = vmatpush1.bf16.msra.mxu0 0
  %703 = vmatprep.subr.bf16.mxu0 0
  %704 = vmatpush1.bf16.msra.mxu0 0
  %705 = vmatprep.mubr.bf16.mxu0 0
  %706 = vmatmul.mubr.bf16.gmra.mrb[0].mxu0 %v608
  %v707 = vpop.f32.mrb[0].mxu0
  %v708 = vadd.f32 0.0, %v707
  %v709 = vpop.f32.mrb[0].mxu0
  %v710 = vpop.f32.mrb[0].mxu0
  %v711 = vadd.f32 0.0, %v710
  %v712 = vpop.f32.mrb[0].mxu0
  %713 = vmatprep.mubr.bf16.mxu0 0
  %714 = vmatmul.mubr.bf16.gmra.mrb[0].mxu0 %v611
  %v715 = vpop.f32.mrb[0].mxu0
  %v716 = vadd.f32 0.0, %v715
  %v717 = vpop.f32.mrb[0].mxu0
  %v718 = vpop.f32.mrb[0].mxu0
  %v719 = vadd.f32 0.0, %v718
  %v720 = vpop.f32.mrb[0].mxu0
  %721 = vmatprep.mubr.bf16.mxu0 0
  %722 = vmatmul.mubr.bf16.gmra.mrb[0].mxu0 %v614
  %v723 = vpop.f32.mrb[0].mxu0
  %v724 = vadd.f32 0.0, %v723
  %v725 = vpop.f32.mrb[0].mxu0
  %v726 = vpop.f32.mrb[0].mxu0
  %v727 = vadd.f32 0.0, %v726
  %v728 = vpop.f32.mrb[0].mxu0
  %729 = vmatprep.mubr.bf16.mxu0 0
  %730 = vmatmul.mubr.bf16.gmra.mrb[0].mxu0 %v617
  %v731 = vpop.f32.mrb[0].mxu0
  %v732 = vadd.f32 0.0, %v731
  %v733 = vpop.f32.mrb[0].mxu0
  %v734 = vpop.f32.mrb[0].mxu0
  %v735 = vadd.f32 0.0, %v734
  %v736 = vpop.f32.mrb[0].mxu0
  %737 = vmatprep.mubr.bf16.mxu0 0
  %738 = vmatmul.mubr.bf16.gmra.mrb[0].mxu0 %v620
  %v739 = vpop.f32.mrb[0].mxu0
  %v740 = vadd.f32 0.0, %v739
  %v741 = vpop.f32.mrb[0].mxu0
  %v742 = vpop.f32.mrb[0].mxu0
  %v743 = vadd.f32 0.0, %v742
  %v744 = vpop.f32.mrb[0].mxu0
  %745 = vmatprep.mubr.bf16.mxu0 0
  %746 = vmatmul.mubr.bf16.gmra.mrb[0].mxu0 %v623
  %v747 = vpop.f32.mrb[0].mxu0
  %v748 = vadd.f32 0.0, %v747
  %v749 = vpop.f32.mrb[0].mxu0
  %v750 = vpop.f32.mrb[0].mxu0
  %v751 = vadd.f32 0.0, %v750
  %v752 = vpop.f32.mrb[0].mxu0
  %753 = vmatprep.mubr.bf16.mxu0 0
  %754 = vmatmul.mubr.bf16.gmra.mrb[0].mxu0 %v626
  %v755 = vpop.f32.mrb[0].mxu0
  %v756 = vadd.f32 0.0, %v755
  %v757 = vpop.f32.mrb[0].mxu0
  %v758 = vpop.f32.mrb[0].mxu0
  %v759 = vadd.f32 0.0, %v758
  %v760 = vpop.f32.mrb[0].mxu0
  %761 = vmatprep.mubr.bf16.mxu0 0
  %762 = vmatmul.mubr.bf16.gmra.mrb[0].mxu0 %v629
  %v763 = vpop.f32.mrb[0].mxu0
  %v764 = vadd.f32 0.0, %v763
  %v765 = vpop.f32.mrb[0].mxu0
  %v766 = vpop.f32.mrb[0].mxu0
  %v767 = vadd.f32 0.0, %v766
  %v768 = vpop.f32.mrb[0].mxu0
  %769 = vmatprep.mubr.bf16.mxu0 0
  %770 = vmatmul.mubr.bf16.gmra.mrb[0].mxu0 %v632
  %v771 = vpop.f32.mrb[0].mxu0
  %v772 = vadd.f32 0.0, %v771
  %v773 = vpop.f32.mrb[0].mxu0
  %v774 = vpop.f32.mrb[0].mxu0
  %v775 = vadd.f32 0.0, %v774
  %v776 = vpop.f32.mrb[0].mxu0
  %777 = vmatprep.mubr.bf16.mxu0 0
  %778 = vmatmul.mubr.bf16.gmra.mrb[0].mxu0 %v635
  %v779 = vpop.f32.mrb[0].mxu0
  %v780 = vadd.f32 0.0, %v779
  %v781 = vpop.f32.mrb[0].mxu0
  %v782 = vpop.f32.mrb[0].mxu0
  %v783 = vadd.f32 0.0, %v782
  %v784 = vpop.f32.mrb[0].mxu0
  %785 = vmatprep.mubr.bf16.mxu0 0
  %786 = vmatmul.mubr.bf16.gmra.mrb[0].mxu0 %v638
  %v787 = vpop.f32.mrb[0].mxu0
  %v788 = vadd.f32 0.0, %v787
  %v789 = vpop.f32.mrb[0].mxu0
  %v790 = vpop.f32.mrb[0].mxu0
  %v791 = vadd.f32 0.0, %v790
  %v792 = vpop.f32.mrb[0].mxu0
  %793 = vmatprep.mubr.bf16.mxu0 0
  %794 = vmatmul.mubr.bf16.gmra.mrb[0].mxu0 %v641
  %v795 = vpop.f32.mrb[0].mxu0
  %v796 = vadd.f32 0.0, %v795
  %v797 = vpop.f32.mrb[0].mxu0
  %v798 = vpop.f32.mrb[0].mxu0
  %v799 = vadd.f32 0.0, %v798
  %v800 = vpop.f32.mrb[0].mxu0
  %801 = vmatprep.mubr.bf16.mxu0 0
  %802 = vmatmul.mubr.bf16.gmra.mrb[0].mxu0 %v644
  %v803 = vpop.f32.mrb[0].mxu0
  %v804 = vadd.f32 0.0, %v803
  %v805 = vpop.f32.mrb[0].mxu0
  %v806 = vpop.f32.mrb[0].mxu0
  %v807 = vadd.f32 0.0, %v806
  %v808 = vpop.f32.mrb[0].mxu0
  %809 = vmatprep.mubr.bf16.mxu0 0
  %810 = vmatmul.mubr.bf16.gmra.mrb[0].mxu0 %v647
  %v811 = vpop.f32.mrb[0].mxu0
  %v812 = vadd.f32 0.0, %v811
  %v813 = vpop.f32.mrb[0].mxu0
  %v814 = vpop.f32.mrb[0].mxu0
  %v815 = vadd.f32 0.0, %v814
  %v816 = vpop.f32.mrb[0].mxu0
  %817 = vmatprep.mubr.bf16.mxu0 0
  %818 = vmatmul.mubr.bf16.gmra.mrb[0].mxu0 %v650
  %v819 = vpop.f32.mrb[0].mxu0
  %v820 = vadd.f32 0.0, %v819
  %v821 = vpop.f32.mrb[0].mxu0
  %v822 = vpop.f32.mrb[0].mxu0
  %v823 = vadd.f32 0.0, %v822
  %v824 = vpop.f32.mrb[0].mxu0
  %825 = vmatprep.mubr.bf16.mxu0 0
  %826 = vmatmul.mubr.bf16.gmra.mrb[0].mxu0 %v653
  %v827 = vpop.f32.mrb[0].mxu0
  %v828 = vadd.f32 0.0, %v827
  %v829 = vpop.f32.mrb[0].mxu0
  %v830 = vpop.f32.mrb[0].mxu0
  %v831 = vadd.f32 0.0, %v830
  %v832 = vpop.f32.mrb[0].mxu0
  %833 = vmatprep.mubr.bf16.mxu0 0
  %834 = vmatmul.mubr.bf16.gmra.mrb[0].mxu0 %v656
  %v835 = vpop.f32.mrb[0].mxu0
  %v836 = vadd.f32 0.0, %v835
  %v837 = vpop.f32.mrb[0].mxu0
  %v838 = vpop.f32.mrb[0].mxu0
  %v839 = vadd.f32 0.0, %v838
  %v840 = vpop.f32.mrb[0].mxu0
  %841 = vmatprep.mubr.bf16.mxu0 0
  %842 = vmatmul.mubr.bf16.gmra.mrb[0].mxu0 %v659
  %v843 = vpop.f32.mrb[0].mxu0
  %v844 = vadd.f32 0.0, %v843
  %v845 = vpop.f32.mrb[0].mxu0
  %v846 = vpop.f32.mrb[0].mxu0
  %v847 = vadd.f32 0.0, %v846
  %v848 = vpop.f32.mrb[0].mxu0
  %849 = vmatprep.mubr.bf16.mxu0 0
  %850 = vmatmul.mubr.bf16.gmra.mrb[0].mxu0 %v662
  %v851 = vpop.f32.mrb[0].mxu0
  %v852 = vadd.f32 0.0, %v851
  %v853 = vpop.f32.mrb[0].mxu0
  %v854 = vpop.f32.mrb[0].mxu0
  %v855 = vadd.f32 0.0, %v854
  %v856 = vpop.f32.mrb[0].mxu0
  %857 = vmatprep.mubr.bf16.mxu0 0
  %858 = vmatmul.mubr.bf16.gmra.mrb[0].mxu0 %v665
  %v859 = vpop.f32.mrb[0].mxu0
  %v860 = vadd.f32 0.0, %v859
  %v861 = vpop.f32.mrb[0].mxu0
  %v862 = vpop.f32.mrb[0].mxu0
  %v863 = vadd.f32 0.0, %v862
  %v864 = vpop.f32.mrb[0].mxu0
  %865 = vmatprep.mubr.bf16.mxu0 0
  %866 = vmatmul.mubr.bf16.gmra.mrb[0].mxu0 %v668
  %v867 = vpop.f32.mrb[0].mxu0
  %v868 = vadd.f32 0.0, %v867
  %v869 = vpop.f32.mrb[0].mxu0
  %v870 = vpop.f32.mrb[0].mxu0
  %v871 = vadd.f32 0.0, %v870
  %v872 = vpop.f32.mrb[0].mxu0
  %873 = vmatprep.mubr.bf16.mxu0 0
  %874 = vmatmul.mubr.bf16.gmra.mrb[0].mxu0 %v671
  %v875 = vpop.f32.mrb[0].mxu0
  %v876 = vadd.f32 0.0, %v875
  %v877 = vpop.f32.mrb[0].mxu0
  %v878 = vpop.f32.mrb[0].mxu0
  %v879 = vpop.f32.mrb[0].mxu0
  %880 = vdwg.mxu0
  %v881 = vmax.f32 %v282, %v708
  %v882 = vmax.f32 %v285, %v711
  %v883 = vmax.f32 %v290, %v716
  %v884 = vmax.f32 %v293, %v719
  %v885 = vmax.f32 %v298, %v724
  %v886 = vmax.f32 %v301, %v727
  %v887 = vmax.f32 %v306, %v732
  %v888 = vmax.f32 %v309, %v735
  %v889 = vmax.f32 %v314, %v740
  %v890 = vmax.f32 %v317, %v743
  %v891 = vmax.f32 %v322, %v748
  %v892 = vmax.f32 %v325, %v751
  %v893 = vmax.f32 %v330, %v756
  %v894 = vmax.f32 %v333, %v759
  %v895 = vmax.f32 %v338, %v764
  %v896 = vmax.f32 %v341, %v767
  %v897 = vmax.f32 %v346, %v772
  %v898 = vmax.f32 %v349, %v775
  %v899 = vmax.f32 %v354, %v780
  %v900 = vmax.f32 %v357, %v783
  %v901 = vmax.f32 %v362, %v788
  %v902 = vmax.f32 %v365, %v791
  %v903 = vmax.f32 %v370, %v796
  %v904 = vmax.f32 %v373, %v799
  %v905 = vmax.f32 %v378, %v804
  %v906 = vmax.f32 %v381, %v807
  %v907 = vmax.f32 %v386, %v812
  %v908 = vmax.f32 %v389, %v815
  %v909 = vmax.f32 %v394, %v820
  %v910 = vmax.f32 %v397, %v823
  %v911 = vmax.f32 %v402, %v828
  %v912 = vmax.f32 %v405, %v831
  %v913 = vmax.f32 %v410, %v836
  %v914 = vmax.f32 %v413, %v839
  %v915 = vmax.f32 %v418, %v844
  %v916 = vmax.f32 %v421, %v847
  %v917 = vmax.f32 %v426, %v852
  %v918 = vmax.f32 %v429, %v855
  %v919 = vmax.f32 %v434, %v860
  %v920 = vmax.f32 %v437, %v863
  %v921 = vmax.f32 %v442, %v868
  %v922 = vmax.f32 %v445, %v871
  %v923 = vmax.f32 %v450, %v876
  %s924 = scalar_lea.vmem %s0, 344
  %v925 = vld [vmem:[%s924] sm:$0xf]
  %v926 = vld [vmem:[%s924 + $0x4] sm:$0xf]
  %v927 = vld [vmem:[%s924 + $0x8] sm:$0xf]
  %v928 = vld [vmem:[%s924 + $0xc] sm:$0xf]
  %v929 = vld [vmem:[%s924 + $0x10] sm:$0xf]
  %v930 = vld [vmem:[%s924 + $0x14] sm:$0xf]
  %v931 = vld [vmem:[%s924 + $0x18] sm:$0xf]
  %v932 = vld [vmem:[%s924 + $0x1c] sm:$0xf]
  %v933 = vld [vmem:[%s924 + $0x20] sm:$0xf]
  %v934 = vld [vmem:[%s924 + $0x24] sm:$0xf]
  %v935 = vld [vmem:[%s924 + $0x28] sm:$0xf]
  %v936 = vld [vmem:[%s924 + $0x2c] sm:$0xf]
  %v937 = vld [vmem:[%s924 + $0x30] sm:$0xf]
  %v938 = vld [vmem:[%s924 + $0x34] sm:$0xf]
  %v939 = vld [vmem:[%s924 + $0x38] sm:$0xf]
  %v940 = vld [vmem:[%s924 + $0x3c] sm:$0xf]
  %v941 = vld [vmem:[%s924 + $0x40] sm:$0xf]
  %v942 = vld [vmem:[%s924 + $0x44] sm:$0xf]
  %v943 = vld [vmem:[%s924 + $0x48] sm:$0xf]
  %v944 = vld [vmem:[%s924 + $0x4c] sm:$0xf]
  %v945 = vld [vmem:[%s924 + $0x50] sm:$0xf]
  %v946 = vld [vmem:[%s924 + $0x54] sm:$0xf]
  %v947 = vld [vmem:[%s924 + $0x58] sm:$0xf]
  %v948 = vld [vmem:[%s924 + $0x5c] sm:$0xf]
  %v949 = vld [vmem:[%s924 + $0x60] sm:$0xf]
  %v950 = vld [vmem:[%s924 + $0x64] sm:$0xf]
  %v951 = vld [vmem:[%s924 + $0x68] sm:$0xf]
  %v952 = vld [vmem:[%s924 + $0x6c] sm:$0xf]
  %v953 = vld [vmem:[%s924 + $0x70] sm:$0xf]
  %v954 = vld [vmem:[%s924 + $0x74] sm:$0xf]
  %v955 = vld [vmem:[%s924 + $0x78] sm:$0xf]
  %v956 = vld [vmem:[%s924 + $0x7c] sm:$0xf]
  %v957 = vld [vmem:[%s924 + $0x80] sm:$0xf]
  %v958 = vld [vmem:[%s924 + $0x84] sm:$0xf]
  %v959 = vld [vmem:[%s924 + $0x88] sm:$0xf]
  %v960 = vld [vmem:[%s924 + $0x8c] sm:$0xf]
  %v961 = vld [vmem:[%s924 + $0x90] sm:$0xf]
  %v962 = vld [vmem:[%s924 + $0x94] sm:$0xf]
  %v963 = vld [vmem:[%s924 + $0x98] sm:$0xf]
  %v964 = vld [vmem:[%s924 + $0x9c] sm:$0xf]
  %v965 = vld [vmem:[%s924 + $0xa0] sm:$0xf]
  %v966 = vld [vmem:[%s924 + $0xa4] sm:$0xf]
  %v967 = vld [vmem:[%s924 + $0xa8] sm:$0xf]
  %v1011 = vunpack.c.l.b16 %v925
  %v1012 = vunpack.c.l.b16 %v926
  %v1013 = vunpack.c.l.b16 %v927
  %v1014 = vunpack.c.l.b16 %v928
  %v1015 = vunpack.c.l.b16 %v929
  %v1016 = vunpack.c.l.b16 %v930
  %v1017 = vunpack.c.l.b16 %v931
  %v1018 = vunpack.c.l.b16 %v932
  %v1019 = vunpack.c.l.b16 %v933
  %v1020 = vunpack.c.l.b16 %v934
  %v1021 = vunpack.c.l.b16 %v935
  %v1022 = vunpack.c.l.b16 %v936
  %v1023 = vunpack.c.l.b16 %v937
  %v1024 = vunpack.c.l.b16 %v938
  %v1025 = vunpack.c.l.b16 %v939
  %v1026 = vunpack.c.l.b16 %v940
  %v1027 = vunpack.c.l.b16 %v941
  %v1028 = vunpack.c.l.b16 %v942
  %v1029 = vunpack.c.l.b16 %v943
  %v1030 = vunpack.c.l.b16 %v944
  %v1031 = vunpack.c.l.b16 %v945
  %v1032 = vunpack.c.l.b16 %v946
  %v1033 = vunpack.c.l.b16 %v947
  %v1034 = vunpack.c.l.b16 %v948
  %v1035 = vunpack.c.l.b16 %v949
  %v1036 = vunpack.c.l.b16 %v950
  %v1037 = vunpack.c.l.b16 %v951
  %v1038 = vunpack.c.l.b16 %v952
  %v1039 = vunpack.c.l.b16 %v953
  %v1040 = vunpack.c.l.b16 %v954
  %v1041 = vunpack.c.l.b16 %v955
  %v1042 = vunpack.c.l.b16 %v956
  %v1043 = vunpack.c.l.b16 %v957
  %v1044 = vunpack.c.l.b16 %v958
  %v1045 = vunpack.c.l.b16 %v959
  %v1046 = vunpack.c.l.b16 %v960
  %v1047 = vunpack.c.l.b16 %v961
  %v1048 = vunpack.c.l.b16 %v962
  %v1049 = vunpack.c.l.b16 %v963
  %v1050 = vunpack.c.l.b16 %v964
  %v1051 = vunpack.c.l.b16 %v965
  %v1052 = vunpack.c.l.b16 %v966
  %v1053 = vunpack.c.l.b16 %v967
  %v1054 = vpack.c.b16 %v1012, %v1011
  %v1055 = vpack.c.b16 %v1014, %v1013
  %v1056 = vpack.c.b16 %v1016, %v1015
  %v1057 = vpack.c.b16 %v1018, %v1017
  %v1058 = vpack.c.b16 %v1020, %v1019
  %v1059 = vpack.c.b16 %v1022, %v1021
  %v1060 = vpack.c.b16 %v1024, %v1023
  %v1061 = vpack.c.b16 %v1026, %v1025
  %v1062 = vpack.c.b16 %v1028, %v1027
  %v1063 = vpack.c.b16 %v1030, %v1029
  %v1064 = vpack.c.b16 %v1032, %v1031
  %v1065 = vpack.c.b16 %v1034, %v1033
  %v1066 = vpack.c.b16 %v1036, %v1035
  %v1067 = vpack.c.b16 %v1038, %v1037
  %v1068 = vpack.c.b16 %v1040, %v1039
  %v1069 = vpack.c.b16 %v1042, %v1041
  %v1070 = vpack.c.b16 %v1044, %v1043
  %v1071 = vpack.c.b16 %v1046, %v1045
  %v1072 = vpack.c.b16 %v1048, %v1047
  %v1073 = vpack.c.b16 %v1050, %v1049
  %v1074 = vpack.c.b16 %v1052, %v1051
  %v1075 = vpack.c.b16 %v1053, %v1053
  %v1077 = vsel %vm173, %v1054, 0
  %v1080 = vsel %vm173, %v1055, 0
  %v1083 = vsel %vm173, %v1056, 0
  %v1086 = vsel %vm173, %v1057, 0
  %v1089 = vsel %vm173, %v1058, 0
  %v1092 = vsel %vm173, %v1059, 0
  %v1095 = vsel %vm173, %v1060, 0
  %v1098 = vsel %vm173, %v1061, 0
  %v1101 = vsel %vm173, %v1062, 0
  %v1104 = vsel %vm173, %v1063, 0
  %v1107 = vsel %vm173, %v1064, 0
  %v1110 = vsel %vm173, %v1065, 0
  %v1113 = vsel %vm173, %v1066, 0
  %v1116 = vsel %vm173, %v1067, 0
  %v1119 = vsel %vm173, %v1068, 0
  %v1122 = vsel %vm173, %v1069, 0
  %v1125 = vsel %vm173, %v1070, 0
  %v1128 = vsel %vm173, %v1071, 0
  %v1131 = vsel %vm173, %v1072, 0
  %v1134 = vsel %vm173, %v1073, 0
  %v1137 = vsel %vm173, %v1074, 0
  %v1140 = vsel %vm173, %v1075, 0
  %1142 = vmatprep.subr.bf16.mxu0 0
  %1143 = vmatpush1.bf16.msra.mxu0 %v245
  %1144 = vmatprep.subr.bf16.mxu0 0
  %1145 = vmatpush1.bf16.msra.mxu0 0
  %1146 = vmatprep.subr.bf16.mxu0 0
  %1147 = vmatpush1.bf16.msra.mxu0 0
  %1148 = vmatprep.subr.bf16.mxu0 0
  %1149 = vmatpush1.bf16.msra.mxu0 0
  %1150 = vmatprep.subr.bf16.mxu0 0
  %1151 = vmatpush1.bf16.msra.mxu0 0
  %1152 = vmatprep.subr.bf16.mxu0 0
  %1153 = vmatpush1.bf16.msra.mxu0 0
  %1154 = vmatprep.subr.bf16.mxu0 0
  %1155 = vmatpush1.bf16.msra.mxu0 0
  %1156 = vmatprep.subr.bf16.mxu0 0
  %1157 = vmatpush1.bf16.msra.mxu0 0
  %1158 = vmatprep.subr.bf16.mxu0 0
  %1159 = vmatpush1.bf16.msra.mxu0 0
  %1160 = vmatprep.subr.bf16.mxu0 0
  %1161 = vmatpush1.bf16.msra.mxu0 0
  %1162 = vmatprep.subr.bf16.mxu0 0
  %1163 = vmatpush1.bf16.msra.mxu0 0
  %1164 = vmatprep.subr.bf16.mxu0 0
  %1165 = vmatpush1.bf16.msra.mxu0 0
  %1166 = vmatprep.subr.bf16.mxu0 0
  %1167 = vmatpush1.bf16.msra.mxu0 0
  %1168 = vmatprep.subr.bf16.mxu0 0
  %1169 = vmatpush1.bf16.msra.mxu0 0
  %1170 = vmatprep.subr.bf16.mxu0 0
  %1171 = vmatpush1.bf16.msra.mxu0 0
  %1172 = vmatprep.subr.bf16.mxu0 0
  %1173 = vmatpush1.bf16.msra.mxu0 0
  %1174 = vmatprep.mubr.bf16.mxu0 0
  %1175 = vmatmul.mubr.bf16.gmra.mrb[0].mxu0 %v1077
  %v1176 = vpop.f32.mrb[0].mxu0
  %v1177 = vadd.f32 0.0, %v1176
  %v1178 = vpop.f32.mrb[0].mxu0
  %v1179 = vpop.f32.mrb[0].mxu0
  %v1180 = vadd.f32 0.0, %v1179
  %v1181 = vpop.f32.mrb[0].mxu0
  %1182 = vmatprep.mubr.bf16.mxu0 0
  %1183 = vmatmul.mubr.bf16.gmra.mrb[0].mxu0 %v1080
  %v1184 = vpop.f32.mrb[0].mxu0
  %v1185 = vadd.f32 0.0, %v1184
  %v1186 = vpop.f32.mrb[0].mxu0
  %v1187 = vpop.f32.mrb[0].mxu0
  %v1188 = vadd.f32 0.0, %v1187
  %v1189 = vpop.f32.mrb[0].mxu0
  %1190 = vmatprep.mubr.bf16.mxu0 0
  %1191 = vmatmul.mubr.bf16.gmra.mrb[0].mxu0 %v1083
  %v1192 = vpop.f32.mrb[0].mxu0
  %v1193 = vadd.f32 0.0, %v1192
  %v1194 = vpop.f32.mrb[0].mxu0
  %v1195 = vpop.f32.mrb[0].mxu0
  %v1196 = vadd.f32 0.0, %v1195
  %v1197 = vpop.f32.mrb[0].mxu0
  %1198 = vmatprep.mubr.bf16.mxu0 0
  %1199 = vmatmul.mubr.bf16.gmra.mrb[0].mxu0 %v1086
  %v1200 = vpop.f32.mrb[0].mxu0
  %v1201 = vadd.f32 0.0, %v1200
  %v1202 = vpop.f32.mrb[0].mxu0
  %v1203 = vpop.f32.mrb[0].mxu0
  %v1204 = vadd.f32 0.0, %v1203
  %v1205 = vpop.f32.mrb[0].mxu0
  %1206 = vmatprep.mubr.bf16.mxu0 0
  %1207 = vmatmul.mubr.bf16.gmra.mrb[0].mxu0 %v1089
  %v1208 = vpop.f32.mrb[0].mxu0
  %v1209 = vadd.f32 0.0, %v1208
  %v1210 = vpop.f32.mrb[0].mxu0
  %v1211 = vpop.f32.mrb[0].mxu0
  %v1212 = vadd.f32 0.0, %v1211
  %v1213 = vpop.f32.mrb[0].mxu0
  %1214 = vmatprep.mubr.bf16.mxu0 0
  %1215 = vmatmul.mubr.bf16.gmra.mrb[0].mxu0 %v1092
  %v1216 = vpop.f32.mrb[0].mxu0
  %v1217 = vadd.f32 0.0, %v1216
  %v1218 = vpop.f32.mrb[0].mxu0
  %v1219 = vpop.f32.mrb[0].mxu0
  %v1220 = vadd.f32 0.0, %v1219
  %v1221 = vpop.f32.mrb[0].mxu0
  %1222 = vmatprep.mubr.bf16.mxu0 0
  %1223 = vmatmul.mubr.bf16.gmra.mrb[0].mxu0 %v1095
  %v1224 = vpop.f32.mrb[0].mxu0
  %v1225 = vadd.f32 0.0, %v1224
  %v1226 = vpop.f32.mrb[0].mxu0
  %v1227 = vpop.f32.mrb[0].mxu0
  %v1228 = vadd.f32 0.0, %v1227
  %v1229 = vpop.f32.mrb[0].mxu0
  %1230 = vmatprep.mubr.bf16.mxu0 0
  %1231 = vmatmul.mubr.bf16.gmra.mrb[0].mxu0 %v1098
  %v1232 = vpop.f32.mrb[0].mxu0
  %v1233 = vadd.f32 0.0, %v1232
  %v1234 = vpop.f32.mrb[0].mxu0
  %v1235 = vpop.f32.mrb[0].mxu0
  %v1236 = vadd.f32 0.0, %v1235
  %v1237 = vpop.f32.mrb[0].mxu0
  %1238 = vmatprep.mubr.bf16.mxu0 0
  %1239 = vmatmul.mubr.bf16.gmra.mrb[0].mxu0 %v1101
  %v1240 = vpop.f32.mrb[0].mxu0
  %v1241 = vadd.f32 0.0, %v1240
  %v1242 = vpop.f32.mrb[0].mxu0
  %v1243 = vpop.f32.mrb[0].mxu0
  %v1244 = vadd.f32 0.0, %v1243
  %v1245 = vpop.f32.mrb[0].mxu0
  %1246 = vmatprep.mubr.bf16.mxu0 0
  %1247 = vmatmul.mubr.bf16.gmra.mrb[0].mxu0 %v1104
  %v1248 = vpop.f32.mrb[0].mxu0
  %v1249 = vadd.f32 0.0, %v1248
  %v1250 = vpop.f32.mrb[0].mxu0
  %v1251 = vpop.f32.mrb[0].mxu0
  %v1252 = vadd.f32 0.0, %v1251
  %v1253 = vpop.f32.mrb[0].mxu0
  %1254 = vmatprep.mubr.bf16.mxu0 0
  %1255 = vmatmul.mubr.bf16.gmra.mrb[0].mxu0 %v1107
  %v1256 = vpop.f32.mrb[0].mxu0
  %v1257 = vadd.f32 0.0, %v1256
  %v1258 = vpop.f32.mrb[0].mxu0
  %v1259 = vpop.f32.mrb[0].mxu0
  %v1260 = vadd.f32 0.0, %v1259
  %v1261 = vpop.f32.mrb[0].mxu0
  %1262 = vmatprep.mubr.bf16.mxu0 0
  %1263 = vmatmul.mubr.bf16.gmra.mrb[0].mxu0 %v1110
  %v1264 = vpop.f32.mrb[0].mxu0
  %v1265 = vadd.f32 0.0, %v1264
  %v1266 = vpop.f32.mrb[0].mxu0
  %v1267 = vpop.f32.mrb[0].mxu0
  %v1268 = vadd.f32 0.0, %v1267
  %v1269 = vpop.f32.mrb[0].mxu0
  %1270 = vmatprep.mubr.bf16.mxu0 0
  %1271 = vmatmul.mubr.bf16.gmra.mrb[0].mxu0 %v1113
  %v1272 = vpop.f32.mrb[0].mxu0
  %v1273 = vadd.f32 0.0, %v1272
  %v1274 = vpop.f32.mrb[0].mxu0
  %v1275 = vpop.f32.mrb[0].mxu0
  %v1276 = vadd.f32 0.0, %v1275
  %v1277 = vpop.f32.mrb[0].mxu0
  %1278 = vmatprep.mubr.bf16.mxu0 0
  %1279 = vmatmul.mubr.bf16.gmra.mrb[0].mxu0 %v1116
  %v1280 = vpop.f32.mrb[0].mxu0
  %v1281 = vadd.f32 0.0, %v1280
  %v1282 = vpop.f32.mrb[0].mxu0
  %v1283 = vpop.f32.mrb[0].mxu0
  %v1284 = vadd.f32 0.0, %v1283
  %v1285 = vpop.f32.mrb[0].mxu0
  %1286 = vmatprep.mubr.bf16.mxu0 0
  %1287 = vmatmul.mubr.bf16.gmra.mrb[0].mxu0 %v1119
  %v1288 = vpop.f32.mrb[0].mxu0
  %v1289 = vadd.f32 0.0, %v1288
  %v1290 = vpop.f32.mrb[0].mxu0
  %v1291 = vpop.f32.mrb[0].mxu0
  %v1292 = vadd.f32 0.0, %v1291
  %v1293 = vpop.f32.mrb[0].mxu0
  %1294 = vmatprep.mubr.bf16.mxu0 0
  %1295 = vmatmul.mubr.bf16.gmra.mrb[0].mxu0 %v1122
  %v1296 = vpop.f32.mrb[0].mxu0
  %v1297 = vadd.f32 0.0, %v1296
  %v1298 = vpop.f32.mrb[0].mxu0
  %v1299 = vpop.f32.mrb[0].mxu0
  %v1300 = vadd.f32 0.0, %v1299
  %v1301 = vpop.f32.mrb[0].mxu0
  %1302 = vmatprep.mubr.bf16.mxu0 0
  %1303 = vmatmul.mubr.bf16.gmra.mrb[0].mxu0 %v1125
  %v1304 = vpop.f32.mrb[0].mxu0
  %v1305 = vadd.f32 0.0, %v1304
  %v1306 = vpop.f32.mrb[0].mxu0
  %v1307 = vpop.f32.mrb[0].mxu0
  %v1308 = vadd.f32 0.0, %v1307
  %v1309 = vpop.f32.mrb[0].mxu0
  %1310 = vmatprep.mubr.bf16.mxu0 0
  %1311 = vmatmul.mubr.bf16.gmra.mrb[0].mxu0 %v1128
  %v1312 = vpop.f32.mrb[0].mxu0
  %v1313 = vadd.f32 0.0, %v1312
  %v1314 = vpop.f32.mrb[0].mxu0
  %v1315 = vpop.f32.mrb[0].mxu0
  %v1316 = vadd.f32 0.0, %v1315
  %v1317 = vpop.f32.mrb[0].mxu0
  %1318 = vmatprep.mubr.bf16.mxu0 0
  %1319 = vmatmul.mubr.bf16.gmra.mrb[0].mxu0 %v1131
  %v1320 = vpop.f32.mrb[0].mxu0
  %v1321 = vadd.f32 0.0, %v1320
  %v1322 = vpop.f32.mrb[0].mxu0
  %v1323 = vpop.f32.mrb[0].mxu0
  %v1324 = vadd.f32 0.0, %v1323
  %v1325 = vpop.f32.mrb[0].mxu0
  %1326 = vmatprep.mubr.bf16.mxu0 0
  %1327 = vmatmul.mubr.bf16.gmra.mrb[0].mxu0 %v1134
  %v1328 = vpop.f32.mrb[0].mxu0
  %v1329 = vadd.f32 0.0, %v1328
  %v1330 = vpop.f32.mrb[0].mxu0
  %v1331 = vpop.f32.mrb[0].mxu0
  %v1332 = vadd.f32 0.0, %v1331
  %v1333 = vpop.f32.mrb[0].mxu0
  %1334 = vmatprep.mubr.bf16.mxu0 0
  %1335 = vmatmul.mubr.bf16.gmra.mrb[0].mxu0 %v1137
  %v1336 = vpop.f32.mrb[0].mxu0
  %v1337 = vadd.f32 0.0, %v1336
  %v1338 = vpop.f32.mrb[0].mxu0
  %v1339 = vpop.f32.mrb[0].mxu0
  %v1340 = vadd.f32 0.0, %v1339
  %v1341 = vpop.f32.mrb[0].mxu0
  %1342 = vmatprep.mubr.bf16.mxu0 0
  %1343 = vmatmul.mubr.bf16.gmra.mrb[0].mxu0 %v1140
  %v1344 = vpop.f32.mrb[0].mxu0
  %v1345 = vadd.f32 0.0, %v1344
  %v1346 = vpop.f32.mrb[0].mxu0
  %v1347 = vpop.f32.mrb[0].mxu0
  %v1348 = vpop.f32.mrb[0].mxu0
  %1349 = vdwg.mxu0
  %v1350 = vmax.f32 %v881, %v1177
  %v1351 = vmax.f32 %v882, %v1180
  %v1352 = vmax.f32 %v883, %v1185
  %v1353 = vmax.f32 %v884, %v1188
  %v1354 = vmax.f32 %v885, %v1193
  %v1355 = vmax.f32 %v886, %v1196
  %v1356 = vmax.f32 %v887, %v1201
  %v1357 = vmax.f32 %v888, %v1204
  %v1358 = vmax.f32 %v889, %v1209
  %v1359 = vmax.f32 %v890, %v1212
  %v1360 = vmax.f32 %v891, %v1217
  %v1361 = vmax.f32 %v892, %v1220
  %v1362 = vmax.f32 %v893, %v1225
  %v1363 = vmax.f32 %v894, %v1228
  %v1364 = vmax.f32 %v895, %v1233
  %v1365 = vmax.f32 %v896, %v1236
  %v1366 = vmax.f32 %v897, %v1241
  %v1367 = vmax.f32 %v898, %v1244
  %v1368 = vmax.f32 %v899, %v1249
  %v1369 = vmax.f32 %v900, %v1252
  %v1370 = vmax.f32 %v901, %v1257
  %v1371 = vmax.f32 %v902, %v1260
  %v1372 = vmax.f32 %v903, %v1265
  %v1373 = vmax.f32 %v904, %v1268
  %v1374 = vmax.f32 %v905, %v1273
  %v1375 = vmax.f32 %v906, %v1276
  %v1376 = vmax.f32 %v907, %v1281
  %v1377 = vmax.f32 %v908, %v1284
  %v1378 = vmax.f32 %v909, %v1289
  %v1379 = vmax.f32 %v910, %v1292
  %v1380 = vmax.f32 %v911, %v1297
  %v1381 = vmax.f32 %v912, %v1300
  %v1382 = vmax.f32 %v913, %v1305
  %v1383 = vmax.f32 %v914, %v1308
  %v1384 = vmax.f32 %v915, %v1313
  %v1385 = vmax.f32 %v916, %v1316
  %v1386 = vmax.f32 %v917, %v1321
  %v1387 = vmax.f32 %v918, %v1324
  %v1388 = vmax.f32 %v919, %v1329
  %v1389 = vmax.f32 %v920, %v1332
  %v1390 = vmax.f32 %v921, %v1337
  %v1391 = vmax.f32 %v922, %v1340
  %v1392 = vmax.f32 %v923, %v1345
  %s1393 = scalar_lea.vmem %s0, 516
  %v1394 = vld [vmem:[%s1393] sm:$0xf]
  %v1395 = vld [vmem:[%s1393 + $0x4] sm:$0xf]
  %v1396 = vld [vmem:[%s1393 + $0x8] sm:$0xf]
  %v1397 = vld [vmem:[%s1393 + $0xc] sm:$0xf]
  %v1398 = vld [vmem:[%s1393 + $0x10] sm:$0xf]
  %v1399 = vld [vmem:[%s1393 + $0x14] sm:$0xf]
  %v1400 = vld [vmem:[%s1393 + $0x18] sm:$0xf]
  %v1401 = vld [vmem:[%s1393 + $0x1c] sm:$0xf]
  %v1402 = vld [vmem:[%s1393 + $0x20] sm:$0xf]
  %v1403 = vld [vmem:[%s1393 + $0x24] sm:$0xf]
  %v1404 = vld [vmem:[%s1393 + $0x28] sm:$0xf]
  %v1405 = vld [vmem:[%s1393 + $0x2c] sm:$0xf]
  %v1406 = vld [vmem:[%s1393 + $0x30] sm:$0xf]
  %v1407 = vld [vmem:[%s1393 + $0x34] sm:$0xf]
  %v1408 = vld [vmem:[%s1393 + $0x38] sm:$0xf]
  %v1409 = vld [vmem:[%s1393 + $0x3c] sm:$0xf]
  %v1410 = vld [vmem:[%s1393 + $0x40] sm:$0xf]
  %v1411 = vld [vmem:[%s1393 + $0x44] sm:$0xf]
  %v1412 = vld [vmem:[%s1393 + $0x48] sm:$0xf]
  %v1413 = vld [vmem:[%s1393 + $0x4c] sm:$0xf]
  %v1414 = vld [vmem:[%s1393 + $0x50] sm:$0xf]
  %v1415 = vld [vmem:[%s1393 + $0x54] sm:$0xf]
  %v1416 = vld [vmem:[%s1393 + $0x58] sm:$0xf]
  %v1417 = vld [vmem:[%s1393 + $0x5c] sm:$0xf]
  %v1418 = vld [vmem:[%s1393 + $0x60] sm:$0xf]
  %v1419 = vld [vmem:[%s1393 + $0x64] sm:$0xf]
  %v1420 = vld [vmem:[%s1393 + $0x68] sm:$0xf]
  %v1421 = vld [vmem:[%s1393 + $0x6c] sm:$0xf]
  %v1422 = vld [vmem:[%s1393 + $0x70] sm:$0xf]
  %v1423 = vld [vmem:[%s1393 + $0x74] sm:$0xf]
  %v1424 = vld [vmem:[%s1393 + $0x78] sm:$0xf]
  %v1425 = vld [vmem:[%s1393 + $0x7c] sm:$0xf]
  %v1426 = vld [vmem:[%s1393 + $0x80] sm:$0xf]
  %v1427 = vld [vmem:[%s1393 + $0x84] sm:$0xf]
  %v1428 = vld [vmem:[%s1393 + $0x88] sm:$0xf]
  %v1429 = vld [vmem:[%s1393 + $0x8c] sm:$0xf]
  %v1430 = vld [vmem:[%s1393 + $0x90] sm:$0xf]
  %v1431 = vld [vmem:[%s1393 + $0x94] sm:$0xf]
  %v1432 = vld [vmem:[%s1393 + $0x98] sm:$0xf]
  %v1433 = vld [vmem:[%s1393 + $0x9c] sm:$0xf]
  %v1434 = vld [vmem:[%s1393 + $0xa0] sm:$0xf]
  %v1435 = vld [vmem:[%s1393 + $0xa4] sm:$0xf]
  %v1436 = vld [vmem:[%s1393 + $0xa8] sm:$0xf]
  %v1480 = vunpack.c.l.b16 %v1394
  %v1481 = vunpack.c.l.b16 %v1395
  %v1482 = vunpack.c.l.b16 %v1396
  %v1483 = vunpack.c.l.b16 %v1397
  %v1484 = vunpack.c.l.b16 %v1398
  %v1485 = vunpack.c.l.b16 %v1399
  %v1486 = vunpack.c.l.b16 %v1400
  %v1487 = vunpack.c.l.b16 %v1401
  %v1488 = vunpack.c.l.b16 %v1402
  %v1489 = vunpack.c.l.b16 %v1403
  %v1490 = vunpack.c.l.b16 %v1404
  %v1491 = vunpack.c.l.b16 %v1405
  %v1492 = vunpack.c.l.b16 %v1406
  %v1493 = vunpack.c.l.b16 %v1407
  %v1494 = vunpack.c.l.b16 %v1408
  %v1495 = vunpack.c.l.b16 %v1409
  %v1496 = vunpack.c.l.b16 %v1410
  %v1497 = vunpack.c.l.b16 %v1411
  %v1498 = vunpack.c.l.b16 %v1412
  %v1499 = vunpack.c.l.b16 %v1413
  %v1500 = vunpack.c.l.b16 %v1414
  %v1501 = vunpack.c.l.b16 %v1415
  %v1502 = vunpack.c.l.b16 %v1416
  %v1503 = vunpack.c.l.b16 %v1417
  %v1504 = vunpack.c.l.b16 %v1418
  %v1505 = vunpack.c.l.b16 %v1419
  %v1506 = vunpack.c.l.b16 %v1420
  %v1507 = vunpack.c.l.b16 %v1421
  %v1508 = vunpack.c.l.b16 %v1422
  %v1509 = vunpack.c.l.b16 %v1423
  %v1510 = vunpack.c.l.b16 %v1424
  %v1511 = vunpack.c.l.b16 %v1425
  %v1512 = vunpack.c.l.b16 %v1426
  %v1513 = vunpack.c.l.b16 %v1427
  %v1514 = vunpack.c.l.b16 %v1428
  %v1515 = vunpack.c.l.b16 %v1429
  %v1516 = vunpack.c.l.b16 %v1430
  %v1517 = vunpack.c.l.b16 %v1431
  %v1518 = vunpack.c.l.b16 %v1432
  %v1519 = vunpack.c.l.b16 %v1433
  %v1520 = vunpack.c.l.b16 %v1434
  %v1521 = vunpack.c.l.b16 %v1435
  %v1522 = vunpack.c.l.b16 %v1436
  %v1523 = vpack.c.b16 %v1481, %v1480
  %v1524 = vpack.c.b16 %v1483, %v1482
  %v1525 = vpack.c.b16 %v1485, %v1484
  %v1526 = vpack.c.b16 %v1487, %v1486
  %v1527 = vpack.c.b16 %v1489, %v1488
  %v1528 = vpack.c.b16 %v1491, %v1490
  %v1529 = vpack.c.b16 %v1493, %v1492
  %v1530 = vpack.c.b16 %v1495, %v1494
  %v1531 = vpack.c.b16 %v1497, %v1496
  %v1532 = vpack.c.b16 %v1499, %v1498
  %v1533 = vpack.c.b16 %v1501, %v1500
  %v1534 = vpack.c.b16 %v1503, %v1502
  %v1535 = vpack.c.b16 %v1505, %v1504
  %v1536 = vpack.c.b16 %v1507, %v1506
  %v1537 = vpack.c.b16 %v1509, %v1508
  %v1538 = vpack.c.b16 %v1511, %v1510
  %v1539 = vpack.c.b16 %v1513, %v1512
  %v1540 = vpack.c.b16 %v1515, %v1514
  %v1541 = vpack.c.b16 %v1517, %v1516
  %v1542 = vpack.c.b16 %v1519, %v1518
  %v1543 = vpack.c.b16 %v1521, %v1520
  %v1544 = vpack.c.b16 %v1522, %v1522
  %v1546 = vsel %vm173, %v1523, 0
  %v1549 = vsel %vm173, %v1524, 0
  %v1552 = vsel %vm173, %v1525, 0
  %v1555 = vsel %vm173, %v1526, 0
  %v1558 = vsel %vm173, %v1527, 0
  %v1561 = vsel %vm173, %v1528, 0
  %v1564 = vsel %vm173, %v1529, 0
  %v1567 = vsel %vm173, %v1530, 0
  %v1570 = vsel %vm173, %v1531, 0
  %v1573 = vsel %vm173, %v1532, 0
  %v1576 = vsel %vm173, %v1533, 0
  %v1579 = vsel %vm173, %v1534, 0
  %v1582 = vsel %vm173, %v1535, 0
  %v1585 = vsel %vm173, %v1536, 0
  %v1588 = vsel %vm173, %v1537, 0
  %v1591 = vsel %vm173, %v1538, 0
  %v1594 = vsel %vm173, %v1539, 0
  %v1597 = vsel %vm173, %v1540, 0
  %v1600 = vsel %vm173, %v1541, 0
  %v1603 = vsel %vm173, %v1542, 0
  %v1606 = vsel %vm173, %v1543, 0
  %v1609 = vsel %vm173, %v1544, 0
  %1611 = vmatprep.subr.bf16.mxu0 0
  %1612 = vmatpush1.bf16.msra.mxu0 %v245
  %1613 = vmatprep.subr.bf16.mxu0 0
  %1614 = vmatpush1.bf16.msra.mxu0 0
  %1615 = vmatprep.subr.bf16.mxu0 0
  %1616 = vmatpush1.bf16.msra.mxu0 0
  %1617 = vmatprep.subr.bf16.mxu0 0
  %1618 = vmatpush1.bf16.msra.mxu0 0
  %1619 = vmatprep.subr.bf16.mxu0 0
  %1620 = vmatpush1.bf16.msra.mxu0 0
  %1621 = vmatprep.subr.bf16.mxu0 0
  %1622 = vmatpush1.bf16.msra.mxu0 0
  %1623 = vmatprep.subr.bf16.mxu0 0
  %1624 = vmatpush1.bf16.msra.mxu0 0
  %1625 = vmatprep.subr.bf16.mxu0 0
  %1626 = vmatpush1.bf16.msra.mxu0 0
  %1627 = vmatprep.subr.bf16.mxu0 0
  %1628 = vmatpush1.bf16.msra.mxu0 0
  %1629 = vmatprep.subr.bf16.mxu0 0
  %1630 = vmatpush1.bf16.msra.mxu0 0
  %1631 = vmatprep.subr.bf16.mxu0 0
  %1632 = vmatpush1.bf16.msra.mxu0 0
  %1633 = vmatprep.subr.bf16.mxu0 0
  %1634 = vmatpush1.bf16.msra.mxu0 0
  %1635 = vmatprep.subr.bf16.mxu0 0
  %1636 = vmatpush1.bf16.msra.mxu0 0
  %1637 = vmatprep.subr.bf16.mxu0 0
  %1638 = vmatpush1.bf16.msra.mxu0 0
  %1639 = vmatprep.subr.bf16.mxu0 0
  %1640 = vmatpush1.bf16.msra.mxu0 0
  %1641 = vmatprep.subr.bf16.mxu0 0
  %1642 = vmatpush1.bf16.msra.mxu0 0
  %1643 = vmatprep.mubr.bf16.mxu0 0
  %1644 = vmatmul.mubr.bf16.gmra.mrb[0].mxu0 %v1546
  %v1645 = vpop.f32.mrb[0].mxu0
  %v1646 = vadd.f32 0.0, %v1645
  %v1647 = vpop.f32.mrb[0].mxu0
  %v1648 = vpop.f32.mrb[0].mxu0
  %v1649 = vadd.f32 0.0, %v1648
  %v1650 = vpop.f32.mrb[0].mxu0
  %1651 = vmatprep.mubr.bf16.mxu0 0
  %1652 = vmatmul.mubr.bf16.gmra.mrb[0].mxu0 %v1549
  %v1653 = vpop.f32.mrb[0].mxu0
  %v1654 = vadd.f32 0.0, %v1653
  %v1655 = vpop.f32.mrb[0].mxu0
  %v1656 = vpop.f32.mrb[0].mxu0
  %v1657 = vadd.f32 0.0, %v1656
  %v1658 = vpop.f32.mrb[0].mxu0
  %1659 = vmatprep.mubr.bf16.mxu0 0
  %1660 = vmatmul.mubr.bf16.gmra.mrb[0].mxu0 %v1552
  %v1661 = vpop.f32.mrb[0].mxu0
  %v1662 = vadd.f32 0.0, %v1661
  %v1663 = vpop.f32.mrb[0].mxu0
  %v1664 = vpop.f32.mrb[0].mxu0
  %v1665 = vadd.f32 0.0, %v1664
  %v1666 = vpop.f32.mrb[0].mxu0
  %1667 = vmatprep.mubr.bf16.mxu0 0
  %1668 = vmatmul.mubr.bf16.gmra.mrb[0].mxu0 %v1555
  %v1669 = vpop.f32.mrb[0].mxu0
  %v1670 = vadd.f32 0.0, %v1669
  %v1671 = vpop.f32.mrb[0].mxu0
  %v1672 = vpop.f32.mrb[0].mxu0
  %v1673 = vadd.f32 0.0, %v1672
  %v1674 = vpop.f32.mrb[0].mxu0
  %1675 = vmatprep.mubr.bf16.mxu0 0
  %1676 = vmatmul.mubr.bf16.gmra.mrb[0].mxu0 %v1558
  %v1677 = vpop.f32.mrb[0].mxu0
  %v1678 = vadd.f32 0.0, %v1677
  %v1679 = vpop.f32.mrb[0].mxu0
  %v1680 = vpop.f32.mrb[0].mxu0
  %v1681 = vadd.f32 0.0, %v1680
  %v1682 = vpop.f32.mrb[0].mxu0
  %1683 = vmatprep.mubr.bf16.mxu0 0
  %1684 = vmatmul.mubr.bf16.gmra.mrb[0].mxu0 %v1561
  %v1685 = vpop.f32.mrb[0].mxu0
  %v1686 = vadd.f32 0.0, %v1685
  %v1687 = vpop.f32.mrb[0].mxu0
  %v1688 = vpop.f32.mrb[0].mxu0
  %v1689 = vadd.f32 0.0, %v1688
  %v1690 = vpop.f32.mrb[0].mxu0
  %1691 = vmatprep.mubr.bf16.mxu0 0
  %1692 = vmatmul.mubr.bf16.gmra.mrb[0].mxu0 %v1564
  %v1693 = vpop.f32.mrb[0].mxu0
  %v1694 = vadd.f32 0.0, %v1693
  %v1695 = vpop.f32.mrb[0].mxu0
  %v1696 = vpop.f32.mrb[0].mxu0
  %v1697 = vadd.f32 0.0, %v1696
  %v1698 = vpop.f32.mrb[0].mxu0
  %1699 = vmatprep.mubr.bf16.mxu0 0
  %1700 = vmatmul.mubr.bf16.gmra.mrb[0].mxu0 %v1567
  %v1701 = vpop.f32.mrb[0].mxu0
  %v1702 = vadd.f32 0.0, %v1701
  %v1703 = vpop.f32.mrb[0].mxu0
  %v1704 = vpop.f32.mrb[0].mxu0
  %v1705 = vadd.f32 0.0, %v1704
  %v1706 = vpop.f32.mrb[0].mxu0
  %1707 = vmatprep.mubr.bf16.mxu0 0
  %1708 = vmatmul.mubr.bf16.gmra.mrb[0].mxu0 %v1570
  %v1709 = vpop.f32.mrb[0].mxu0
  %v1710 = vadd.f32 0.0, %v1709
  %v1711 = vpop.f32.mrb[0].mxu0
  %v1712 = vpop.f32.mrb[0].mxu0
  %v1713 = vadd.f32 0.0, %v1712
  %v1714 = vpop.f32.mrb[0].mxu0
  %1715 = vmatprep.mubr.bf16.mxu0 0
  %1716 = vmatmul.mubr.bf16.gmra.mrb[0].mxu0 %v1573
  %v1717 = vpop.f32.mrb[0].mxu0
  %v1718 = vadd.f32 0.0, %v1717
  %v1719 = vpop.f32.mrb[0].mxu0
  %v1720 = vpop.f32.mrb[0].mxu0
  %v1721 = vadd.f32 0.0, %v1720
  %v1722 = vpop.f32.mrb[0].mxu0
  %1723 = vmatprep.mubr.bf16.mxu0 0
  %1724 = vmatmul.mubr.bf16.gmra.mrb[0].mxu0 %v1576
  %v1725 = vpop.f32.mrb[0].mxu0
  %v1726 = vadd.f32 0.0, %v1725
  %v1727 = vpop.f32.mrb[0].mxu0
  %v1728 = vpop.f32.mrb[0].mxu0
  %v1729 = vadd.f32 0.0, %v1728
  %v1730 = vpop.f32.mrb[0].mxu0
  %1731 = vmatprep.mubr.bf16.mxu0 0
  %1732 = vmatmul.mubr.bf16.gmra.mrb[0].mxu0 %v1579
  %v1733 = vpop.f32.mrb[0].mxu0
  %v1734 = vadd.f32 0.0, %v1733
  %v1735 = vpop.f32.mrb[0].mxu0
  %v1736 = vpop.f32.mrb[0].mxu0
  %v1737 = vadd.f32 0.0, %v1736
  %v1738 = vpop.f32.mrb[0].mxu0
  %1739 = vmatprep.mubr.bf16.mxu0 0
  %1740 = vmatmul.mubr.bf16.gmra.mrb[0].mxu0 %v1582
  %v1741 = vpop.f32.mrb[0].mxu0
  %v1742 = vadd.f32 0.0, %v1741
  %v1743 = vpop.f32.mrb[0].mxu0
  %v1744 = vpop.f32.mrb[0].mxu0
  %v1745 = vadd.f32 0.0, %v1744
  %v1746 = vpop.f32.mrb[0].mxu0
  %1747 = vmatprep.mubr.bf16.mxu0 0
  %1748 = vmatmul.mubr.bf16.gmra.mrb[0].mxu0 %v1585
  %v1749 = vpop.f32.mrb[0].mxu0
  %v1750 = vadd.f32 0.0, %v1749
  %v1751 = vpop.f32.mrb[0].mxu0
  %v1752 = vpop.f32.mrb[0].mxu0
  %v1753 = vadd.f32 0.0, %v1752
  %v1754 = vpop.f32.mrb[0].mxu0
  %1755 = vmatprep.mubr.bf16.mxu0 0
  %1756 = vmatmul.mubr.bf16.gmra.mrb[0].mxu0 %v1588
  %v1757 = vpop.f32.mrb[0].mxu0
  %v1758 = vadd.f32 0.0, %v1757
  %v1759 = vpop.f32.mrb[0].mxu0
  %v1760 = vpop.f32.mrb[0].mxu0
  %v1761 = vadd.f32 0.0, %v1760
  %v1762 = vpop.f32.mrb[0].mxu0
  %1763 = vmatprep.mubr.bf16.mxu0 0
  %1764 = vmatmul.mubr.bf16.gmra.mrb[0].mxu0 %v1591
  %v1765 = vpop.f32.mrb[0].mxu0
  %v1766 = vadd.f32 0.0, %v1765
  %v1767 = vpop.f32.mrb[0].mxu0
  %v1768 = vpop.f32.mrb[0].mxu0
  %v1769 = vadd.f32 0.0, %v1768
  %v1770 = vpop.f32.mrb[0].mxu0
  %1771 = vmatprep.mubr.bf16.mxu0 0
  %1772 = vmatmul.mubr.bf16.gmra.mrb[0].mxu0 %v1594
  %v1773 = vpop.f32.mrb[0].mxu0
  %v1774 = vadd.f32 0.0, %v1773
  %v1775 = vpop.f32.mrb[0].mxu0
  %v1776 = vpop.f32.mrb[0].mxu0
  %v1777 = vadd.f32 0.0, %v1776
  %v1778 = vpop.f32.mrb[0].mxu0
  %1779 = vmatprep.mubr.bf16.mxu0 0
  %1780 = vmatmul.mubr.bf16.gmra.mrb[0].mxu0 %v1597
  %v1781 = vpop.f32.mrb[0].mxu0
  %v1782 = vadd.f32 0.0, %v1781
  %v1783 = vpop.f32.mrb[0].mxu0
  %v1784 = vpop.f32.mrb[0].mxu0
  %v1785 = vadd.f32 0.0, %v1784
  %v1786 = vpop.f32.mrb[0].mxu0
  %1787 = vmatprep.mubr.bf16.mxu0 0
  %1788 = vmatmul.mubr.bf16.gmra.mrb[0].mxu0 %v1600
  %v1789 = vpop.f32.mrb[0].mxu0
  %v1790 = vadd.f32 0.0, %v1789
  %v1791 = vpop.f32.mrb[0].mxu0
  %v1792 = vpop.f32.mrb[0].mxu0
  %v1793 = vadd.f32 0.0, %v1792
  %v1794 = vpop.f32.mrb[0].mxu0
  %1795 = vmatprep.mubr.bf16.mxu0 0
  %1796 = vmatmul.mubr.bf16.gmra.mrb[0].mxu0 %v1603
  %v1797 = vpop.f32.mrb[0].mxu0
  %v1798 = vadd.f32 0.0, %v1797
  %v1799 = vpop.f32.mrb[0].mxu0
  %v1800 = vpop.f32.mrb[0].mxu0
  %v1801 = vadd.f32 0.0, %v1800
  %v1802 = vpop.f32.mrb[0].mxu0
  %1803 = vmatprep.mubr.bf16.mxu0 0
  %1804 = vmatmul.mubr.bf16.gmra.mrb[0].mxu0 %v1606
  %v1805 = vpop.f32.mrb[0].mxu0
  %v1806 = vadd.f32 0.0, %v1805
  %v1807 = vpop.f32.mrb[0].mxu0
  %v1808 = vpop.f32.mrb[0].mxu0
  %v1809 = vadd.f32 0.0, %v1808
  %v1810 = vpop.f32.mrb[0].mxu0
  %1811 = vmatprep.mubr.bf16.mxu0 0
  %1812 = vmatmul.mubr.bf16.gmra.mrb[0].mxu0 %v1609
  %v1813 = vpop.f32.mrb[0].mxu0
  %v1814 = vadd.f32 0.0, %v1813
  %v1815 = vpop.f32.mrb[0].mxu0
  %v1816 = vpop.f32.mrb[0].mxu0
  %v1817 = vpop.f32.mrb[0].mxu0
  %1818 = vdwg.mxu0
  %v1819 = vmax.f32 %v1350, %v1646
  %v1820 = vmax.f32 %v1351, %v1649
  %v1821 = vmax.f32 %v1352, %v1654
  %v1822 = vmax.f32 %v1353, %v1657
  %v1823 = vmax.f32 %v1354, %v1662
  %v1824 = vmax.f32 %v1355, %v1665
  %v1825 = vmax.f32 %v1356, %v1670
  %v1826 = vmax.f32 %v1357, %v1673
  %v1827 = vmax.f32 %v1358, %v1678
  %v1828 = vmax.f32 %v1359, %v1681
  %v1829 = vmax.f32 %v1360, %v1686
  %v1830 = vmax.f32 %v1361, %v1689
  %v1831 = vmax.f32 %v1362, %v1694
  %v1832 = vmax.f32 %v1363, %v1697
  %v1833 = vmax.f32 %v1364, %v1702
  %v1834 = vmax.f32 %v1365, %v1705
  %v1835 = vmax.f32 %v1366, %v1710
  %v1836 = vmax.f32 %v1367, %v1713
  %v1837 = vmax.f32 %v1368, %v1718
  %v1838 = vmax.f32 %v1369, %v1721
  %v1839 = vmax.f32 %v1370, %v1726
  %v1840 = vmax.f32 %v1371, %v1729
  %v1841 = vmax.f32 %v1372, %v1734
  %v1842 = vmax.f32 %v1373, %v1737
  %v1843 = vmax.f32 %v1374, %v1742
  %v1844 = vmax.f32 %v1375, %v1745
  %v1845 = vmax.f32 %v1376, %v1750
  %v1846 = vmax.f32 %v1377, %v1753
  %v1847 = vmax.f32 %v1378, %v1758
  %v1848 = vmax.f32 %v1379, %v1761
  %v1849 = vmax.f32 %v1380, %v1766
  %v1850 = vmax.f32 %v1381, %v1769
  %v1851 = vmax.f32 %v1382, %v1774
  %v1852 = vmax.f32 %v1383, %v1777
  %v1853 = vmax.f32 %v1384, %v1782
  %v1854 = vmax.f32 %v1385, %v1785
  %v1855 = vmax.f32 %v1386, %v1790
  %v1856 = vmax.f32 %v1387, %v1793
  %v1857 = vmax.f32 %v1388, %v1798
  %v1858 = vmax.f32 %v1389, %v1801
  %v1859 = vmax.f32 %v1390, %v1806
  %v1860 = vmax.f32 %v1391, %v1809
  %v1861 = vmax.f32 %v1392, %v1814
  %v1862 = vld [vmem:[%s2] sm:$0x1]
  %v1864 = vlaneseq
  %v1865 = vshrl.u32 %v1864, 7
  %v1866 = vsub.s32 0, %v1865
  %v1867 = vrot.slane %v1862, %v1866
  %v1869 = vadd.f32 %v1819, %v1867
  %v1870 = vadd.f32 %v1820, %v1867
  %v1871 = vadd.f32 %v1821, %v1867
  %v1872 = vadd.f32 %v1822, %v1867
  %v1873 = vadd.f32 %v1823, %v1867
  %v1874 = vadd.f32 %v1824, %v1867
  %v1875 = vadd.f32 %v1825, %v1867
  %v1876 = vadd.f32 %v1826, %v1867
  %v1877 = vadd.f32 %v1827, %v1867
  %v1878 = vadd.f32 %v1828, %v1867
  %v1879 = vadd.f32 %v1829, %v1867
  %v1880 = vadd.f32 %v1830, %v1867
  %v1881 = vadd.f32 %v1831, %v1867
  %v1882 = vadd.f32 %v1832, %v1867
  %v1883 = vadd.f32 %v1833, %v1867
  %v1884 = vadd.f32 %v1834, %v1867
  %v1885 = vadd.f32 %v1835, %v1867
  %v1886 = vadd.f32 %v1836, %v1867
  %v1887 = vadd.f32 %v1837, %v1867
  %v1888 = vadd.f32 %v1838, %v1867
  %v1889 = vadd.f32 %v1839, %v1867
  %v1890 = vadd.f32 %v1840, %v1867
  %v1891 = vadd.f32 %v1841, %v1867
  %v1892 = vadd.f32 %v1842, %v1867
  %v1893 = vadd.f32 %v1843, %v1867
  %v1894 = vadd.f32 %v1844, %v1867
  %v1895 = vadd.f32 %v1845, %v1867
  %v1896 = vadd.f32 %v1846, %v1867
  %v1897 = vadd.f32 %v1847, %v1867
  %v1898 = vadd.f32 %v1848, %v1867
  %v1899 = vadd.f32 %v1849, %v1867
  %v1900 = vadd.f32 %v1850, %v1867
  %v1901 = vadd.f32 %v1851, %v1867
  %v1902 = vadd.f32 %v1852, %v1867
  %v1903 = vadd.f32 %v1853, %v1867
  %v1904 = vadd.f32 %v1854, %v1867
  %v1905 = vadd.f32 %v1855, %v1867
  %v1906 = vadd.f32 %v1856, %v1867
  %v1907 = vadd.f32 %v1857, %v1867
  %v1908 = vadd.f32 %v1858, %v1867
  %v1909 = vadd.f32 %v1859, %v1867
  %v1910 = vadd.f32 %v1860, %v1867
  %v1911 = vadd.f32 %v1861, %v1867
  %v1912 = vmax.f32 %v1869, 0.0
  %v1913 = vmax.f32 %v1870, 0.0
  %v1914 = vmax.f32 %v1871, 0.0
  %v1915 = vmax.f32 %v1872, 0.0
  %v1916 = vmax.f32 %v1873, 0.0
  %v1917 = vmax.f32 %v1874, 0.0
  %v1918 = vmax.f32 %v1875, 0.0
  %v1919 = vmax.f32 %v1876, 0.0
  %v1920 = vmax.f32 %v1877, 0.0
  %v1921 = vmax.f32 %v1878, 0.0
  %v1922 = vmax.f32 %v1879, 0.0
  %v1923 = vmax.f32 %v1880, 0.0
  %v1924 = vmax.f32 %v1881, 0.0
  %v1925 = vmax.f32 %v1882, 0.0
  %v1926 = vmax.f32 %v1883, 0.0
  %v1927 = vmax.f32 %v1884, 0.0
  %v1928 = vmax.f32 %v1885, 0.0
  %v1929 = vmax.f32 %v1886, 0.0
  %v1930 = vmax.f32 %v1887, 0.0
  %v1931 = vmax.f32 %v1888, 0.0
  %v1932 = vmax.f32 %v1889, 0.0
  %v1933 = vmax.f32 %v1890, 0.0
  %v1934 = vmax.f32 %v1891, 0.0
  %v1935 = vmax.f32 %v1892, 0.0
  %v1936 = vmax.f32 %v1893, 0.0
  %v1937 = vmax.f32 %v1894, 0.0
  %v1938 = vmax.f32 %v1895, 0.0
  %v1939 = vmax.f32 %v1896, 0.0
  %v1940 = vmax.f32 %v1897, 0.0
  %v1941 = vmax.f32 %v1898, 0.0
  %v1942 = vmax.f32 %v1899, 0.0
  %v1943 = vmax.f32 %v1900, 0.0
  %v1944 = vmax.f32 %v1901, 0.0
  %v1945 = vmax.f32 %v1902, 0.0
  %v1946 = vmax.f32 %v1903, 0.0
  %v1947 = vmax.f32 %v1904, 0.0
  %v1948 = vmax.f32 %v1905, 0.0
  %v1949 = vmax.f32 %v1906, 0.0
  %v1950 = vmax.f32 %v1907, 0.0
  %v1951 = vmax.f32 %v1908, 0.0
  %v1952 = vmax.f32 %v1909, 0.0
  %v1953 = vmax.f32 %v1910, 0.0
  %v1954 = vmax.f32 %v1911, 0.0
  %v1955 = vpack.c.bf16 %v1913, %v1912
  %v1956 = vpack.c.bf16 %v1915, %v1914
  %v1957 = vpack.c.bf16 %v1917, %v1916
  %v1958 = vpack.c.bf16 %v1919, %v1918
  %v1959 = vpack.c.bf16 %v1921, %v1920
  %v1960 = vpack.c.bf16 %v1923, %v1922
  %v1961 = vpack.c.bf16 %v1925, %v1924
  %v1962 = vpack.c.bf16 %v1927, %v1926
  %v1963 = vpack.c.bf16 %v1929, %v1928
  %v1964 = vpack.c.bf16 %v1931, %v1930
  %v1965 = vpack.c.bf16 %v1933, %v1932
  %v1966 = vpack.c.bf16 %v1935, %v1934
  %v1967 = vpack.c.bf16 %v1937, %v1936
  %v1968 = vpack.c.bf16 %v1939, %v1938
  %v1969 = vpack.c.bf16 %v1941, %v1940
  %v1970 = vpack.c.bf16 %v1943, %v1942
  %v1971 = vpack.c.bf16 %v1945, %v1944
  %v1972 = vpack.c.bf16 %v1947, %v1946
  %v1973 = vpack.c.bf16 %v1949, %v1948
  %v1974 = vpack.c.bf16 %v1951, %v1950
  %v1975 = vpack.c.bf16 %v1953, %v1952
  %v1976 = vpack.c.bf16 %v1954, %v1954
  %v1999 = vunpack.c.l.b16 %v1955
  %v2000 = vunpack.c.h.b16 %v1955
  %v2001 = vunpack.c.l.b16 %v1956
  %v2002 = vunpack.c.h.b16 %v1956
  %v2003 = vunpack.c.l.b16 %v1957
  %v2004 = vunpack.c.h.b16 %v1957
  %v2005 = vunpack.c.l.b16 %v1958
  %v2006 = vunpack.c.h.b16 %v1958
  %v2007 = vunpack.c.l.b16 %v1959
  %v2008 = vunpack.c.h.b16 %v1959
  %v2009 = vunpack.c.l.b16 %v1960
  %v2010 = vunpack.c.h.b16 %v1960
  %v2011 = vunpack.c.l.b16 %v1961
  %v2012 = vunpack.c.h.b16 %v1961
  %v2013 = vunpack.c.l.b16 %v1962
  %v2014 = vunpack.c.h.b16 %v1962
  %v2015 = vunpack.c.l.b16 %v1963
  %v2016 = vunpack.c.h.b16 %v1963
  %v2017 = vunpack.c.l.b16 %v1964
  %v2018 = vunpack.c.h.b16 %v1964
  %v2019 = vunpack.c.l.b16 %v1965
  %v2020 = vunpack.c.h.b16 %v1965
  %v2021 = vunpack.c.l.b16 %v1966
  %v2022 = vunpack.c.h.b16 %v1966
  %v2023 = vunpack.c.l.b16 %v1967
  %v2024 = vunpack.c.h.b16 %v1967
  %v2025 = vunpack.c.l.b16 %v1968
  %v2026 = vunpack.c.h.b16 %v1968
  %v2027 = vunpack.c.l.b16 %v1969
  %v2028 = vunpack.c.h.b16 %v1969
  %v2029 = vunpack.c.l.b16 %v1970
  %v2030 = vunpack.c.h.b16 %v1970
  %v2031 = vunpack.c.l.b16 %v1971
  %v2032 = vunpack.c.h.b16 %v1971
  %v2033 = vunpack.c.l.b16 %v1972
  %v2034 = vunpack.c.h.b16 %v1972
  %v2035 = vunpack.c.l.b16 %v1973
  %v2036 = vunpack.c.h.b16 %v1973
  %v2037 = vunpack.c.l.b16 %v1974
  %v2038 = vunpack.c.h.b16 %v1974
  %v2039 = vunpack.c.l.b16 %v1975
  %v2040 = vunpack.c.h.b16 %v1975
  %v2041 = vunpack.c.l.b16 %v1976
  %v2042 = vpack.c.b16 %v1999, %v1999
  %v2043 = vpack.c.b16 %v2000, %v2000
  %v2044 = vpack.c.b16 %v2001, %v2001
  %v2045 = vpack.c.b16 %v2002, %v2002
  %v2046 = vpack.c.b16 %v2003, %v2003
  %v2047 = vpack.c.b16 %v2004, %v2004
  %v2048 = vpack.c.b16 %v2005, %v2005
  %v2049 = vpack.c.b16 %v2006, %v2006
  %v2050 = vpack.c.b16 %v2007, %v2007
  %v2051 = vpack.c.b16 %v2008, %v2008
  %v2052 = vpack.c.b16 %v2009, %v2009
  %v2053 = vpack.c.b16 %v2010, %v2010
  %v2054 = vpack.c.b16 %v2011, %v2011
  %v2055 = vpack.c.b16 %v2012, %v2012
  %v2056 = vpack.c.b16 %v2013, %v2013
  %v2057 = vpack.c.b16 %v2014, %v2014
  %v2058 = vpack.c.b16 %v2015, %v2015
  %v2059 = vpack.c.b16 %v2016, %v2016
  %v2060 = vpack.c.b16 %v2017, %v2017
  %v2061 = vpack.c.b16 %v2018, %v2018
  %v2062 = vpack.c.b16 %v2019, %v2019
  %v2063 = vpack.c.b16 %v2020, %v2020
  %v2064 = vpack.c.b16 %v2021, %v2021
  %v2065 = vpack.c.b16 %v2022, %v2022
  %v2066 = vpack.c.b16 %v2023, %v2023
  %v2067 = vpack.c.b16 %v2024, %v2024
  %v2068 = vpack.c.b16 %v2025, %v2025
  %v2069 = vpack.c.b16 %v2026, %v2026
  %v2070 = vpack.c.b16 %v2027, %v2027
  %v2071 = vpack.c.b16 %v2028, %v2028
  %v2072 = vpack.c.b16 %v2029, %v2029
  %v2073 = vpack.c.b16 %v2030, %v2030
  %v2074 = vpack.c.b16 %v2031, %v2031
  %v2075 = vpack.c.b16 %v2032, %v2032
  %v2076 = vpack.c.b16 %v2033, %v2033
  %v2077 = vpack.c.b16 %v2034, %v2034
  %v2078 = vpack.c.b16 %v2035, %v2035
  %v2079 = vpack.c.b16 %v2036, %v2036
  %v2080 = vpack.c.b16 %v2037, %v2037
  %v2081 = vpack.c.b16 %v2038, %v2038
  %v2082 = vpack.c.b16 %v2039, %v2039
  %v2083 = vpack.c.b16 %v2040, %v2040
  %v2084 = vpack.c.b16 %v2041, %v2041
  %vm2128 = vcmask 257024
  %2129 = vst.msk [vmem:[%s3] sm:$0xf] %vm2128, %v2042
  %2130 = vst.msk [vmem:[%s3 + $0x4] sm:$0xf] %vm2128, %v2043
  %2131 = vst.msk [vmem:[%s3 + $0x8] sm:$0xf] %vm2128, %v2044
  %2132 = vst.msk [vmem:[%s3 + $0xc] sm:$0xf] %vm2128, %v2045
  %2133 = vst.msk [vmem:[%s3 + $0x10] sm:$0xf] %vm2128, %v2046
  %2134 = vst.msk [vmem:[%s3 + $0x14] sm:$0xf] %vm2128, %v2047
  %2135 = vst.msk [vmem:[%s3 + $0x18] sm:$0xf] %vm2128, %v2048
  %2136 = vst.msk [vmem:[%s3 + $0x1c] sm:$0xf] %vm2128, %v2049
  %2137 = vst.msk [vmem:[%s3 + $0x20] sm:$0xf] %vm2128, %v2050
  %2138 = vst.msk [vmem:[%s3 + $0x24] sm:$0xf] %vm2128, %v2051
  %2139 = vst.msk [vmem:[%s3 + $0x28] sm:$0xf] %vm2128, %v2052
  %2140 = vst.msk [vmem:[%s3 + $0x2c] sm:$0xf] %vm2128, %v2053
  %2141 = vst.msk [vmem:[%s3 + $0x30] sm:$0xf] %vm2128, %v2054
  %2142 = vst.msk [vmem:[%s3 + $0x34] sm:$0xf] %vm2128, %v2055
  %2143 = vst.msk [vmem:[%s3 + $0x38] sm:$0xf] %vm2128, %v2056
  %2144 = vst.msk [vmem:[%s3 + $0x3c] sm:$0xf] %vm2128, %v2057
  %2145 = vst.msk [vmem:[%s3 + $0x40] sm:$0xf] %vm2128, %v2058
  %2146 = vst.msk [vmem:[%s3 + $0x44] sm:$0xf] %vm2128, %v2059
  %2147 = vst.msk [vmem:[%s3 + $0x48] sm:$0xf] %vm2128, %v2060
  %2148 = vst.msk [vmem:[%s3 + $0x4c] sm:$0xf] %vm2128, %v2061
  %2149 = vst.msk [vmem:[%s3 + $0x50] sm:$0xf] %vm2128, %v2062
  %2150 = vst.msk [vmem:[%s3 + $0x54] sm:$0xf] %vm2128, %v2063
  %2151 = vst.msk [vmem:[%s3 + $0x58] sm:$0xf] %vm2128, %v2064
  %2152 = vst.msk [vmem:[%s3 + $0x5c] sm:$0xf] %vm2128, %v2065
  %2153 = vst.msk [vmem:[%s3 + $0x60] sm:$0xf] %vm2128, %v2066
  %2154 = vst.msk [vmem:[%s3 + $0x64] sm:$0xf] %vm2128, %v2067
  %2155 = vst.msk [vmem:[%s3 + $0x68] sm:$0xf] %vm2128, %v2068
  %2156 = vst.msk [vmem:[%s3 + $0x6c] sm:$0xf] %vm2128, %v2069
  %2157 = vst.msk [vmem:[%s3 + $0x70] sm:$0xf] %vm2128, %v2070
  %2158 = vst.msk [vmem:[%s3 + $0x74] sm:$0xf] %vm2128, %v2071
  %2159 = vst.msk [vmem:[%s3 + $0x78] sm:$0xf] %vm2128, %v2072
  %2160 = vst.msk [vmem:[%s3 + $0x7c] sm:$0xf] %vm2128, %v2073
  %2161 = vst.msk [vmem:[%s3 + $0x80] sm:$0xf] %vm2128, %v2074
  %2162 = vst.msk [vmem:[%s3 + $0x84] sm:$0xf] %vm2128, %v2075
  %2163 = vst.msk [vmem:[%s3 + $0x88] sm:$0xf] %vm2128, %v2076
  %2164 = vst.msk [vmem:[%s3 + $0x8c] sm:$0xf] %vm2128, %v2077
  %2165 = vst.msk [vmem:[%s3 + $0x90] sm:$0xf] %vm2128, %v2078
  %2166 = vst.msk [vmem:[%s3 + $0x94] sm:$0xf] %vm2128, %v2079
  %2167 = vst.msk [vmem:[%s3 + $0x98] sm:$0xf] %vm2128, %v2080
  %2168 = vst.msk [vmem:[%s3 + $0x9c] sm:$0xf] %vm2128, %v2081
  %2169 = vst.msk [vmem:[%s3 + $0xa0] sm:$0xf] %vm2128, %v2082
  %2170 = vst.msk [vmem:[%s3 + $0xa4] sm:$0xf] %vm2128, %v2083
  %2171 = vst.msk [vmem:[%s3 + $0xa8] sm:$0xf] %vm2128, %v2084
  // Predicated region
  $region14: #{forward.3} parent=0 // pred_check
    _
  $region15: #{forward.3} parent=0 // pred_check_branch
    %2173 = sbr.rel (0) target = $region17
  $region16: #{forward.3} parent=0 // pred_region
    _
  $region17: #{forward.3} parent=0 // pred_fallthru
    _
  // Predicated region
  $region18: #{forward.3} parent=0 // pred_check
    _
  $region19: #{forward.3} parent=0 // pred_check_branch
    %2175 = sbr.rel (0) target = $region21
  $region20: #{forward.3} parent=0 // pred_region
    _
  $region21: #{forward.3} parent=0 // pred_fallthru
    _

// kernel: forward.4
$region0: #{forward.4}
  #allocation0 [shape = 'u32[]', space=smem, size = 0x4, offset = 0x4, fixed_abs, tag = 'smem constant byte address 0x4 - core index']
  #allocation1 [shape = 'u32[144,128]{1,0:T(1,128)}', space=vmem, size = 0x12000, scoped, tag = 'internal scratch']
  %s0 = inlined_call_operand.vmem [shape: bf16[4,56,288], index: 0, kind: input, shape index: {}]
  %s1 = inlined_call_operand.vmem [shape: bf16[288,64], index: 1, kind: input, shape index: {}]
  %s2 = inlined_call_operand.vmem [shape: f32[1,64], index: 2, kind: input, shape index: {}]
  %s3 = inlined_call_operand.vmem [shape: bf16[56,64], index: 3, kind: output, shape index: {}]
  %s4 = sld [smem:[#allocation0]]
  $region22: #{forward.4} parent=0
    _
  %s6 = ssub.s32 1, %s4
  %s7 = scalar_select 0, %s6, %s4
  // Predicated region
  $region2: #{forward.4} parent=0 // pred_check
    _
  $region3: #{forward.4} parent=0 // pred_check_branch
    %9 = sbr.rel (0) target = $region5
  $region4: #{forward.4} parent=0 // pred_region
    _
  $region5: #{forward.4} parent=0 // pred_fallthru
    _
  // Predicated region
  $region6: #{forward.4} parent=0 // pred_check
    _
  $region7: #{forward.4} parent=0 // pred_check_branch
    %11 = sbr.rel (0) target = $region9
  $region8: #{forward.4} parent=0 // pred_region
    _
  $region9: #{forward.4} parent=0 // pred_fallthru
    _
  // Predicated region
  $region10: #{forward.4} parent=0 // pred_check
    _
  $region11: #{forward.4} parent=0 // pred_check_branch
    %13 = sbr.rel (0) target = $region13
  $region12: #{forward.4} parent=0 // pred_region
    _
  $region13: #{forward.4} parent=0 // pred_fallthru
    _
  %v15 = vld [vmem:[%s0] sm:$0xff]
  %v16 = vld [vmem:[%s0 + $0x8] sm:$0xf]
  %v17 = vld [vmem:[%s0 + $0xc] sm:$0xff]
  %v18 = vld [vmem:[%s0 + $0x14] sm:$0xf]
  %v19 = vld [vmem:[%s0 + $0x18] sm:$0xff]
  %v20 = vld [vmem:[%s0 + $0x20] sm:$0xf]
  %v21 = vld [vmem:[%s0 + $0x24] sm:$0xff]
  %v22 = vld [vmem:[%s0 + $0x2c] sm:$0xf]
  %v23 = vld [vmem:[%s0 + $0x30] sm:$0xff]
  %v24 = vld [vmem:[%s0 + $0x38] sm:$0xf]
  %v25 = vld [vmem:[%s0 + $0x3c] sm:$0xff]
  %v26 = vld [vmem:[%s0 + $0x44] sm:$0xf]
  %v27 = vld [vmem:[%s0 + $0x48] sm:$0xff]
  %v28 = vld [vmem:[%s0 + $0x50] sm:$0xf]
  %v29 = vld [vmem:[%s1] sm:$0xf]
  %v30 = vld [vmem:[%s1 + $0x4] sm:$0xf]
  %v31 = vld [vmem:[%s1 + $0x8] sm:$0xf]
  %v32 = vld [vmem:[%s1 + $0xc] sm:$0xf]
  %v33 = vld [vmem:[%s1 + $0x10] sm:$0xf]
  %v34 = vld [vmem:[%s1 + $0x14] sm:$0xf]
  %v35 = vld [vmem:[%s1 + $0x18] sm:$0xf]
  %v36 = vld [vmem:[%s1 + $0x1c] sm:$0xf]
  %v37 = vld [vmem:[%s1 + $0x20] sm:$0xf]
  %v38 = vld [vmem:[%s1 + $0x24] sm:$0xf]
  %v39 = vld [vmem:[%s1 + $0x28] sm:$0xf]
  %v40 = vld [vmem:[%s1 + $0x2c] sm:$0xf]
  %v41 = vld [vmem:[%s1 + $0x30] sm:$0xf]
  %v42 = vld [vmem:[%s1 + $0x34] sm:$0xf]
  %v43 = vld [vmem:[%s1 + $0x38] sm:$0xf]
  %v44 = vld [vmem:[%s1 + $0x3c] sm:$0xf]
  %v45 = vld [vmem:[%s1 + $0x40] sm:$0xf]
  %v46 = vld [vmem:[%s1 + $0x44] sm:$0xf]
  %v47 = vld [vmem:[%s1 + $0x48] sm:$0xf]
  %v48 = vld [vmem:[%s1 + $0x4c] sm:$0xf]
  %v49 = vld [vmem:[%s1 + $0x50] sm:$0xf]
  %v50 = vld [vmem:[%s1 + $0x54] sm:$0xf]
  %v51 = vld [vmem:[%s1 + $0x58] sm:$0xf]
  %v52 = vld [vmem:[%s1 + $0x5c] sm:$0xf]
  %v53 = vld [vmem:[%s1 + $0x60] sm:$0xf]
  %v54 = vld [vmem:[%s1 + $0x64] sm:$0xf]
  %v55 = vld [vmem:[%s1 + $0x68] sm:$0xf]
  %v56 = vld [vmem:[%s1 + $0x6c] sm:$0xf]
  %v57 = vld [vmem:[%s1 + $0x70] sm:$0xf]
  %v58 = vld [vmem:[%s1 + $0x74] sm:$0xf]
  %v59 = vld [vmem:[%s1 + $0x78] sm:$0xf]
  %v60 = vld [vmem:[%s1 + $0x7c] sm:$0xf]
  %v61 = vld [vmem:[%s1 + $0x80] sm:$0xf]
  %v62 = vld [vmem:[%s1 + $0x84] sm:$0xf]
  %v63 = vld [vmem:[%s1 + $0x88] sm:$0xf]
  %v64 = vld [vmem:[%s1 + $0x8c] sm:$0xf]
  %v79 = vunpack.c.l.b16 %v15
  %v80 = vunpack.c.h.b16 %v15
  %v81 = vunpack.c.l.b16 %v16
  %v82 = vunpack.c.l.b16 %v17
  %v83 = vunpack.c.h.b16 %v17
  %v84 = vunpack.c.l.b16 %v18
  %v85 = vunpack.c.l.b16 %v19
  %v86 = vunpack.c.h.b16 %v19
  %v87 = vunpack.c.l.b16 %v20
  %v88 = vunpack.c.l.b16 %v21
  %v89 = vunpack.c.h.b16 %v21
  %v90 = vunpack.c.l.b16 %v22
  %v91 = vunpack.c.l.b16 %v23
  %v92 = vunpack.c.h.b16 %v23
  %v93 = vunpack.c.l.b16 %v24
  %v94 = vunpack.c.l.b16 %v25
  %v95 = vunpack.c.h.b16 %v25
  %v96 = vunpack.c.l.b16 %v26
  %v97 = vunpack.c.l.b16 %v27
  %v98 = vunpack.c.h.b16 %v27
  %v99 = vunpack.c.l.b16 %v28
  %v100 = vpack.c.b16 %v82, %v79
  %v101 = vpack.c.b16 %v83, %v80
  %v102 = vpack.c.b16 %v84, %v81
  %v103 = vpack.c.b16 %v88, %v85
  %v104 = vpack.c.b16 %v89, %v86
  %v105 = vpack.c.b16 %v90, %v87
  %v106 = vpack.c.b16 %v94, %v91
  %v107 = vpack.c.b16 %v95, %v92
  %v108 = vpack.c.b16 %v96, %v93
  %v109 = vpack.c.b16 %v97, %v97
  %v110 = vpack.c.b16 %v98, %v98
  %v111 = vpack.c.b16 %v99, %v99
  %v156 = vunpack.c.l.b16 %v29
  %v157 = vunpack.c.l.b16 %v30
  %v158 = vunpack.c.l.b16 %v31
  %v159 = vunpack.c.l.b16 %v32
  %v160 = vunpack.c.l.b16 %v33
  %v161 = vunpack.c.l.b16 %v34
  %v162 = vunpack.c.l.b16 %v35
  %v163 = vunpack.c.l.b16 %v36
  %v164 = vunpack.c.l.b16 %v37
  %v165 = vunpack.c.l.b16 %v38
  %v166 = vunpack.c.l.b16 %v39
  %v167 = vunpack.c.l.b16 %v40
  %v168 = vunpack.c.l.b16 %v41
  %v169 = vunpack.c.l.b16 %v42
  %v170 = vunpack.c.l.b16 %v43
  %v171 = vunpack.c.l.b16 %v44
  %v172 = vunpack.c.l.b16 %v45
  %v173 = vunpack.c.l.b16 %v46
  %v174 = vunpack.c.l.b16 %v47
  %v175 = vunpack.c.l.b16 %v48
  %v176 = vunpack.c.l.b16 %v49
  %v177 = vunpack.c.l.b16 %v50
  %v178 = vunpack.c.l.b16 %v51
  %v179 = vunpack.c.l.b16 %v52
  %v180 = vunpack.c.l.b16 %v53
  %v181 = vunpack.c.l.b16 %v54
  %v182 = vunpack.c.l.b16 %v55
  %v183 = vunpack.c.l.b16 %v56
  %v184 = vunpack.c.l.b16 %v57
  %v185 = vunpack.c.l.b16 %v58
  %v186 = vunpack.c.l.b16 %v59
  %v187 = vunpack.c.l.b16 %v60
  %v188 = vunpack.c.l.b16 %v61
  %v189 = vunpack.c.l.b16 %v62
  %v190 = vunpack.c.l.b16 %v63
  %v191 = vunpack.c.l.b16 %v64
  %v192 = vpack.c.b16 %v157, %v156
  %v193 = vpack.c.b16 %v159, %v158
  %v194 = vpack.c.b16 %v161, %v160
  %v195 = vpack.c.b16 %v163, %v162
  %v196 = vpack.c.b16 %v165, %v164
  %v197 = vpack.c.b16 %v167, %v166
  %v198 = vpack.c.b16 %v169, %v168
  %v199 = vpack.c.b16 %v171, %v170
  %v200 = vpack.c.b16 %v173, %v172
  %v201 = vpack.c.b16 %v175, %v174
  %v202 = vpack.c.b16 %v177, %v176
  %v203 = vpack.c.b16 %v179, %v178
  %v204 = vpack.c.b16 %v181, %v180
  %v205 = vpack.c.b16 %v183, %v182
  %v206 = vpack.c.b16 %v185, %v184
  %v207 = vpack.c.b16 %v187, %v186
  %v208 = vpack.c.b16 %v189, %v188
  %v209 = vpack.c.b16 %v191, %v190
  %vm228 = vcmask 261120
  %v230 = vsel %vm228, %v102, 0
  %v233 = vsel %vm228, %v105, 0
  %v236 = vsel %vm228, %v108, 0
  %v239 = vsel %vm228, %v111, 0
  %241 = vmatprep.subr.bf16.mxu0 0
  %242 = vmatpush1.bf16.msra.mxu0 %v192
  %243 = vmatprep.subr.bf16.mxu0 0
  %244 = vmatpush1.bf16.msra.mxu0 %v193
  %245 = vmatprep.subr.bf16.mxu0 0
  %246 = vmatpush1.bf16.msra.mxu0 %v194
  %247 = vmatprep.subr.bf16.mxu0 0
  %248 = vmatpush1.bf16.msra.mxu0 %v195
  %249 = vmatprep.subr.bf16.mxu0 0
  %250 = vmatpush1.bf16.msra.mxu0 %v196
  %251 = vmatprep.subr.bf16.mxu0 0
  %252 = vmatpush1.bf16.msra.mxu0 %v197
  %253 = vmatprep.subr.bf16.mxu0 0
  %254 = vmatpush1.bf16.msra.mxu0 %v198
  %255 = vmatprep.subr.bf16.mxu0 0
  %256 = vmatpush1.bf16.msra.mxu0 %v199
  %257 = vmatprep.subr.bf16.mxu0 0
  %258 = vmatpush1.bf16.msra.mxu0 %v200
  %259 = vmatprep.subr.bf16.mxu0 0
  %260 = vmatpush1.bf16.msra.mxu0 %v201
  %261 = vmatprep.subr.bf16.mxu0 0
  %262 = vmatpush1.bf16.msra.mxu0 %v202
  %263 = vmatprep.subr.bf16.mxu0 0
  %264 = vmatpush1.bf16.msra.mxu0 %v203
  %265 = vmatprep.subr.bf16.mxu0 0
  %266 = vmatpush1.bf16.msra.mxu0 %v204
  %267 = vmatprep.subr.bf16.mxu0 0
  %268 = vmatpush1.bf16.msra.mxu0 %v205
  %269 = vmatprep.subr.bf16.mxu0 0
  %270 = vmatpush1.bf16.msra.mxu0 %v206
  %271 = vmatprep.subr.bf16.mxu0 0
  %272 = vmatpush1.bf16.msra.mxu0 %v207
  %273 = vmatprep.mubr.bf16.mxu0 %v101
  %274 = vmatmul.mubr.bf16.gmra.mrb[0].mxu0 %v100
  %v275 = vpop.f32.mrb[0].mxu0
  %v276 = vadd.f32 0.0, %v275
  %v277 = vpop.f32.mrb[0].mxu0
  %v278 = vpop.f32.mrb[0].mxu0
  %v279 = vadd.f32 0.0, %v278
  %v280 = vpop.f32.mrb[0].mxu0
  %281 = vmatprep.mubr.bf16.mxu0 %v104
  %282 = vmatmul.mubr.bf16.gmra.mrb[0].mxu0 %v103
  %v283 = vpop.f32.mrb[0].mxu0
  %v284 = vadd.f32 0.0, %v283
  %v285 = vpop.f32.mrb[0].mxu0
  %v286 = vpop.f32.mrb[0].mxu0
  %v287 = vadd.f32 0.0, %v286
  %v288 = vpop.f32.mrb[0].mxu0
  %289 = vmatprep.mubr.bf16.mxu0 %v107
  %290 = vmatmul.mubr.bf16.gmra.mrb[0].mxu0 %v106
  %v291 = vpop.f32.mrb[0].mxu0
  %v292 = vadd.f32 0.0, %v291
  %v293 = vpop.f32.mrb[0].mxu0
  %v294 = vpop.f32.mrb[0].mxu0
  %v295 = vadd.f32 0.0, %v294
  %v296 = vpop.f32.mrb[0].mxu0
  %297 = vmatprep.mubr.bf16.mxu0 %v110
  %298 = vmatmul.mubr.bf16.gmra.mrb[0].mxu0 %v109
  %v299 = vpop.f32.mrb[0].mxu0
  %v300 = vadd.f32 0.0, %v299
  %v301 = vpop.f32.mrb[0].mxu0
  %v302 = vpop.f32.mrb[0].mxu0
  %v303 = vpop.f32.mrb[0].mxu0
  %304 = vdwg.mxu0
  %305 = vmatprep.subr.bf16.mxu0 0
  %306 = vmatpush1.bf16.msra.mxu0 %v208
  %307 = vmatprep.subr.bf16.mxu0 0
  %308 = vmatpush1.bf16.msra.mxu0 %v209
  %309 = vmatprep.subr.bf16.mxu0 0
  %310 = vmatpush1.bf16.msra.mxu0 0
  %311 = vmatprep.subr.bf16.mxu0 0
  %312 = vmatpush1.bf16.msra.mxu0 0
  %313 = vmatprep.subr.bf16.mxu0 0
  %314 = vmatpush1.bf16.msra.mxu0 0
  %315 = vmatprep.subr.bf16.mxu0 0
  %316 = vmatpush1.bf16.msra.mxu0 0
  %317 = vmatprep.subr.bf16.mxu0 0
  %318 = vmatpush1.bf16.msra.mxu0 0
  %319 = vmatprep.subr.bf16.mxu0 0
  %320 = vmatpush1.bf16.msra.mxu0 0
  %321 = vmatprep.subr.bf16.mxu0 0
  %322 = vmatpush1.bf16.msra.mxu0 0
  %323 = vmatprep.subr.bf16.mxu0 0
  %324 = vmatpush1.bf16.msra.mxu0 0
  %325 = vmatprep.subr.bf16.mxu0 0
  %326 = vmatpush1.bf16.msra.mxu0 0
  %327 = vmatprep.subr.bf16.mxu0 0
  %328 = vmatpush1.bf16.msra.mxu0 0
  %329 = vmatprep.subr.bf16.mxu0 0
  %330 = vmatpush1.bf16.msra.mxu0 0
  %331 = vmatprep.subr.bf16.mxu0 0
  %332 = vmatpush1.bf16.msra.mxu0 0
  %333 = vmatprep.subr.bf16.mxu0 0
  %334 = vmatpush1.bf16.msra.mxu0 0
  %335 = vmatprep.subr.bf16.mxu0 0
  %336 = vmatpush1.bf16.msra.mxu0 0
  %337 = vmatprep.mubr.bf16.mxu0 0
  %338 = vmatmul.mubr.bf16.gmra.mrb[0].mxu0 %v230
  %v339 = vpop.f32.mrb[0].mxu0
  %v340 = vadd.f32 %v276, %v339
  %v341 = vpop.f32.mrb[0].mxu0
  %v342 = vpop.f32.mrb[0].mxu0
  %v343 = vadd.f32 %v279, %v342
  %v344 = vpop.f32.mrb[0].mxu0
  %345 = vmatprep.mubr.bf16.mxu0 0
  %346 = vmatmul.mubr.bf16.gmra.mrb[0].mxu0 %v233
  %v347 = vpop.f32.mrb[0].mxu0
  %v348 = vadd.f32 %v284, %v347
  %v349 = vpop.f32.mrb[0].mxu0
  %v350 = vpop.f32.mrb[0].mxu0
  %v351 = vadd.f32 %v287, %v350
  %v352 = vpop.f32.mrb[0].mxu0
  %353 = vmatprep.mubr.bf16.mxu0 0
  %354 = vmatmul.mubr.bf16.gmra.mrb[0].mxu0 %v236
  %v355 = vpop.f32.mrb[0].mxu0
  %v356 = vadd.f32 %v292, %v355
  %v357 = vpop.f32.mrb[0].mxu0
  %v358 = vpop.f32.mrb[0].mxu0
  %v359 = vadd.f32 %v295, %v358
  %v360 = vpop.f32.mrb[0].mxu0
  %361 = vmatprep.mubr.bf16.mxu0 0
  %362 = vmatmul.mubr.bf16.gmra.mrb[0].mxu0 %v239
  %v363 = vpop.f32.mrb[0].mxu0
  %v364 = vadd.f32 %v300, %v363
  %v365 = vpop.f32.mrb[0].mxu0
  %v366 = vpop.f32.mrb[0].mxu0
  %v367 = vpop.f32.mrb[0].mxu0
  %368 = vdwg.mxu0
  %s369 = scalar_lea.vmem %s0, 84
  %v370 = vld [vmem:[%s369] sm:$0xff]
  %v371 = vld [vmem:[%s369 + $0x8] sm:$0xf]
  %v372 = vld [vmem:[%s369 + $0xc] sm:$0xff]
  %v373 = vld [vmem:[%s369 + $0x14] sm:$0xf]
  %v374 = vld [vmem:[%s369 + $0x18] sm:$0xff]
  %v375 = vld [vmem:[%s369 + $0x20] sm:$0xf]
  %v376 = vld [vmem:[%s369 + $0x24] sm:$0xff]
  %v377 = vld [vmem:[%s369 + $0x2c] sm:$0xf]
  %v378 = vld [vmem:[%s369 + $0x30] sm:$0xff]
  %v379 = vld [vmem:[%s369 + $0x38] sm:$0xf]
  %v380 = vld [vmem:[%s369 + $0x3c] sm:$0xff]
  %v381 = vld [vmem:[%s369 + $0x44] sm:$0xf]
  %v382 = vld [vmem:[%s369 + $0x48] sm:$0xff]
  %v383 = vld [vmem:[%s369 + $0x50] sm:$0xf]
  %v398 = vunpack.c.l.b16 %v370
  %v399 = vunpack.c.h.b16 %v370
  %v400 = vunpack.c.l.b16 %v371
  %v401 = vunpack.c.l.b16 %v372
  %v402 = vunpack.c.h.b16 %v372
  %v403 = vunpack.c.l.b16 %v373
  %v404 = vunpack.c.l.b16 %v374
  %v405 = vunpack.c.h.b16 %v374
  %v406 = vunpack.c.l.b16 %v375
  %v407 = vunpack.c.l.b16 %v376
  %v408 = vunpack.c.h.b16 %v376
  %v409 = vunpack.c.l.b16 %v377
  %v410 = vunpack.c.l.b16 %v378
  %v411 = vunpack.c.h.b16 %v378
  %v412 = vunpack.c.l.b16 %v379
  %v413 = vunpack.c.l.b16 %v380
  %v414 = vunpack.c.h.b16 %v380
  %v415 = vunpack.c.l.b16 %v381
  %v416 = vunpack.c.l.b16 %v382
  %v417 = vunpack.c.h.b16 %v382
  %v418 = vunpack.c.l.b16 %v383
  %v419 = vpack.c.b16 %v401, %v398
  %v420 = vpack.c.b16 %v402, %v399
  %v421 = vpack.c.b16 %v403, %v400
  %v422 = vpack.c.b16 %v407, %v404
  %v423 = vpack.c.b16 %v408, %v405
  %v424 = vpack.c.b16 %v409, %v406
  %v425 = vpack.c.b16 %v413, %v410
  %v426 = vpack.c.b16 %v414, %v411
  %v427 = vpack.c.b16 %v415, %v412
  %v428 = vpack.c.b16 %v416, %v416
  %v429 = vpack.c.b16 %v417, %v417
  %v430 = vpack.c.b16 %v418, %v418
  %v440 = vsel %vm228, %v421, 0
  %v443 = vsel %vm228, %v424, 0
  %v446 = vsel %vm228, %v427, 0
  %v449 = vsel %vm228, %v430, 0
  %451 = vmatprep.subr.bf16.mxu0 0
  %452 = vmatpush1.bf16.msra.mxu0 %v192
  %453 = vmatprep.subr.bf16.mxu0 0
  %454 = vmatpush1.bf16.msra.mxu0 %v193
  %455 = vmatprep.subr.bf16.mxu0 0
  %456 = vmatpush1.bf16.msra.mxu0 %v194
  %457 = vmatprep.subr.bf16.mxu0 0
  %458 = vmatpush1.bf16.msra.mxu0 %v195
  %459 = vmatprep.subr.bf16.mxu0 0
  %460 = vmatpush1.bf16.msra.mxu0 %v196
  %461 = vmatprep.subr.bf16.mxu0 0
  %462 = vmatpush1.bf16.msra.mxu0 %v197
  %463 = vmatprep.subr.bf16.mxu0 0
  %464 = vmatpush1.bf16.msra.mxu0 %v198
  %465 = vmatprep.subr.bf16.mxu0 0
  %466 = vmatpush1.bf16.msra.mxu0 %v199
  %467 = vmatprep.subr.bf16.mxu0 0
  %468 = vmatpush1.bf16.msra.mxu0 %v200
  %469 = vmatprep.subr.bf16.mxu0 0
  %470 = vmatpush1.bf16.msra.mxu0 %v201
  %471 = vmatprep.subr.bf16.mxu0 0
  %472 = vmatpush1.bf16.msra.mxu0 %v202
  %473 = vmatprep.subr.bf16.mxu0 0
  %474 = vmatpush1.bf16.msra.mxu0 %v203
  %475 = vmatprep.subr.bf16.mxu0 0
  %476 = vmatpush1.bf16.msra.mxu0 %v204
  %477 = vmatprep.subr.bf16.mxu0 0
  %478 = vmatpush1.bf16.msra.mxu0 %v205
  %479 = vmatprep.subr.bf16.mxu0 0
  %480 = vmatpush1.bf16.msra.mxu0 %v206
  %481 = vmatprep.subr.bf16.mxu0 0
  %482 = vmatpush1.bf16.msra.mxu0 %v207
  %483 = vmatprep.mubr.bf16.mxu0 %v420
  %484 = vmatmul.mubr.bf16.gmra.mrb[0].mxu0 %v419
  %v485 = vpop.f32.mrb[0].mxu0
  %v486 = vadd.f32 0.0, %v485
  %v487 = vpop.f32.mrb[0].mxu0
  %v488 = vpop.f32.mrb[0].mxu0
  %v489 = vadd.f32 0.0, %v488
  %v490 = vpop.f32.mrb[0].mxu0
  %491 = vmatprep.mubr.bf16.mxu0 %v423
  %492 = vmatmul.mubr.bf16.gmra.mrb[0].mxu0 %v422
  %v493 = vpop.f32.mrb[0].mxu0
  %v494 = vadd.f32 0.0, %v493
  %v495 = vpop.f32.mrb[0].mxu0
  %v496 = vpop.f32.mrb[0].mxu0
  %v497 = vadd.f32 0.0, %v496
  %v498 = vpop.f32.mrb[0].mxu0
  %499 = vmatprep.mubr.bf16.mxu0 %v426
  %500 = vmatmul.mubr.bf16.gmra.mrb[0].mxu0 %v425
  %v501 = vpop.f32.mrb[0].mxu0
  %v502 = vadd.f32 0.0, %v501
  %v503 = vpop.f32.mrb[0].mxu0
  %v504 = vpop.f32.mrb[0].mxu0
  %v505 = vadd.f32 0.0, %v504
  %v506 = vpop.f32.mrb[0].mxu0
  %507 = vmatprep.mubr.bf16.mxu0 %v429
  %508 = vmatmul.mubr.bf16.gmra.mrb[0].mxu0 %v428
  %v509 = vpop.f32.mrb[0].mxu0
  %v510 = vadd.f32 0.0, %v509
  %v511 = vpop.f32.mrb[0].mxu0
  %v512 = vpop.f32.mrb[0].mxu0
  %v513 = vpop.f32.mrb[0].mxu0
  %514 = vdwg.mxu0
  %515 = vmatprep.subr.bf16.mxu0 0
  %516 = vmatpush1.bf16.msra.mxu0 %v208
  %517 = vmatprep.subr.bf16.mxu0 0
  %518 = vmatpush1.bf16.msra.mxu0 %v209
  %519 = vmatprep.subr.bf16.mxu0 0
  %520 = vmatpush1.bf16.msra.mxu0 0
  %521 = vmatprep.subr.bf16.mxu0 0
  %522 = vmatpush1.bf16.msra.mxu0 0
  %523 = vmatprep.subr.bf16.mxu0 0
  %524 = vmatpush1.bf16.msra.mxu0 0
  %525 = vmatprep.subr.bf16.mxu0 0
  %526 = vmatpush1.bf16.msra.mxu0 0
  %527 = vmatprep.subr.bf16.mxu0 0
  %528 = vmatpush1.bf16.msra.mxu0 0
  %529 = vmatprep.subr.bf16.mxu0 0
  %530 = vmatpush1.bf16.msra.mxu0 0
  %531 = vmatprep.subr.bf16.mxu0 0
  %532 = vmatpush1.bf16.msra.mxu0 0
  %533 = vmatprep.subr.bf16.mxu0 0
  %534 = vmatpush1.bf16.msra.mxu0 0
  %535 = vmatprep.subr.bf16.mxu0 0
  %536 = vmatpush1.bf16.msra.mxu0 0
  %537 = vmatprep.subr.bf16.mxu0 0
  %538 = vmatpush1.bf16.msra.mxu0 0
  %539 = vmatprep.subr.bf16.mxu0 0
  %540 = vmatpush1.bf16.msra.mxu0 0
  %541 = vmatprep.subr.bf16.mxu0 0
  %542 = vmatpush1.bf16.msra.mxu0 0
  %543 = vmatprep.subr.bf16.mxu0 0
  %544 = vmatpush1.bf16.msra.mxu0 0
  %545 = vmatprep.subr.bf16.mxu0 0
  %546 = vmatpush1.bf16.msra.mxu0 0
  %547 = vmatprep.mubr.bf16.mxu0 0
  %548 = vmatmul.mubr.bf16.gmra.mrb[0].mxu0 %v440
  %v549 = vpop.f32.mrb[0].mxu0
  %v550 = vadd.f32 %v486, %v549
  %v551 = vpop.f32.mrb[0].mxu0
  %v552 = vpop.f32.mrb[0].mxu0
  %v553 = vadd.f32 %v489, %v552
  %v554 = vpop.f32.mrb[0].mxu0
  %555 = vmatprep.mubr.bf16.mxu0 0
  %556 = vmatmul.mubr.bf16.gmra.mrb[0].mxu0 %v443
  %v557 = vpop.f32.mrb[0].mxu0
  %v558 = vadd.f32 %v494, %v557
  %v559 = vpop.f32.mrb[0].mxu0
  %v560 = vpop.f32.mrb[0].mxu0
  %v561 = vadd.f32 %v497, %v560
  %v562 = vpop.f32.mrb[0].mxu0
  %563 = vmatprep.mubr.bf16.mxu0 0
  %564 = vmatmul.mubr.bf16.gmra.mrb[0].mxu0 %v446
  %v565 = vpop.f32.mrb[0].mxu0
  %v566 = vadd.f32 %v502, %v565
  %v567 = vpop.f32.mrb[0].mxu0
  %v568 = vpop.f32.mrb[0].mxu0
  %v569 = vadd.f32 %v505, %v568
  %v570 = vpop.f32.mrb[0].mxu0
  %571 = vmatprep.mubr.bf16.mxu0 0
  %572 = vmatmul.mubr.bf16.gmra.mrb[0].mxu0 %v449
  %v573 = vpop.f32.mrb[0].mxu0
  %v574 = vadd.f32 %v510, %v573
  %v575 = vpop.f32.mrb[0].mxu0
  %v576 = vpop.f32.mrb[0].mxu0
  %v577 = vpop.f32.mrb[0].mxu0
  %578 = vdwg.mxu0
  %v579 = vmax.f32 %v340, %v550
  %v580 = vmax.f32 %v343, %v553
  %v581 = vmax.f32 %v348, %v558
  %v582 = vmax.f32 %v351, %v561
  %v583 = vmax.f32 %v356, %v566
  %v584 = vmax.f32 %v359, %v569
  %v585 = vmax.f32 %v364, %v574
  %s586 = scalar_lea.vmem %s0, 168
  %v587 = vld [vmem:[%s586] sm:$0xff]
  %v588 = vld [vmem:[%s586 + $0x8] sm:$0xf]
  %v589 = vld [vmem:[%s586 + $0xc] sm:$0xff]
  %v590 = vld [vmem:[%s586 + $0x14] sm:$0xf]
  %v591 = vld [vmem:[%s586 + $0x18] sm:$0xff]
  %v592 = vld [vmem:[%s586 + $0x20] sm:$0xf]
  %v593 = vld [vmem:[%s586 + $0x24] sm:$0xff]
  %v594 = vld [vmem:[%s586 + $0x2c] sm:$0xf]
  %v595 = vld [vmem:[%s586 + $0x30] sm:$0xff]
  %v596 = vld [vmem:[%s586 + $0x38] sm:$0xf]
  %v597 = vld [vmem:[%s586 + $0x3c] sm:$0xff]
  %v598 = vld [vmem:[%s586 + $0x44] sm:$0xf]
  %v599 = vld [vmem:[%s586 + $0x48] sm:$0xff]
  %v600 = vld [vmem:[%s586 + $0x50] sm:$0xf]
  %v615 = vunpack.c.l.b16 %v587
  %v616 = vunpack.c.h.b16 %v587
  %v617 = vunpack.c.l.b16 %v588
  %v618 = vunpack.c.l.b16 %v589
  %v619 = vunpack.c.h.b16 %v589
  %v620 = vunpack.c.l.b16 %v590
  %v621 = vunpack.c.l.b16 %v591
  %v622 = vunpack.c.h.b16 %v591
  %v623 = vunpack.c.l.b16 %v592
  %v624 = vunpack.c.l.b16 %v593
  %v625 = vunpack.c.h.b16 %v593
  %v626 = vunpack.c.l.b16 %v594
  %v627 = vunpack.c.l.b16 %v595
  %v628 = vunpack.c.h.b16 %v595
  %v629 = vunpack.c.l.b16 %v596
  %v630 = vunpack.c.l.b16 %v597
  %v631 = vunpack.c.h.b16 %v597
  %v632 = vunpack.c.l.b16 %v598
  %v633 = vunpack.c.l.b16 %v599
  %v634 = vunpack.c.h.b16 %v599
  %v635 = vunpack.c.l.b16 %v600
  %v636 = vpack.c.b16 %v618, %v615
  %v637 = vpack.c.b16 %v619, %v616
  %v638 = vpack.c.b16 %v620, %v617
  %v639 = vpack.c.b16 %v624, %v621
  %v640 = vpack.c.b16 %v625, %v622
  %v641 = vpack.c.b16 %v626, %v623
  %v642 = vpack.c.b16 %v630, %v627
  %v643 = vpack.c.b16 %v631, %v628
  %v644 = vpack.c.b16 %v632, %v629
  %v645 = vpack.c.b16 %v633, %v633
  %v646 = vpack.c.b16 %v634, %v634
  %v647 = vpack.c.b16 %v635, %v635
  %v657 = vsel %vm228, %v638, 0
  %v660 = vsel %vm228, %v641, 0
  %v663 = vsel %vm228, %v644, 0
  %v666 = vsel %vm228, %v647, 0
  %668 = vmatprep.subr.bf16.mxu0 0
  %669 = vmatpush1.bf16.msra.mxu0 %v192
  %670 = vmatprep.subr.bf16.mxu0 0
  %671 = vmatpush1.bf16.msra.mxu0 %v193
  %672 = vmatprep.subr.bf16.mxu0 0
  %673 = vmatpush1.bf16.msra.mxu0 %v194
  %674 = vmatprep.subr.bf16.mxu0 0
  %675 = vmatpush1.bf16.msra.mxu0 %v195
  %676 = vmatprep.subr.bf16.mxu0 0
  %677 = vmatpush1.bf16.msra.mxu0 %v196
  %678 = vmatprep.subr.bf16.mxu0 0
  %679 = vmatpush1.bf16.msra.mxu0 %v197
  %680 = vmatprep.subr.bf16.mxu0 0
  %681 = vmatpush1.bf16.msra.mxu0 %v198
  %682 = vmatprep.subr.bf16.mxu0 0
  %683 = vmatpush1.bf16.msra.mxu0 %v199
  %684 = vmatprep.subr.bf16.mxu0 0
  %685 = vmatpush1.bf16.msra.mxu0 %v200
  %686 = vmatprep.subr.bf16.mxu0 0
  %687 = vmatpush1.bf16.msra.mxu0 %v201
  %688 = vmatprep.subr.bf16.mxu0 0
  %689 = vmatpush1.bf16.msra.mxu0 %v202
  %690 = vmatprep.subr.bf16.mxu0 0
  %691 = vmatpush1.bf16.msra.mxu0 %v203
  %692 = vmatprep.subr.bf16.mxu0 0
  %693 = vmatpush1.bf16.msra.mxu0 %v204
  %694 = vmatprep.subr.bf16.mxu0 0
  %695 = vmatpush1.bf16.msra.mxu0 %v205
  %696 = vmatprep.subr.bf16.mxu0 0
  %697 = vmatpush1.bf16.msra.mxu0 %v206
  %698 = vmatprep.subr.bf16.mxu0 0
  %699 = vmatpush1.bf16.msra.mxu0 %v207
  %700 = vmatprep.mubr.bf16.mxu0 %v637
  %701 = vmatmul.mubr.bf16.gmra.mrb[0].mxu0 %v636
  %v702 = vpop.f32.mrb[0].mxu0
  %v703 = vadd.f32 0.0, %v702
  %v704 = vpop.f32.mrb[0].mxu0
  %v705 = vpop.f32.mrb[0].mxu0
  %v706 = vadd.f32 0.0, %v705
  %v707 = vpop.f32.mrb[0].mxu0
  %708 = vmatprep.mubr.bf16.mxu0 %v640
  %709 = vmatmul.mubr.bf16.gmra.mrb[0].mxu0 %v639
  %v710 = vpop.f32.mrb[0].mxu0
  %v711 = vadd.f32 0.0, %v710
  %v712 = vpop.f32.mrb[0].mxu0
  %v713 = vpop.f32.mrb[0].mxu0
  %v714 = vadd.f32 0.0, %v713
  %v715 = vpop.f32.mrb[0].mxu0
  %716 = vmatprep.mubr.bf16.mxu0 %v643
  %717 = vmatmul.mubr.bf16.gmra.mrb[0].mxu0 %v642
  %v718 = vpop.f32.mrb[0].mxu0
  %v719 = vadd.f32 0.0, %v718
  %v720 = vpop.f32.mrb[0].mxu0
  %v721 = vpop.f32.mrb[0].mxu0
  %v722 = vadd.f32 0.0, %v721
  %v723 = vpop.f32.mrb[0].mxu0
  %724 = vmatprep.mubr.bf16.mxu0 %v646
  %725 = vmatmul.mubr.bf16.gmra.mrb[0].mxu0 %v645
  %v726 = vpop.f32.mrb[0].mxu0
  %v727 = vadd.f32 0.0, %v726
  %v728 = vpop.f32.mrb[0].mxu0
  %v729 = vpop.f32.mrb[0].mxu0
  %v730 = vpop.f32.mrb[0].mxu0
  %731 = vdwg.mxu0
  %732 = vmatprep.subr.bf16.mxu0 0
  %733 = vmatpush1.bf16.msra.mxu0 %v208
  %734 = vmatprep.subr.bf16.mxu0 0
  %735 = vmatpush1.bf16.msra.mxu0 %v209
  %736 = vmatprep.subr.bf16.mxu0 0
  %737 = vmatpush1.bf16.msra.mxu0 0
  %738 = vmatprep.subr.bf16.mxu0 0
  %739 = vmatpush1.bf16.msra.mxu0 0
  %740 = vmatprep.subr.bf16.mxu0 0
  %741 = vmatpush1.bf16.msra.mxu0 0
  %742 = vmatprep.subr.bf16.mxu0 0
  %743 = vmatpush1.bf16.msra.mxu0 0
  %744 = vmatprep.subr.bf16.mxu0 0
  %745 = vmatpush1.bf16.msra.mxu0 0
  %746 = vmatprep.subr.bf16.mxu0 0
  %747 = vmatpush1.bf16.msra.mxu0 0
  %748 = vmatprep.subr.bf16.mxu0 0
  %749 = vmatpush1.bf16.msra.mxu0 0
  %750 = vmatprep.subr.bf16.mxu0 0
  %751 = vmatpush1.bf16.msra.mxu0 0
  %752 = vmatprep.subr.bf16.mxu0 0
  %753 = vmatpush1.bf16.msra.mxu0 0
  %754 = vmatprep.subr.bf16.mxu0 0
  %755 = vmatpush1.bf16.msra.mxu0 0
  %756 = vmatprep.subr.bf16.mxu0 0
  %757 = vmatpush1.bf16.msra.mxu0 0
  %758 = vmatprep.subr.bf16.mxu0 0
  %759 = vmatpush1.bf16.msra.mxu0 0
  %760 = vmatprep.subr.bf16.mxu0 0
  %761 = vmatpush1.bf16.msra.mxu0 0
  %762 = vmatprep.subr.bf16.mxu0 0
  %763 = vmatpush1.bf16.msra.mxu0 0
  %764 = vmatprep.mubr.bf16.mxu0 0
  %765 = vmatmul.mubr.bf16.gmra.mrb[0].mxu0 %v657
  %v766 = vpop.f32.mrb[0].mxu0
  %v767 = vadd.f32 %v703, %v766
  %v768 = vpop.f32.mrb[0].mxu0
  %v769 = vpop.f32.mrb[0].mxu0
  %v770 = vadd.f32 %v706, %v769
  %v771 = vpop.f32.mrb[0].mxu0
  %772 = vmatprep.mubr.bf16.mxu0 0
  %773 = vmatmul.mubr.bf16.gmra.mrb[0].mxu0 %v660
  %v774 = vpop.f32.mrb[0].mxu0
  %v775 = vadd.f32 %v711, %v774
  %v776 = vpop.f32.mrb[0].mxu0
  %v777 = vpop.f32.mrb[0].mxu0
  %v778 = vadd.f32 %v714, %v777
  %v779 = vpop.f32.mrb[0].mxu0
  %780 = vmatprep.mubr.bf16.mxu0 0
  %781 = vmatmul.mubr.bf16.gmra.mrb[0].mxu0 %v663
  %v782 = vpop.f32.mrb[0].mxu0
  %v783 = vadd.f32 %v719, %v782
  %v784 = vpop.f32.mrb[0].mxu0
  %v785 = vpop.f32.mrb[0].mxu0
  %v786 = vadd.f32 %v722, %v785
  %v787 = vpop.f32.mrb[0].mxu0
  %788 = vmatprep.mubr.bf16.mxu0 0
  %789 = vmatmul.mubr.bf16.gmra.mrb[0].mxu0 %v666
  %v790 = vpop.f32.mrb[0].mxu0
  %v791 = vadd.f32 %v727, %v790
  %v792 = vpop.f32.mrb[0].mxu0
  %v793 = vpop.f32.mrb[0].mxu0
  %v794 = vpop.f32.mrb[0].mxu0
  %795 = vdwg.mxu0
  %v796 = vmax.f32 %v579, %v767
  %v797 = vmax.f32 %v580, %v770
  %v798 = vmax.f32 %v581, %v775
  %v799 = vmax.f32 %v582, %v778
  %v800 = vmax.f32 %v583, %v783
  %v801 = vmax.f32 %v584, %v786
  %v802 = vmax.f32 %v585, %v791
  %s803 = scalar_lea.vmem %s0, 252
  %v804 = vld [vmem:[%s803] sm:$0xff]
  %v805 = vld [vmem:[%s803 + $0x8] sm:$0xf]
  %v806 = vld [vmem:[%s803 + $0xc] sm:$0xff]
  %v807 = vld [vmem:[%s803 + $0x14] sm:$0xf]
  %v808 = vld [vmem:[%s803 + $0x18] sm:$0xff]
  %v809 = vld [vmem:[%s803 + $0x20] sm:$0xf]
  %v810 = vld [vmem:[%s803 + $0x24] sm:$0xff]
  %v811 = vld [vmem:[%s803 + $0x2c] sm:$0xf]
  %v812 = vld [vmem:[%s803 + $0x30] sm:$0xff]
  %v813 = vld [vmem:[%s803 + $0x38] sm:$0xf]
  %v814 = vld [vmem:[%s803 + $0x3c] sm:$0xff]
  %v815 = vld [vmem:[%s803 + $0x44] sm:$0xf]
  %v816 = vld [vmem:[%s803 + $0x48] sm:$0xff]
  %v817 = vld [vmem:[%s803 + $0x50] sm:$0xf]
  %v832 = vunpack.c.l.b16 %v804
  %v833 = vunpack.c.h.b16 %v804
  %v834 = vunpack.c.l.b16 %v805
  %v835 = vunpack.c.l.b16 %v806
  %v836 = vunpack.c.h.b16 %v806
  %v837 = vunpack.c.l.b16 %v807
  %v838 = vunpack.c.l.b16 %v808
  %v839 = vunpack.c.h.b16 %v808
  %v840 = vunpack.c.l.b16 %v809
  %v841 = vunpack.c.l.b16 %v810
  %v842 = vunpack.c.h.b16 %v810
  %v843 = vunpack.c.l.b16 %v811
  %v844 = vunpack.c.l.b16 %v812
  %v845 = vunpack.c.h.b16 %v812
  %v846 = vunpack.c.l.b16 %v813
  %v847 = vunpack.c.l.b16 %v814
  %v848 = vunpack.c.h.b16 %v814
  %v849 = vunpack.c.l.b16 %v815
  %v850 = vunpack.c.l.b16 %v816
  %v851 = vunpack.c.h.b16 %v816
  %v852 = vunpack.c.l.b16 %v817
  %v853 = vpack.c.b16 %v835, %v832
  %v854 = vpack.c.b16 %v836, %v833
  %v855 = vpack.c.b16 %v837, %v834
  %v856 = vpack.c.b16 %v841, %v838
  %v857 = vpack.c.b16 %v842, %v839
  %v858 = vpack.c.b16 %v843, %v840
  %v859 = vpack.c.b16 %v847, %v844
  %v860 = vpack.c.b16 %v848, %v845
  %v861 = vpack.c.b16 %v849, %v846
  %v862 = vpack.c.b16 %v850, %v850
  %v863 = vpack.c.b16 %v851, %v851
  %v864 = vpack.c.b16 %v852, %v852
  %v874 = vsel %vm228, %v855, 0
  %v877 = vsel %vm228, %v858, 0
  %v880 = vsel %vm228, %v861, 0
  %v883 = vsel %vm228, %v864, 0
  %885 = vmatprep.subr.bf16.mxu0 0
  %886 = vmatpush1.bf16.msra.mxu0 %v192
  %887 = vmatprep.subr.bf16.mxu0 0
  %888 = vmatpush1.bf16.msra.mxu0 %v193
  %889 = vmatprep.subr.bf16.mxu0 0
  %890 = vmatpush1.bf16.msra.mxu0 %v194
  %891 = vmatprep.subr.bf16.mxu0 0
  %892 = vmatpush1.bf16.msra.mxu0 %v195
  %893 = vmatprep.subr.bf16.mxu0 0
  %894 = vmatpush1.bf16.msra.mxu0 %v196
  %895 = vmatprep.subr.bf16.mxu0 0
  %896 = vmatpush1.bf16.msra.mxu0 %v197
  %897 = vmatprep.subr.bf16.mxu0 0
  %898 = vmatpush1.bf16.msra.mxu0 %v198
  %899 = vmatprep.subr.bf16.mxu0 0
  %900 = vmatpush1.bf16.msra.mxu0 %v199
  %901 = vmatprep.subr.bf16.mxu0 0
  %902 = vmatpush1.bf16.msra.mxu0 %v200
  %903 = vmatprep.subr.bf16.mxu0 0
  %904 = vmatpush1.bf16.msra.mxu0 %v201
  %905 = vmatprep.subr.bf16.mxu0 0
  %906 = vmatpush1.bf16.msra.mxu0 %v202
  %907 = vmatprep.subr.bf16.mxu0 0
  %908 = vmatpush1.bf16.msra.mxu0 %v203
  %909 = vmatprep.subr.bf16.mxu0 0
  %910 = vmatpush1.bf16.msra.mxu0 %v204
  %911 = vmatprep.subr.bf16.mxu0 0
  %912 = vmatpush1.bf16.msra.mxu0 %v205
  %913 = vmatprep.subr.bf16.mxu0 0
  %914 = vmatpush1.bf16.msra.mxu0 %v206
  %915 = vmatprep.subr.bf16.mxu0 0
  %916 = vmatpush1.bf16.msra.mxu0 %v207
  %917 = vmatprep.mubr.bf16.mxu0 %v854
  %918 = vmatmul.mubr.bf16.gmra.mrb[0].mxu0 %v853
  %v919 = vpop.f32.mrb[0].mxu0
  %v920 = vadd.f32 0.0, %v919
  %v921 = vpop.f32.mrb[0].mxu0
  %v922 = vpop.f32.mrb[0].mxu0
  %v923 = vadd.f32 0.0, %v922
  %v924 = vpop.f32.mrb[0].mxu0
  %925 = vmatprep.mubr.bf16.mxu0 %v857
  %926 = vmatmul.mubr.bf16.gmra.mrb[0].mxu0 %v856
  %v927 = vpop.f32.mrb[0].mxu0
  %v928 = vadd.f32 0.0, %v927
  %v929 = vpop.f32.mrb[0].mxu0
  %v930 = vpop.f32.mrb[0].mxu0
  %v931 = vadd.f32 0.0, %v930
  %v932 = vpop.f32.mrb[0].mxu0
  %933 = vmatprep.mubr.bf16.mxu0 %v860
  %934 = vmatmul.mubr.bf16.gmra.mrb[0].mxu0 %v859
  %v935 = vpop.f32.mrb[0].mxu0
  %v936 = vadd.f32 0.0, %v935
  %v937 = vpop.f32.mrb[0].mxu0
  %v938 = vpop.f32.mrb[0].mxu0
  %v939 = vadd.f32 0.0, %v938
  %v940 = vpop.f32.mrb[0].mxu0
  %941 = vmatprep.mubr.bf16.mxu0 %v863
  %942 = vmatmul.mubr.bf16.gmra.mrb[0].mxu0 %v862
  %v943 = vpop.f32.mrb[0].mxu0
  %v944 = vadd.f32 0.0, %v943
  %v945 = vpop.f32.mrb[0].mxu0
  %v946 = vpop.f32.mrb[0].mxu0
  %v947 = vpop.f32.mrb[0].mxu0
  %948 = vdwg.mxu0
  %949 = vmatprep.subr.bf16.mxu0 0
  %950 = vmatpush1.bf16.msra.mxu0 %v208
  %951 = vmatprep.subr.bf16.mxu0 0
  %952 = vmatpush1.bf16.msra.mxu0 %v209
  %953 = vmatprep.subr.bf16.mxu0 0
  %954 = vmatpush1.bf16.msra.mxu0 0
  %955 = vmatprep.subr.bf16.mxu0 0
  %956 = vmatpush1.bf16.msra.mxu0 0
  %957 = vmatprep.subr.bf16.mxu0 0
  %958 = vmatpush1.bf16.msra.mxu0 0
  %959 = vmatprep.subr.bf16.mxu0 0
  %960 = vmatpush1.bf16.msra.mxu0 0
  %961 = vmatprep.subr.bf16.mxu0 0
  %962 = vmatpush1.bf16.msra.mxu0 0
  %963 = vmatprep.subr.bf16.mxu0 0
  %964 = vmatpush1.bf16.msra.mxu0 0
  %965 = vmatprep.subr.bf16.mxu0 0
  %966 = vmatpush1.bf16.msra.mxu0 0
  %967 = vmatprep.subr.bf16.mxu0 0
  %968 = vmatpush1.bf16.msra.mxu0 0
  %969 = vmatprep.subr.bf16.mxu0 0
  %970 = vmatpush1.bf16.msra.mxu0 0
  %971 = vmatprep.subr.bf16.mxu0 0
  %972 = vmatpush1.bf16.msra.mxu0 0
  %973 = vmatprep.subr.bf16.mxu0 0
  %974 = vmatpush1.bf16.msra.mxu0 0
  %975 = vmatprep.subr.bf16.mxu0 0
  %976 = vmatpush1.bf16.msra.mxu0 0
  %977 = vmatprep.subr.bf16.mxu0 0
  %978 = vmatpush1.bf16.msra.mxu0 0
  %979 = vmatprep.subr.bf16.mxu0 0
  %980 = vmatpush1.bf16.msra.mxu0 0
  %981 = vmatprep.mubr.bf16.mxu0 0
  %982 = vmatmul.mubr.bf16.gmra.mrb[0].mxu0 %v874
  %v983 = vpop.f32.mrb[0].mxu0
  %v984 = vadd.f32 %v920, %v983
  %v985 = vpop.f32.mrb[0].mxu0
  %v986 = vpop.f32.mrb[0].mxu0
  %v987 = vadd.f32 %v923, %v986
  %v988 = vpop.f32.mrb[0].mxu0
  %989 = vmatprep.mubr.bf16.mxu0 0
  %990 = vmatmul.mubr.bf16.gmra.mrb[0].mxu0 %v877
  %v991 = vpop.f32.mrb[0].mxu0
  %v992 = vadd.f32 %v928, %v991
  %v993 = vpop.f32.mrb[0].mxu0
  %v994 = vpop.f32.mrb[0].mxu0
  %v995 = vadd.f32 %v931, %v994
  %v996 = vpop.f32.mrb[0].mxu0
  %997 = vmatprep.mubr.bf16.mxu0 0
  %998 = vmatmul.mubr.bf16.gmra.mrb[0].mxu0 %v880
  %v999 = vpop.f32.mrb[0].mxu0
  %v1000 = vadd.f32 %v936, %v999
  %v1001 = vpop.f32.mrb[0].mxu0
  %v1002 = vpop.f32.mrb[0].mxu0
  %v1003 = vadd.f32 %v939, %v1002
  %v1004 = vpop.f32.mrb[0].mxu0
  %1005 = vmatprep.mubr.bf16.mxu0 0
  %1006 = vmatmul.mubr.bf16.gmra.mrb[0].mxu0 %v883
  %v1007 = vpop.f32.mrb[0].mxu0
  %v1008 = vadd.f32 %v944, %v1007
  %v1009 = vpop.f32.mrb[0].mxu0
  %v1010 = vpop.f32.mrb[0].mxu0
  %v1011 = vpop.f32.mrb[0].mxu0
  %1012 = vdwg.mxu0
  %v1013 = vmax.f32 %v796, %v984
  %v1014 = vmax.f32 %v797, %v987
  %v1015 = vmax.f32 %v798, %v992
  %v1016 = vmax.f32 %v799, %v995
  %v1017 = vmax.f32 %v800, %v1000
  %v1018 = vmax.f32 %v801, %v1003
  %v1019 = vmax.f32 %v802, %v1008
  %v1020 = vld [vmem:[%s2] sm:$0x1]
  %v1022 = vlaneseq
  %v1023 = vshrl.u32 %v1022, 7
  %v1024 = vsub.s32 0, %v1023
  %v1025 = vrot.slane %v1020, %v1024
  %v1027 = vadd.f32 %v1013, %v1025
  %v1028 = vadd.f32 %v1014, %v1025
  %v1029 = vadd.f32 %v1015, %v1025
  %v1030 = vadd.f32 %v1016, %v1025
  %v1031 = vadd.f32 %v1017, %v1025
  %v1032 = vadd.f32 %v1018, %v1025
  %v1033 = vadd.f32 %v1019, %v1025
  %v1034 = vmax.f32 %v1027, 0.0
  %v1035 = vmax.f32 %v1028, 0.0
  %v1036 = vmax.f32 %v1029, 0.0
  %v1037 = vmax.f32 %v1030, 0.0
  %v1038 = vmax.f32 %v1031, 0.0
  %v1039 = vmax.f32 %v1032, 0.0
  %v1040 = vmax.f32 %v1033, 0.0
  %v1041 = vpack.c.bf16 %v1035, %v1034
  %v1042 = vpack.c.bf16 %v1037, %v1036
  %v1043 = vpack.c.bf16 %v1039, %v1038
  %v1044 = vpack.c.bf16 %v1040, %v1040
  %v1049 = vunpack.c.l.b16 %v1041
  %v1050 = vunpack.c.h.b16 %v1041
  %v1051 = vunpack.c.l.b16 %v1042
  %v1052 = vunpack.c.h.b16 %v1042
  %v1053 = vunpack.c.l.b16 %v1043
  %v1054 = vunpack.c.h.b16 %v1043
  %v1055 = vunpack.c.l.b16 %v1044
  %v1056 = vpack.c.b16 %v1049, %v1049
  %v1057 = vpack.c.b16 %v1050, %v1050
  %v1058 = vpack.c.b16 %v1051, %v1051
  %v1059 = vpack.c.b16 %v1052, %v1052
  %v1060 = vpack.c.b16 %v1053, %v1053
  %v1061 = vpack.c.b16 %v1054, %v1054
  %v1062 = vpack.c.b16 %v1055, %v1055
  %vm1070 = vcmask 519168
  %1071 = vst.msk [vmem:[%s3] sm:$0xf] %vm1070, %v1056
  %1072 = vst.msk [vmem:[%s3 + $0x4] sm:$0xf] %vm1070, %v1057
  %1073 = vst.msk [vmem:[%s3 + $0x8] sm:$0xf] %vm1070, %v1058
  %1074 = vst.msk [vmem:[%s3 + $0xc] sm:$0xf] %vm1070, %v1059
  %1075 = vst.msk [vmem:[%s3 + $0x10] sm:$0xf] %vm1070, %v1060
  %1076 = vst.msk [vmem:[%s3 + $0x14] sm:$0xf] %vm1070, %v1061
  %1077 = vst.msk [vmem:[%s3 + $0x18] sm:$0xf] %vm1070, %v1062
  // Predicated region
  $region14: #{forward.4} parent=0 // pred_check
    _
  $region15: #{forward.4} parent=0 // pred_check_branch
    %1079 = sbr.rel (0) target = $region17
  $region16: #{forward.4} parent=0 // pred_region
    _
  $region17: #{forward.4} parent=0 // pred_fallthru
    _
  // Predicated region
  $region18: #{forward.4} parent=0 // pred_check
    _
  $region19: #{forward.4} parent=0 // pred_check_branch
    %1081 = sbr.rel (0) target = $region21
  $region20: #{forward.4} parent=0 // pred_region
    _
  $region21: #{forward.4} parent=0 // pred_fallthru
    _

</llo_original>
